<compile_context>
chip_gen: v5e
topology: v5e:2x2
jax: 0.10.0
libtpu: 0.0.40
codegen_flags: <defaults>
</compile_context>

<pallas_src>
import functools

import jax
import jax.numpy as jnp
from jax.experimental import pallas as pl
from jax.experimental.pallas import tpu as pltpu

LANE = 128        # lane width (last dim)
SUBLANE = 8       # f32 sublane granule
BF16_SUBLANE = 16  # bf16 sublane-packing granule


def _round_up(x, m):
    return (x + m - 1) // m * m


# ----------------------------------------------------------------------------
# Fused decoder kernel: 4 x (matmul + bias), ReLU between layers.
# Operates on one batch tile per grid step; weights/biases are full-array
# blocks with constant index maps (VMEM-resident across the whole grid).
# ----------------------------------------------------------------------------
def _fused_decoder_kernel(x_ref,
                          w0_ref, b0_ref,
                          w1_ref, b1_ref,
                          w2_ref, b2_ref,
                          w3_ref, b3_ref,
                          o_ref):
    h = x_ref[...]                                              # bf16 (Tb, K0)
    layers = ((w0_ref, b0_ref, True),
              (w1_ref, b1_ref, True),
              (w2_ref, b2_ref, True),
              (w3_ref, b3_ref, False))
    for w_ref, b_ref, relu in layers:
        y = jnp.dot(h.astype(w_ref.dtype), w_ref[...],
                    preferred_element_type=jnp.float32)          # MXU, f32 acc
        y = y + b_ref[...]                                       # f32 epilogue
        h = jnp.maximum(y, 0.0) if relu else y
    o_ref[...] = h.astype(o_ref.dtype)


# ----------------------------------------------------------------------------
# Parameter init (mimics PyTorch nn.Linear default init), stored unpadded f32.
# Weights are (in_features, out_features) so y = x @ W + b.
# ----------------------------------------------------------------------------
def init_decoder_params(key, input_dim, feature_dim):
    dims = [(feature_dim, 2000), (2000, 500), (500, 500), (500, input_dim)]
    params = []
    for (i, o), k in zip(dims, jax.random.split(key, len(dims))):
        kw, kb = jax.random.split(k)
        bound = 1.0 / (i ** 0.5)
        w = jax.random.uniform(kw, (i, o), jnp.float32, -bound, bound)
        b = jax.random.uniform(kb, (o,), jnp.float32, -bound, bound)
        params.append((w, b))
    return params


def pad_decoder_params(params):
    """Zero-pad layers once, up-front, with minimal padding.

    * Layer-0 K: only padded to the bf16 sublane granule (16).
    * Intermediate N (and therefore the next layer's K): padded to 128 lanes
      so the big matmuls and intermediate activations are lane-dense.
    * Final-layer N: left at its true width (tiny masked store is cheap; saves
      ~112 KiB of W3 DMA for input_dim=16).

    Weights -> bf16 (MXU operands), biases -> f32 (epilogue).  Padded rows /
    cols are zero so they never affect the un-padded slice of the output.
    """
    n_layers = len(params)
    padded = []
    prev_np = None
    for idx, (w, b) in enumerate(params):
        k, n = w.shape
        kp = _round_up(k, BF16_SUBLANE) if idx == 0 else prev_np
        np_ = n if idx == n_layers - 1 else _round_up(n, LANE)
        prev_np = np_
        wp = jnp.zeros((kp, np_), jnp.bfloat16).at[:k, :n].set(
            w.astype(jnp.bfloat16))
        bp = jnp.zeros((1, np_), jnp.float32).at[:, :n].set(b)
        padded.append(wp)
        padded.append(bp)
    return tuple(padded)


# ----------------------------------------------------------------------------
# Jitted forward: pad input, run the fused batch-tiled kernel, un-pad output.
# ----------------------------------------------------------------------------
@functools.partial(jax.jit, static_argnames=("out_dim",))
def decoder_forward(x, padded, *, out_dim):
    B, K = x.shape
    k0p = padded[0].shape[0]          # padded layer-0 contraction dim
    n_out = padded[-2].shape[1]       # final output width (un-padded)

    # Batch tile: big enough to feed the MXU for real batches, sized so the
    # per-tile live set (weights ~3 MiB + f32 (TILE_B, 2048) hidden + x/out
    # double buffers) stays far under v7x's 64 MiB VMEM.
    TILE_B = 256 if B > 256 else _round_up(B, SUBLANE)
    bp = _round_up(B, TILE_B)
    grid = (bp // TILE_B,)

    x_pad = jnp.zeros((bp, k0p), jnp.bfloat16).at[:B, :K].set(
        x.astype(jnp.bfloat16))

    # Weights / biases: full-array blocks, constant index map -> DMA'd once,
    # VMEM-resident across all batch tiles.
    wb_specs = [pl.BlockSpec(p.shape, lambda i: (0, 0)) for p in padded]

    # Advisory cost estimate from the (near-real) shapes.
    flops = 0
    bytes_accessed = x_pad.size * 2 + bp * n_out * 4
    for i in range(0, len(padded), 2):
        w, b = padded[i], padded[i + 1]
        flops += 2 * bp * w.shape[0] * w.shape[1]
        bytes_accessed += w.size * 2 + b.size * 4

    out_pad = pl.pallas_call(
        _fused_decoder_kernel,
        out_shape=jax.ShapeDtypeStruct((bp, n_out), jnp.float32),
        grid=grid,
        in_specs=[pl.BlockSpec((TILE_B, k0p), lambda i: (i, 0))] + wb_specs,
        out_specs=pl.BlockSpec((TILE_B, n_out), lambda i: (i, 0)),
        compiler_params=pltpu.CompilerParams(
            dimension_semantics=("parallel",),
            vmem_limit_bytes=32 * 1024 * 1024),
        cost_estimate=pl.CostEstimate(flops=flops, transcendentals=0,
                                      bytes_accessed=bytes_accessed),
    )(x_pad, *padded)

    return out_pad[:B, :out_dim]


# ----------------------------------------------------------------------------
# Main
# ----------------------------------------------------------------------------
if __name__ == "__main__":
    input_dim = 16      # Decoder output width
    feature_dim = 32    # Decoder input width
    batch = 8

    root = jax.random.PRNGKey(0)
    k_params, k_x = jax.random.split(root)

    params = init_decoder_params(k_params, input_dim, feature_dim)
    padded = pad_decoder_params(params)

    x = jax.random.normal(k_x, (batch, feature_dim), jnp.float32)

    out = decoder_forward(x, padded, out_dim=input_dim)
    out = jax.block_until_ready(out)

    assert out.shape == (batch, input_dim), out.shape
    assert not bool(jnp.any(jnp.isnan(out)))

    # Pure-JAX reference with identical numerics (bf16 operands, f32 accum).
    # TODO(synk): parity vs the true f32 PyTorch module should be validated
    # separately (bf16 weights are an intentional perf tradeoff).
    def reference(params, x):
        h = x
        for i, (w, b) in enumerate(params):
            y = jnp.dot(h.astype(jnp.bfloat16), w.astype(jnp.bfloat16),
                        preferred_element_type=jnp.float32) + b
            h = jnp.maximum(y, 0.0) if i < len(params) - 1 else y
        return h

    ref = jax.block_until_ready(reference(params, x))
    max_err = float(jnp.max(jnp.abs(out - ref)))
    assert max_err < 1e-2, f"max abs error {max_err}"

    print("KERNEL_OK")
</pallas_src>

<mosaic_0001>
module attributes {stable_mosaic.version = 11 : i64} {
  func.func @_fused_decoder_kernel(%arg0: i32, %arg1: memref<8x32xbf16, #tpu.memory_space<vmem>>, %arg2: memref<32x2048xbf16, #tpu.memory_space<vmem>>, %arg3: memref<1x2048xf32, #tpu.memory_space<vmem>>, %arg4: memref<2048x512xbf16, #tpu.memory_space<vmem>>, %arg5: memref<1x512xf32, #tpu.memory_space<vmem>>, %arg6: memref<512x512xbf16, #tpu.memory_space<vmem>>, %arg7: memref<1x512xf32, #tpu.memory_space<vmem>>, %arg8: memref<512x16xbf16, #tpu.memory_space<vmem>>, %arg9: memref<1x16xf32, #tpu.memory_space<vmem>>, %arg10: memref<8x16xf32, #tpu.memory_space<vmem>>) attributes {dimension_semantics = [#tpu.dimension_semantics<parallel>], iteration_bounds = array<i64: 1>, scalar_prefetch = 0 : i64, scratch_operands = 0 : i64, tpu.core_type = #tpu.core_type<tc>, window_params = [{transform_indices = @transform_0, window_bounds = array<i64: 8, 32>}, {pipeline_mode = #tpu.pipeline_mode<synchronous>, transform_indices = @transform_1, window_bounds = array<i64: 32, 2048>}, {pipeline_mode = #tpu.pipeline_mode<synchronous>, transform_indices = @transform_2, window_bounds = array<i64: 1, 2048>}, {pipeline_mode = #tpu.pipeline_mode<synchronous>, transform_indices = @transform_3, window_bounds = array<i64: 2048, 512>}, {pipeline_mode = #tpu.pipeline_mode<synchronous>, transform_indices = @transform_4, window_bounds = array<i64: 1, 512>}, {pipeline_mode = #tpu.pipeline_mode<synchronous>, transform_indices = @transform_5, window_bounds = array<i64: 512, 512>}, {pipeline_mode = #tpu.pipeline_mode<synchronous>, transform_indices = @transform_6, window_bounds = array<i64: 1, 512>}, {pipeline_mode = #tpu.pipeline_mode<synchronous>, transform_indices = @transform_7, window_bounds = array<i64: 512, 16>}, {pipeline_mode = #tpu.pipeline_mode<synchronous>, transform_indices = @transform_8, window_bounds = array<i64: 1, 16>}, {transform_indices = @transform_9, window_bounds = array<i64: 8, 16>}]} {
    %c0 = arith.constant 0 : index
    %c0_0 = arith.constant 0 : index
    %0 = vector.load %arg1[%c0, %c0_0] : memref<8x32xbf16, #tpu.memory_space<vmem>>, vector<8x32xbf16>
    %c0_1 = arith.constant 0 : index
    %c0_2 = arith.constant 0 : index
    %1 = vector.load %arg2[%c0_1, %c0_2] : memref<32x2048xbf16, #tpu.memory_space<vmem>>, vector<32x2048xbf16>
    %cst = arith.constant dense<0.000000e+00> : vector<8x2048xf32>
    %2 = tpu.matmul %0, %1, %cst {dimension_numbers = #tpu.dot_dimension_numbers<[1], [0], [0], [1], [0, 0, 1, 1], [], []>} : vector<8x32xbf16>, vector<32x2048xbf16>, vector<8x2048xf32> -> vector<8x2048xf32>
    %c0_3 = arith.constant 0 : index
    %c0_4 = arith.constant 0 : index
    %3 = vector.load %arg3[%c0_3, %c0_4] : memref<1x2048xf32, #tpu.memory_space<vmem>>, vector<1x2048xf32>
    %4 = vector.broadcast %3 : vector<1x2048xf32> to vector<8x2048xf32>
    %5 = arith.addf %2, %4 : vector<8x2048xf32>
    %cst_5 = arith.constant 0.000000e+00 : f32
    %6 = vector.broadcast %cst_5 : f32 to vector<8x2048xf32>
    %7 = arith.maximumf %5, %6 : vector<8x2048xf32>
    %8 = arith.truncf %7 : vector<8x2048xf32> to vector<8x2048xbf16>
    %c0_6 = arith.constant 0 : index
    %c0_7 = arith.constant 0 : index
    %9 = vector.load %arg4[%c0_6, %c0_7] : memref<2048x512xbf16, #tpu.memory_space<vmem>>, vector<2048x512xbf16>
    %cst_8 = arith.constant dense<0.000000e+00> : vector<8x512xf32>
    %10 = tpu.matmul %8, %9, %cst_8 {dimension_numbers = #tpu.dot_dimension_numbers<[1], [0], [0], [1], [0, 0, 1, 1], [], []>} : vector<8x2048xbf16>, vector<2048x512xbf16>, vector<8x512xf32> -> vector<8x512xf32>
    %c0_9 = arith.constant 0 : index
    %c0_10 = arith.constant 0 : index
    %11 = vector.load %arg5[%c0_9, %c0_10] : memref<1x512xf32, #tpu.memory_space<vmem>>, vector<1x512xf32>
    %12 = vector.broadcast %11 : vector<1x512xf32> to vector<8x512xf32>
    %13 = arith.addf %10, %12 : vector<8x512xf32>
    %cst_11 = arith.constant 0.000000e+00 : f32
    %14 = vector.broadcast %cst_11 : f32 to vector<8x512xf32>
    %15 = arith.maximumf %13, %14 : vector<8x512xf32>
    %16 = arith.truncf %15 : vector<8x512xf32> to vector<8x512xbf16>
    %c0_12 = arith.constant 0 : index
    %c0_13 = arith.constant 0 : index
    %17 = vector.load %arg6[%c0_12, %c0_13] : memref<512x512xbf16, #tpu.memory_space<vmem>>, vector<512x512xbf16>
    %cst_14 = arith.constant dense<0.000000e+00> : vector<8x512xf32>
    %18 = tpu.matmul %16, %17, %cst_14 {dimension_numbers = #tpu.dot_dimension_numbers<[1], [0], [0], [1], [0, 0, 1, 1], [], []>} : vector<8x512xbf16>, vector<512x512xbf16>, vector<8x512xf32> -> vector<8x512xf32>
    %c0_15 = arith.constant 0 : index
    %c0_16 = arith.constant 0 : index
    %19 = vector.load %arg7[%c0_15, %c0_16] : memref<1x512xf32, #tpu.memory_space<vmem>>, vector<1x512xf32>
    %20 = vector.broadcast %19 : vector<1x512xf32> to vector<8x512xf32>
    %21 = arith.addf %18, %20 : vector<8x512xf32>
    %cst_17 = arith.constant 0.000000e+00 : f32
    %22 = vector.broadcast %cst_17 : f32 to vector<8x512xf32>
    %23 = arith.maximumf %21, %22 : vector<8x512xf32>
    %24 = arith.truncf %23 : vector<8x512xf32> to vector<8x512xbf16>
    %c0_18 = arith.constant 0 : index
    %c0_19 = arith.constant 0 : index
    %25 = vector.load %arg8[%c0_18, %c0_19] : memref<512x16xbf16, #tpu.memory_space<vmem>>, vector<512x16xbf16>
    %cst_20 = arith.constant dense<0.000000e+00> : vector<8x16xf32>
    %26 = tpu.matmul %24, %25, %cst_20 {dimension_numbers = #tpu.dot_dimension_numbers<[1], [0], [0], [1], [0, 0, 1, 1], [], []>} : vector<8x512xbf16>, vector<512x16xbf16>, vector<8x16xf32> -> vector<8x16xf32>
    %c0_21 = arith.constant 0 : index
    %c0_22 = arith.constant 0 : index
    %27 = vector.load %arg9[%c0_21, %c0_22] : memref<1x16xf32, #tpu.memory_space<vmem>>, vector<1x16xf32>
    %28 = vector.broadcast %27 : vector<1x16xf32> to vector<8x16xf32>
    %29 = arith.addf %26, %28 : vector<8x16xf32>
    %c0_23 = arith.constant 0 : index
    %c0_24 = arith.constant 0 : index
    %30 = vector.load %arg10[%c0_23, %c0_24] : memref<8x16xf32, #tpu.memory_space<vmem>>, vector<8x16xf32>
    tpu.vector_store %arg10[%c0_23, %c0_24], %29 {strides = array<i32>} : memref<8x16xf32, #tpu.memory_space<vmem>>, vector<8x16xf32>,
    return
  }
  func.func @transform_0(%arg0: i32) -> (i32, i32) {
    %c0_i32 = arith.constant 0 : i32
    %c0_i32_0 = arith.constant 0 : i32
    return %arg0, %c0_i32 : i32, i32
  }
  func.func @transform_1(%arg0: i32) -> (i32, i32) {
    %c0_i32 = arith.constant 0 : i32
    %c0_i32_0 = arith.constant 0 : i32
    %c0_i32_1 = arith.constant 0 : i32
    return %c0_i32, %c0_i32_0 : i32, i32
  }
  func.func @transform_2(%arg0: i32) -> (i32, i32) {
    %c0_i32 = arith.constant 0 : i32
    %c0_i32_0 = arith.constant 0 : i32
    %c0_i32_1 = arith.constant 0 : i32
    return %c0_i32, %c0_i32_0 : i32, i32
  }
  func.func @transform_3(%arg0: i32) -> (i32, i32) {
    %c0_i32 = arith.constant 0 : i32
    %c0_i32_0 = arith.constant 0 : i32
    %c0_i32_1 = arith.constant 0 : i32
    return %c0_i32, %c0_i32_0 : i32, i32
  }
  func.func @transform_4(%arg0: i32) -> (i32, i32) {
    %c0_i32 = arith.constant 0 : i32
    %c0_i32_0 = arith.constant 0 : i32
    %c0_i32_1 = arith.constant 0 : i32
    return %c0_i32, %c0_i32_0 : i32, i32
  }
  func.func @transform_5(%arg0: i32) -> (i32, i32) {
    %c0_i32 = arith.constant 0 : i32
    %c0_i32_0 = arith.constant 0 : i32
    %c0_i32_1 = arith.constant 0 : i32
    return %c0_i32, %c0_i32_0 : i32, i32
  }
  func.func @transform_6(%arg0: i32) -> (i32, i32) {
    %c0_i32 = arith.constant 0 : i32
    %c0_i32_0 = arith.constant 0 : i32
    %c0_i32_1 = arith.constant 0 : i32
    return %c0_i32, %c0_i32_0 : i32, i32
  }
  func.func @transform_7(%arg0: i32) -> (i32, i32) {
    %c0_i32 = arith.constant 0 : i32
    %c0_i32_0 = arith.constant 0 : i32
    %c0_i32_1 = arith.constant 0 : i32
    return %c0_i32, %c0_i32_0 : i32, i32
  }
  func.func @transform_8(%arg0: i32) -> (i32, i32) {
    %c0_i32 = arith.constant 0 : i32
    %c0_i32_0 = arith.constant 0 : i32
    %c0_i32_1 = arith.constant 0 : i32
    return %c0_i32, %c0_i32_0 : i32, i32
  }
  func.func @transform_9(%arg0: i32) -> (i32, i32) {
    %c0_i32 = arith.constant 0 : i32
    %c0_i32_0 = arith.constant 0 : i32
    return %arg0, %c0_i32 : i32, i32
  }
}

</mosaic_0001>

<llo_original>
// kernel: decoder_forward.1
$region0: #{decoder_forward.1}
  #allocation0 [shape = 'u32[]', space=smem, size = 0x4, offset = 0x4, fixed_abs, tag = 'smem constant byte address 0x4 - core index']
  #allocation1 [shape = 'u32[72,128]{1,0:T(1,128)}', space=vmem, size = 0x9000, scoped, tag = 'internal scratch']
  %s0 = inlined_call_operand.vmem [shape: bf16[8,32], index: 0, kind: input, shape index: {}]
  %s1 = inlined_call_operand.hbm [shape: bf16[32,2048], index: 1, kind: input, shape index: {}]
  %s2 = inlined_call_operand.hbm [shape: f32[1,2048], index: 2, kind: input, shape index: {}]
  %s3 = inlined_call_operand.hbm [shape: bf16[2048,512], index: 3, kind: input, shape index: {}]
  %s4 = inlined_call_operand.hbm [shape: f32[1,512], index: 4, kind: input, shape index: {}]
  %s5 = inlined_call_operand.hbm [shape: bf16[512,512], index: 5, kind: input, shape index: {}]
  %s6 = inlined_call_operand.hbm [shape: f32[1,512], index: 6, kind: input, shape index: {}]
  %s7 = inlined_call_operand.vmem [shape: bf16[512,16], index: 7, kind: input, shape index: {}]
  %s8 = inlined_call_operand.hbm [shape: f32[1,16], index: 8, kind: input, shape index: {}]
  %s9 = inlined_call_operand.hbm [shape: f32[8,16], index: 9, kind: output, shape index: {}]
  %s10 = sld [smem:[#allocation0]]
  $region74: #{decoder_forward.1} parent=0
    _
  %s12 = ssub.s32 1, %s10
  %s13 = scalar_select 0, %s12, %s10
  $region1: #{decoder_forward.1} parent=0
    #allocation2 [shape = 'u8[131072]{0}', space=vmem, size = 0x20000, scoped, tag = 'input window, operand 1, single buffered']
    #allocation3 [shape = 's32[1]{0}', space=sflag, size = 0x4, scoped, tag = 'scoped memory for decoder_forward.1']
    #allocation4 [shape = 's32[1]{0}', space=sflag, size = 0x4, scoped, tag = 'scoped memory for decoder_forward.1']
    #allocation5 [shape = 'u8[8192]{0}', space=vmem, size = 0x2000, scoped, tag = 'input window, operand 2, single buffered']
    #allocation6 [shape = 's32[1]{0}', space=sflag, size = 0x4, scoped, tag = 'scoped memory for decoder_forward.1']
    #allocation7 [shape = 'u8[2097152]{0}', space=vmem, size = 0x200000, scoped, tag = 'input window, operand 3, single buffered']
    #allocation8 [shape = 'u8[2048]{0}', space=vmem, size = 0x800, scoped, tag = 'input window, operand 4, single buffered']
    #allocation9 [shape = 's32[1]{0}', space=sflag, size = 0x4, scoped, tag = 'scoped memory for decoder_forward.1']
    #allocation10 [shape = 'u8[524288]{0}', space=vmem, size = 0x80000, scoped, tag = 'input window, operand 5, single buffered']
    #allocation11 [shape = 'u8[2048]{0}', space=vmem, size = 0x800, scoped, tag = 'input window, operand 6, single buffered']
    #allocation12 [shape = 's32[1]{0}', space=sflag, size = 0x4, scoped, tag = 'scoped memory for decoder_forward.1']
    #allocation13 [shape = 'u8[512]{0}', space=vmem, size = 0x400, scoped, tag = 'input window, operand 8, single buffered']
    #allocation14 [shape = 'u8[4096]{0}', space=vmem, size = 0x1000, scoped, tag = 'output window, operand 0, single buffered']
    %14 = vsyncpa [#allocation3], 0
    %15 = vsyncpa [#allocation6], 0
    %16 = vsyncpa [#allocation9], 0
    %17 = vsyncpa [#allocation12], 0
    %18 = vsyncpa [#allocation4], 0
    // Predicated region
    $region2: #{decoder_forward.1} parent=1 // pred_check
      _
    $region3: #{decoder_forward.1} parent=1 // pred_check_branch
      %20 = sbr.rel (0) target = $region5
    $region4: #{decoder_forward.1} parent=1 // pred_region
      _
    $region5: #{decoder_forward.1} parent=1 // pred_fallthru
      _
    // Predicated region
    $region6: #{decoder_forward.1} parent=1 // pred_check
      _
    $region7: #{decoder_forward.1} parent=1 // pred_check_branch
      %22 = sbr.rel (0) target = $region9
    $region8: #{decoder_forward.1} parent=1 // pred_region
      %24 = vsyncadd [#allocation3], 0
      %s25 = sshll.u32 %s1, 4
      %s26 = int_to_ptr.hbm [resolvable:$true] %s25
      %s27 = sshll.u32 [#allocation2], 4
      %s28 = int_to_ptr.vmem [resolvable:$true] %s27
      %33 = dma.hbm_to_vmem [thread:$0]  %s26, 4096, %s28, [#allocation3], 1024, 1024, 64
    $region9: #{decoder_forward.1} parent=1 // pred_fallthru
      _
    // Predicated region
    $region10: #{decoder_forward.1} parent=1 // pred_check
      _
    $region11: #{decoder_forward.1} parent=1 // pred_check_branch
      %35 = sbr.rel (0) target = $region13
    $region12: #{decoder_forward.1} parent=1 // pred_region
      %37 = vsyncadd [#allocation6], 0
      %s39 = sshll.u32 %s2, 4
      %s40 = int_to_ptr.hbm [resolvable:$true] %s39
      %s41 = sshll.u32 [#allocation5], 4
      %s42 = int_to_ptr.vmem [resolvable:$true] %s41
      %44 = dma.hbm_to_vmem [thread:$0]  %s40, 256, %s42, [#allocation6]
    $region13: #{decoder_forward.1} parent=1 // pred_fallthru
      _
    // Predicated region
    $region14: #{decoder_forward.1} parent=1 // pred_check
      _
    $region15: #{decoder_forward.1} parent=1 // pred_check_branch
      %46 = sbr.rel (0) target = $region17
    $region16: #{decoder_forward.1} parent=1 // pred_region
      %48 = vsyncadd [#allocation6], 0
      %s49 = sshll.u32 %s3, 4
      %s50 = int_to_ptr.hbm [resolvable:$true] %s49
      %s51 = sshll.u32 [#allocation7], 4
      %s52 = int_to_ptr.vmem [resolvable:$true] %s51
      %57 = dma.hbm_to_vmem [thread:$0]  %s50, 65536, %s52, [#allocation6], 256, 256, 16
    $region17: #{decoder_forward.1} parent=1 // pred_fallthru
      _
    // Predicated region
    $region18: #{decoder_forward.1} parent=1 // pred_check
      _
    $region19: #{decoder_forward.1} parent=1 // pred_check_branch
      %59 = sbr.rel (0) target = $region21
    $region20: #{decoder_forward.1} parent=1 // pred_region
      %61 = vsyncadd [#allocation9], 0
      %s63 = sshll.u32 %s4, 4
      %s64 = int_to_ptr.hbm [resolvable:$true] %s63
      %s65 = sshll.u32 [#allocation8], 4
      %s66 = int_to_ptr.vmem [resolvable:$true] %s65
      %68 = dma.hbm_to_vmem [thread:$0]  %s64, 64, %s66, [#allocation9]
    $region21: #{decoder_forward.1} parent=1 // pred_fallthru
      _
    // Predicated region
    $region22: #{decoder_forward.1} parent=1 // pred_check
      _
    $region23: #{decoder_forward.1} parent=1 // pred_check_branch
      %70 = sbr.rel (0) target = $region25
    $region24: #{decoder_forward.1} parent=1 // pred_region
      %72 = vsyncadd [#allocation9], 0
      %s73 = sshll.u32 %s5, 4
      %s74 = int_to_ptr.hbm [resolvable:$true] %s73
      %s75 = sshll.u32 [#allocation10], 4
      %s76 = int_to_ptr.vmem [resolvable:$true] %s75
      %81 = dma.hbm_to_vmem [thread:$0]  %s74, 16384, %s76, [#allocation9], 256, 256, 16
    $region25: #{decoder_forward.1} parent=1 // pred_fallthru
      _
    // Predicated region
    $region26: #{decoder_forward.1} parent=1 // pred_check
      _
    $region27: #{decoder_forward.1} parent=1 // pred_check_branch
      %83 = sbr.rel (0) target = $region29
    $region28: #{decoder_forward.1} parent=1 // pred_region
      %85 = vsyncadd [#allocation12], 0
      %s87 = sshll.u32 %s6, 4
      %s88 = int_to_ptr.hbm [resolvable:$true] %s87
      %s89 = sshll.u32 [#allocation11], 4
      %s90 = int_to_ptr.vmem [resolvable:$true] %s89
      %92 = dma.hbm_to_vmem [thread:$0]  %s88, 64, %s90, [#allocation12]
    $region29: #{decoder_forward.1} parent=1 // pred_fallthru
      _
    // Predicated region
    $region30: #{decoder_forward.1} parent=1 // pred_check
      _
    $region31: #{decoder_forward.1} parent=1 // pred_check_branch
      %94 = sbr.rel (0) target = $region33
    $region32: #{decoder_forward.1} parent=1 // pred_region
      _
    $region33: #{decoder_forward.1} parent=1 // pred_fallthru
      _
    // Predicated region
    $region34: #{decoder_forward.1} parent=1 // pred_check
      _
    $region35: #{decoder_forward.1} parent=1 // pred_check_branch
      %96 = sbr.rel (0) target = $region37
    $region36: #{decoder_forward.1} parent=1 // pred_region
      %98 = vsyncadd [#allocation12], 0
      %s100 = sshll.u32 %s8, 4
      %s101 = int_to_ptr.hbm [resolvable:$true] %s100
      %s102 = sshll.u32 [#allocation13], 4
      %s103 = int_to_ptr.vmem [resolvable:$true] %s102
      %105 = dma.hbm_to_vmem [thread:$0]  %s101, 16, %s103, [#allocation12]
    $region37: #{decoder_forward.1} parent=1 // pred_fallthru
      _
    // Predicated region
    $region38: #{decoder_forward.1} parent=1 // pred_check
      _
    $region39: #{decoder_forward.1} parent=1 // pred_check_branch
      %107 = sbr.rel (0) target = $region41
    $region40: #{decoder_forward.1} parent=1 // pred_region
      %109 = dma.done [#allocation3], 4096
    $region41: #{decoder_forward.1} parent=1 // pred_fallthru
      _
    // Predicated region
    $region42: #{decoder_forward.1} parent=1 // pred_check
      _
    $region43: #{decoder_forward.1} parent=1 // pred_check_branch
      %111 = sbr.rel (0) target = $region45
    $region44: #{decoder_forward.1} parent=1 // pred_region
      %113 = dma.done [#allocation6], 256
    $region45: #{decoder_forward.1} parent=1 // pred_fallthru
      _
    // Predicated region
    $region46: #{decoder_forward.1} parent=1 // pred_check
      _
    $region47: #{decoder_forward.1} parent=1 // pred_check_branch
      %115 = sbr.rel (0) target = $region49
    $region48: #{decoder_forward.1} parent=1 // pred_region
      %117 = dma.done [#allocation6], 65536
    $region49: #{decoder_forward.1} parent=1 // pred_fallthru
      _
    // Predicated region
    $region50: #{decoder_forward.1} parent=1 // pred_check
      _
    $region51: #{decoder_forward.1} parent=1 // pred_check_branch
      %119 = sbr.rel (0) target = $region53
    $region52: #{decoder_forward.1} parent=1 // pred_region
      %121 = dma.done [#allocation9], 64
    $region53: #{decoder_forward.1} parent=1 // pred_fallthru
      _
    // Predicated region
    $region54: #{decoder_forward.1} parent=1 // pred_check
      _
    $region55: #{decoder_forward.1} parent=1 // pred_check_branch
      %123 = sbr.rel (0) target = $region57
    $region56: #{decoder_forward.1} parent=1 // pred_region
      %125 = dma.done [#allocation9], 16384
    $region57: #{decoder_forward.1} parent=1 // pred_fallthru
      _
    // Predicated region
    $region58: #{decoder_forward.1} parent=1 // pred_check
      _
    $region59: #{decoder_forward.1} parent=1 // pred_check_branch
      %127 = sbr.rel (0) target = $region61
    $region60: #{decoder_forward.1} parent=1 // pred_region
      %129 = dma.done [#allocation12], 64
    $region61: #{decoder_forward.1} parent=1 // pred_fallthru
      _
    // Predicated region
    $region62: #{decoder_forward.1} parent=1 // pred_check
      _
    $region63: #{decoder_forward.1} parent=1 // pred_check_branch
      %131 = sbr.rel (0) target = $region65
    $region64: #{decoder_forward.1} parent=1 // pred_region
      %133 = dma.done [#allocation12], 16
    $region65: #{decoder_forward.1} parent=1 // pred_fallthru
      _
    %v135 = vld [vmem:[%s0] sm:$0xf]
    %v136 = vld [vmem:[#allocation2] sm:$0xff]
    %v137 = vld [vmem:[#allocation2 + $0x8] sm:$0xff]
    %v138 = vld [vmem:[#allocation2 + $0x10] sm:$0xff]
    %v139 = vld [vmem:[#allocation2 + $0x18] sm:$0xff]
    %v140 = vld [vmem:[#allocation2 + $0x20] sm:$0xff]
    %v141 = vld [vmem:[#allocation2 + $0x28] sm:$0xff]
    %v142 = vld [vmem:[#allocation2 + $0x30] sm:$0xff]
    %v143 = vld [vmem:[#allocation2 + $0x38] sm:$0xff]
    %v144 = vld [vmem:[#allocation2 + $0x40] sm:$0xff]
    %v145 = vld [vmem:[#allocation2 + $0x48] sm:$0xff]
    %v146 = vld [vmem:[#allocation2 + $0x50] sm:$0xff]
    %v147 = vld [vmem:[#allocation2 + $0x58] sm:$0xff]
    %v148 = vld [vmem:[#allocation2 + $0x60] sm:$0xff]
    %v149 = vld [vmem:[#allocation2 + $0x68] sm:$0xff]
    %v150 = vld [vmem:[#allocation2 + $0x70] sm:$0xff]
    %v151 = vld [vmem:[#allocation2 + $0x78] sm:$0xff]
    %v152 = vld [vmem:[#allocation2 + $0x80] sm:$0xff]
    %v153 = vld [vmem:[#allocation2 + $0x88] sm:$0xff]
    %v154 = vld [vmem:[#allocation2 + $0x90] sm:$0xff]
    %v155 = vld [vmem:[#allocation2 + $0x98] sm:$0xff]
    %v156 = vld [vmem:[#allocation2 + $0xa0] sm:$0xff]
    %v157 = vld [vmem:[#allocation2 + $0xa8] sm:$0xff]
    %v158 = vld [vmem:[#allocation2 + $0xb0] sm:$0xff]
    %v159 = vld [vmem:[#allocation2 + $0xb8] sm:$0xff]
    %v160 = vld [vmem:[#allocation2 + $0xc0] sm:$0xff]
    %v161 = vld [vmem:[#allocation2 + $0xc8] sm:$0xff]
    %v162 = vld [vmem:[#allocation2 + $0xd0] sm:$0xff]
    %v163 = vld [vmem:[#allocation2 + $0xd8] sm:$0xff]
    %v164 = vld [vmem:[#allocation2 + $0xe0] sm:$0xff]
    %v165 = vld [vmem:[#allocation2 + $0xe8] sm:$0xff]
    %v166 = vld [vmem:[#allocation2 + $0xf0] sm:$0xff]
    %v167 = vld [vmem:[#allocation2 + $0xf8] sm:$0xff]
    %v168 = vld [vmem:[#allocation5] sm:$0xff]
    %v169 = vld [vmem:[#allocation5 + $0x8] sm:$0xff]
    %v172 = vperm.slane %v168, 0
    %v173 = vperm.slane %v168, 1
    %v174 = vperm.slane %v168, 2
    %v175 = vperm.slane %v168, 3
    %v176 = vperm.slane %v168, 4
    %v177 = vperm.slane %v168, 5
    %v178 = vperm.slane %v168, 6
    %v179 = vperm.slane %v168, 7
    %v180 = vperm.slane %v169, 0
    %v181 = vperm.slane %v169, 1
    %v182 = vperm.slane %v169, 2
    %v183 = vperm.slane %v169, 3
    %v184 = vperm.slane %v169, 4
    %v185 = vperm.slane %v169, 5
    %v186 = vperm.slane %v169, 6
    %v187 = vperm.slane %v169, 7
    %v236 = vunpack.c.l.b16 %v136
    %v237 = vunpack.c.h.b16 %v136
    %v238 = vunpack.c.l.b16 %v137
    %v239 = vunpack.c.h.b16 %v137
    %v240 = vunpack.c.l.b16 %v138
    %v241 = vunpack.c.h.b16 %v138
    %v242 = vunpack.c.l.b16 %v139
    %v243 = vunpack.c.h.b16 %v139
    %v244 = vunpack.c.l.b16 %v140
    %v245 = vunpack.c.h.b16 %v140
    %v246 = vunpack.c.l.b16 %v141
    %v247 = vunpack.c.h.b16 %v141
    %v248 = vunpack.c.l.b16 %v142
    %v249 = vunpack.c.h.b16 %v142
    %v250 = vunpack.c.l.b16 %v143
    %v251 = vunpack.c.h.b16 %v143
    %v252 = vunpack.c.l.b16 %v144
    %v253 = vunpack.c.h.b16 %v144
    %v254 = vunpack.c.l.b16 %v145
    %v255 = vunpack.c.h.b16 %v145
    %v256 = vunpack.c.l.b16 %v146
    %v257 = vunpack.c.h.b16 %v146
    %v258 = vunpack.c.l.b16 %v147
    %v259 = vunpack.c.h.b16 %v147
    %v260 = vunpack.c.l.b16 %v148
    %v261 = vunpack.c.h.b16 %v148
    %v262 = vunpack.c.l.b16 %v149
    %v263 = vunpack.c.h.b16 %v149
    %v264 = vunpack.c.l.b16 %v150
    %v265 = vunpack.c.h.b16 %v150
    %v266 = vunpack.c.l.b16 %v151
    %v267 = vunpack.c.h.b16 %v151
    %v268 = vunpack.c.l.b16 %v152
    %v269 = vunpack.c.h.b16 %v152
    %v270 = vunpack.c.l.b16 %v153
    %v271 = vunpack.c.h.b16 %v153
    %v272 = vunpack.c.l.b16 %v154
    %v273 = vunpack.c.h.b16 %v154
    %v274 = vunpack.c.l.b16 %v155
    %v275 = vunpack.c.h.b16 %v155
    %v276 = vunpack.c.l.b16 %v156
    %v277 = vunpack.c.h.b16 %v156
    %v278 = vunpack.c.l.b16 %v157
    %v279 = vunpack.c.h.b16 %v157
    %v280 = vunpack.c.l.b16 %v158
    %v281 = vunpack.c.h.b16 %v158
    %v282 = vunpack.c.l.b16 %v159
    %v283 = vunpack.c.h.b16 %v159
    %v284 = vunpack.c.l.b16 %v160
    %v285 = vunpack.c.h.b16 %v160
    %v286 = vunpack.c.l.b16 %v161
    %v287 = vunpack.c.h.b16 %v161
    %v288 = vunpack.c.l.b16 %v162
    %v289 = vunpack.c.h.b16 %v162
    %v290 = vunpack.c.l.b16 %v163
    %v291 = vunpack.c.h.b16 %v163
    %v292 = vunpack.c.l.b16 %v164
    %v293 = vunpack.c.h.b16 %v164
    %v294 = vunpack.c.l.b16 %v165
    %v295 = vunpack.c.h.b16 %v165
    %v296 = vunpack.c.l.b16 %v166
    %v297 = vunpack.c.h.b16 %v166
    %v298 = vunpack.c.l.b16 %v167
    %v299 = vunpack.c.h.b16 %v167
    %v300 = vpack.c.b16 %v252, %v236
    %v301 = vpack.c.b16 %v253, %v237
    %v302 = vpack.c.b16 %v254, %v238
    %v303 = vpack.c.b16 %v255, %v239
    %v304 = vpack.c.b16 %v256, %v240
    %v305 = vpack.c.b16 %v257, %v241
    %v306 = vpack.c.b16 %v258, %v242
    %v307 = vpack.c.b16 %v259, %v243
    %v308 = vpack.c.b16 %v260, %v244
    %v309 = vpack.c.b16 %v261, %v245
    %v310 = vpack.c.b16 %v262, %v246
    %v311 = vpack.c.b16 %v263, %v247
    %v312 = vpack.c.b16 %v264, %v248
    %v313 = vpack.c.b16 %v265, %v249
    %v314 = vpack.c.b16 %v266, %v250
    %v315 = vpack.c.b16 %v267, %v251
    %v316 = vpack.c.b16 %v284, %v268
    %v317 = vpack.c.b16 %v285, %v269
    %v318 = vpack.c.b16 %v286, %v270
    %v319 = vpack.c.b16 %v287, %v271
    %v320 = vpack.c.b16 %v288, %v272
    %v321 = vpack.c.b16 %v289, %v273
    %v322 = vpack.c.b16 %v290, %v274
    %v323 = vpack.c.b16 %v291, %v275
    %v324 = vpack.c.b16 %v292, %v276
    %v325 = vpack.c.b16 %v293, %v277
    %v326 = vpack.c.b16 %v294, %v278
    %v327 = vpack.c.b16 %v295, %v279
    %v328 = vpack.c.b16 %v296, %v280
    %v329 = vpack.c.b16 %v297, %v281
    %v330 = vpack.c.b16 %v298, %v282
    %v331 = vpack.c.b16 %v299, %v283
    %vm364 = vcmask 261120
    %v366 = vsel %vm364, %v135, 0
    %368 = vmatpush.bf16.msra.mxu0 0
    %369 = vmatpush.bf16.msra.mxu0 0
    %370 = vmatpush.bf16.msra.mxu0 0
    %371 = vmatpush.bf16.msra.mxu0 0
    %372 = vmatpush.bf16.msra.mxu0 0
    %373 = vmatpush.bf16.msra.mxu0 0
    %374 = vmatpush.bf16.msra.mxu0 %v316
    %375 = vmatpush.bf16.msra.mxu0 %v300
    %376 = vmatmul.bf16.gmra.mxu0 %v366
    %v377 = vpop.f32.mrf.mxu0
    %v378 = vadd.f32 %v172, %v377
    %v379 = vpop.f32.mrf.mxu0
    %380 = vdwg.mxu0
    %381 = vmatpush.bf16.msra.mxu0 0
    %382 = vmatpush.bf16.msra.mxu0 0
    %383 = vmatpush.bf16.msra.mxu0 0
    %384 = vmatpush.bf16.msra.mxu0 0
    %385 = vmatpush.bf16.msra.mxu0 0
    %386 = vmatpush.bf16.msra.mxu0 0
    %387 = vmatpush.bf16.msra.mxu0 %v317
    %388 = vmatpush.bf16.msra.mxu0 %v301
    %389 = vmatmul.bf16.gmra.mxu0 %v366
    %v390 = vpop.f32.mrf.mxu0
    %v391 = vadd.f32 %v173, %v390
    %v392 = vpop.f32.mrf.mxu0
    %393 = vdwg.mxu0
    %394 = vmatpush.bf16.msra.mxu0 0
    %395 = vmatpush.bf16.msra.mxu0 0
    %396 = vmatpush.bf16.msra.mxu0 0
    %397 = vmatpush.bf16.msra.mxu0 0
    %398 = vmatpush.bf16.msra.mxu0 0
    %399 = vmatpush.bf16.msra.mxu0 0
    %400 = vmatpush.bf16.msra.mxu0 %v318
    %401 = vmatpush.bf16.msra.mxu0 %v302
    %402 = vmatmul.bf16.gmra.mxu0 %v366
    %v403 = vpop.f32.mrf.mxu0
    %v404 = vadd.f32 %v174, %v403
    %v405 = vpop.f32.mrf.mxu0
    %406 = vdwg.mxu0
    %407 = vmatpush.bf16.msra.mxu0 0
    %408 = vmatpush.bf16.msra.mxu0 0
    %409 = vmatpush.bf16.msra.mxu0 0
    %410 = vmatpush.bf16.msra.mxu0 0
    %411 = vmatpush.bf16.msra.mxu0 0
    %412 = vmatpush.bf16.msra.mxu0 0
    %413 = vmatpush.bf16.msra.mxu0 %v319
    %414 = vmatpush.bf16.msra.mxu0 %v303
    %415 = vmatmul.bf16.gmra.mxu0 %v366
    %v416 = vpop.f32.mrf.mxu0
    %v417 = vadd.f32 %v175, %v416
    %v418 = vpop.f32.mrf.mxu0
    %419 = vdwg.mxu0
    %420 = vmatpush.bf16.msra.mxu0 0
    %421 = vmatpush.bf16.msra.mxu0 0
    %422 = vmatpush.bf16.msra.mxu0 0
    %423 = vmatpush.bf16.msra.mxu0 0
    %424 = vmatpush.bf16.msra.mxu0 0
    %425 = vmatpush.bf16.msra.mxu0 0
    %426 = vmatpush.bf16.msra.mxu0 %v320
    %427 = vmatpush.bf16.msra.mxu0 %v304
    %428 = vmatmul.bf16.gmra.mxu0 %v366
    %v429 = vpop.f32.mrf.mxu0
    %v430 = vadd.f32 %v176, %v429
    %v431 = vpop.f32.mrf.mxu0
    %432 = vdwg.mxu0
    %433 = vmatpush.bf16.msra.mxu0 0
    %434 = vmatpush.bf16.msra.mxu0 0
    %435 = vmatpush.bf16.msra.mxu0 0
    %436 = vmatpush.bf16.msra.mxu0 0
    %437 = vmatpush.bf16.msra.mxu0 0
    %438 = vmatpush.bf16.msra.mxu0 0
    %439 = vmatpush.bf16.msra.mxu0 %v321
    %440 = vmatpush.bf16.msra.mxu0 %v305
    %441 = vmatmul.bf16.gmra.mxu0 %v366
    %v442 = vpop.f32.mrf.mxu0
    %v443 = vadd.f32 %v177, %v442
    %v444 = vpop.f32.mrf.mxu0
    %445 = vdwg.mxu0
    %446 = vmatpush.bf16.msra.mxu0 0
    %447 = vmatpush.bf16.msra.mxu0 0
    %448 = vmatpush.bf16.msra.mxu0 0
    %449 = vmatpush.bf16.msra.mxu0 0
    %450 = vmatpush.bf16.msra.mxu0 0
    %451 = vmatpush.bf16.msra.mxu0 0
    %452 = vmatpush.bf16.msra.mxu0 %v322
    %453 = vmatpush.bf16.msra.mxu0 %v306
    %454 = vmatmul.bf16.gmra.mxu0 %v366
    %v455 = vpop.f32.mrf.mxu0
    %v456 = vadd.f32 %v178, %v455
    %v457 = vpop.f32.mrf.mxu0
    %458 = vdwg.mxu0
    %459 = vmatpush.bf16.msra.mxu0 0
    %460 = vmatpush.bf16.msra.mxu0 0
    %461 = vmatpush.bf16.msra.mxu0 0
    %462 = vmatpush.bf16.msra.mxu0 0
    %463 = vmatpush.bf16.msra.mxu0 0
    %464 = vmatpush.bf16.msra.mxu0 0
    %465 = vmatpush.bf16.msra.mxu0 %v323
    %466 = vmatpush.bf16.msra.mxu0 %v307
    %467 = vmatmul.bf16.gmra.mxu0 %v366
    %v468 = vpop.f32.mrf.mxu0
    %v469 = vadd.f32 %v179, %v468
    %v470 = vpop.f32.mrf.mxu0
    %471 = vdwg.mxu0
    %472 = vmatpush.bf16.msra.mxu0 0
    %473 = vmatpush.bf16.msra.mxu0 0
    %474 = vmatpush.bf16.msra.mxu0 0
    %475 = vmatpush.bf16.msra.mxu0 0
    %476 = vmatpush.bf16.msra.mxu0 0
    %477 = vmatpush.bf16.msra.mxu0 0
    %478 = vmatpush.bf16.msra.mxu0 %v324
    %479 = vmatpush.bf16.msra.mxu0 %v308
    %480 = vmatmul.bf16.gmra.mxu0 %v366
    %v481 = vpop.f32.mrf.mxu0
    %v482 = vadd.f32 %v180, %v481
    %v483 = vpop.f32.mrf.mxu0
    %484 = vdwg.mxu0
    %485 = vmatpush.bf16.msra.mxu0 0
    %486 = vmatpush.bf16.msra.mxu0 0
    %487 = vmatpush.bf16.msra.mxu0 0
    %488 = vmatpush.bf16.msra.mxu0 0
    %489 = vmatpush.bf16.msra.mxu0 0
    %490 = vmatpush.bf16.msra.mxu0 0
    %491 = vmatpush.bf16.msra.mxu0 %v325
    %492 = vmatpush.bf16.msra.mxu0 %v309
    %493 = vmatmul.bf16.gmra.mxu0 %v366
    %v494 = vpop.f32.mrf.mxu0
    %v495 = vadd.f32 %v181, %v494
    %v496 = vpop.f32.mrf.mxu0
    %497 = vdwg.mxu0
    %498 = vmatpush.bf16.msra.mxu0 0
    %499 = vmatpush.bf16.msra.mxu0 0
    %500 = vmatpush.bf16.msra.mxu0 0
    %501 = vmatpush.bf16.msra.mxu0 0
    %502 = vmatpush.bf16.msra.mxu0 0
    %503 = vmatpush.bf16.msra.mxu0 0
    %504 = vmatpush.bf16.msra.mxu0 %v326
    %505 = vmatpush.bf16.msra.mxu0 %v310
    %506 = vmatmul.bf16.gmra.mxu0 %v366
    %v507 = vpop.f32.mrf.mxu0
    %v508 = vadd.f32 %v182, %v507
    %v509 = vpop.f32.mrf.mxu0
    %510 = vdwg.mxu0
    %511 = vmatpush.bf16.msra.mxu0 0
    %512 = vmatpush.bf16.msra.mxu0 0
    %513 = vmatpush.bf16.msra.mxu0 0
    %514 = vmatpush.bf16.msra.mxu0 0
    %515 = vmatpush.bf16.msra.mxu0 0
    %516 = vmatpush.bf16.msra.mxu0 0
    %517 = vmatpush.bf16.msra.mxu0 %v327
    %518 = vmatpush.bf16.msra.mxu0 %v311
    %519 = vmatmul.bf16.gmra.mxu0 %v366
    %v520 = vpop.f32.mrf.mxu0
    %v521 = vadd.f32 %v183, %v520
    %v522 = vpop.f32.mrf.mxu0
    %523 = vdwg.mxu0
    %524 = vmatpush.bf16.msra.mxu0 0
    %525 = vmatpush.bf16.msra.mxu0 0
    %526 = vmatpush.bf16.msra.mxu0 0
    %527 = vmatpush.bf16.msra.mxu0 0
    %528 = vmatpush.bf16.msra.mxu0 0
    %529 = vmatpush.bf16.msra.mxu0 0
    %530 = vmatpush.bf16.msra.mxu0 %v328
    %531 = vmatpush.bf16.msra.mxu0 %v312
    %532 = vmatmul.bf16.gmra.mxu0 %v366
    %v533 = vpop.f32.mrf.mxu0
    %v534 = vadd.f32 %v184, %v533
    %v535 = vpop.f32.mrf.mxu0
    %536 = vdwg.mxu0
    %537 = vmatpush.bf16.msra.mxu0 0
    %538 = vmatpush.bf16.msra.mxu0 0
    %539 = vmatpush.bf16.msra.mxu0 0
    %540 = vmatpush.bf16.msra.mxu0 0
    %541 = vmatpush.bf16.msra.mxu0 0
    %542 = vmatpush.bf16.msra.mxu0 0
    %543 = vmatpush.bf16.msra.mxu0 %v329
    %544 = vmatpush.bf16.msra.mxu0 %v313
    %545 = vmatmul.bf16.gmra.mxu0 %v366
    %v546 = vpop.f32.mrf.mxu0
    %v547 = vadd.f32 %v185, %v546
    %v548 = vpop.f32.mrf.mxu0
    %549 = vdwg.mxu0
    %550 = vmatpush.bf16.msra.mxu0 0
    %551 = vmatpush.bf16.msra.mxu0 0
    %552 = vmatpush.bf16.msra.mxu0 0
    %553 = vmatpush.bf16.msra.mxu0 0
    %554 = vmatpush.bf16.msra.mxu0 0
    %555 = vmatpush.bf16.msra.mxu0 0
    %556 = vmatpush.bf16.msra.mxu0 %v330
    %557 = vmatpush.bf16.msra.mxu0 %v314
    %558 = vmatmul.bf16.gmra.mxu0 %v366
    %v559 = vpop.f32.mrf.mxu0
    %v560 = vadd.f32 %v186, %v559
    %v561 = vpop.f32.mrf.mxu0
    %562 = vdwg.mxu0
    %563 = vmatpush.bf16.msra.mxu0 0
    %564 = vmatpush.bf16.msra.mxu0 0
    %565 = vmatpush.bf16.msra.mxu0 0
    %566 = vmatpush.bf16.msra.mxu0 0
    %567 = vmatpush.bf16.msra.mxu0 0
    %568 = vmatpush.bf16.msra.mxu0 0
    %569 = vmatpush.bf16.msra.mxu0 %v331
    %570 = vmatpush.bf16.msra.mxu0 %v315
    %571 = vmatmul.bf16.gmra.mxu0 %v366
    %v572 = vpop.f32.mrf.mxu0
    %v573 = vadd.f32 %v187, %v572
    %v574 = vpop.f32.mrf.mxu0
    %575 = vdwg.mxu0
    %v576 = vmax.f32 %v378, 0.0
    %v577 = vmax.f32 %v391, 0.0
    %v578 = vmax.f32 %v404, 0.0
    %v579 = vmax.f32 %v417, 0.0
    %v580 = vmax.f32 %v430, 0.0
    %v581 = vmax.f32 %v443, 0.0
    %v582 = vmax.f32 %v456, 0.0
    %v583 = vmax.f32 %v469, 0.0
    %v584 = vmax.f32 %v482, 0.0
    %v585 = vmax.f32 %v495, 0.0
    %v586 = vmax.f32 %v508, 0.0
    %v587 = vmax.f32 %v521, 0.0
    %v588 = vmax.f32 %v534, 0.0
    %v589 = vmax.f32 %v547, 0.0
    %v590 = vmax.f32 %v560, 0.0
    %v591 = vmax.f32 %v573, 0.0
    %v592 = vpack.c.bf16 %v576, %v576
    %v593 = vpack.c.bf16 %v577, %v577
    %v594 = vpack.c.bf16 %v578, %v578
    %v595 = vpack.c.bf16 %v579, %v579
    %v596 = vpack.c.bf16 %v580, %v580
    %v597 = vpack.c.bf16 %v581, %v581
    %v598 = vpack.c.bf16 %v582, %v582
    %v599 = vpack.c.bf16 %v583, %v583
    %v600 = vpack.c.bf16 %v584, %v584
    %v601 = vpack.c.bf16 %v585, %v585
    %v602 = vpack.c.bf16 %v586, %v586
    %v603 = vpack.c.bf16 %v587, %v587
    %v604 = vpack.c.bf16 %v588, %v588
    %v605 = vpack.c.bf16 %v589, %v589
    %v606 = vpack.c.bf16 %v590, %v590
    %v607 = vpack.c.bf16 %v591, %v591
    %v608 = vld [vmem:[#allocation7] sm:$0xff]
    %v609 = vld [vmem:[#allocation7 + $0x8] sm:$0xff]
    %v610 = vld [vmem:[#allocation7 + $0x10] sm:$0xff]
    %v611 = vld [vmem:[#allocation7 + $0x18] sm:$0xff]
    %v612 = vld [vmem:[#allocation7 + $0x20] sm:$0xff]
    %v613 = vld [vmem:[#allocation7 + $0x28] sm:$0xff]
    %v614 = vld [vmem:[#allocation7 + $0x30] sm:$0xff]
    %v615 = vld [vmem:[#allocation7 + $0x38] sm:$0xff]
    %v616 = vld [vmem:[#allocation7 + $0x40] sm:$0xff]
    %v617 = vld [vmem:[#allocation7 + $0x48] sm:$0xff]
    %v618 = vld [vmem:[#allocation7 + $0x50] sm:$0xff]
    %v619 = vld [vmem:[#allocation7 + $0x58] sm:$0xff]
    %v620 = vld [vmem:[#allocation7 + $0x60] sm:$0xff]
    %v621 = vld [vmem:[#allocation7 + $0x68] sm:$0xff]
    %v622 = vld [vmem:[#allocation7 + $0x70] sm:$0xff]
    %v623 = vld [vmem:[#allocation7 + $0x78] sm:$0xff]
    %v624 = vld [vmem:[#allocation7 + $0x80] sm:$0xff]
    %v625 = vld [vmem:[#allocation7 + $0x88] sm:$0xff]
    %v626 = vld [vmem:[#allocation7 + $0x90] sm:$0xff]
    %v627 = vld [vmem:[#allocation7 + $0x98] sm:$0xff]
    %v628 = vld [vmem:[#allocation7 + $0xa0] sm:$0xff]
    %v629 = vld [vmem:[#allocation7 + $0xa8] sm:$0xff]
    %v630 = vld [vmem:[#allocation7 + $0xb0] sm:$0xff]
    %v631 = vld [vmem:[#allocation7 + $0xb8] sm:$0xff]
    %v632 = vld [vmem:[#allocation7 + $0xc0] sm:$0xff]
    %v633 = vld [vmem:[#allocation7 + $0xc8] sm:$0xff]
    %v634 = vld [vmem:[#allocation7 + $0xd0] sm:$0xff]
    %v635 = vld [vmem:[#allocation7 + $0xd8] sm:$0xff]
    %v636 = vld [vmem:[#allocation7 + $0xe0] sm:$0xff]
    %v637 = vld [vmem:[#allocation7 + $0xe8] sm:$0xff]
    %v638 = vld [vmem:[#allocation7 + $0xf0] sm:$0xff]
    %v639 = vld [vmem:[#allocation7 + $0xf8] sm:$0xff]
    %v640 = vld [vmem:[#allocation7 + $0x100] sm:$0xff]
    %v641 = vld [vmem:[#allocation7 + $0x108] sm:$0xff]
    %v642 = vld [vmem:[#allocation7 + $0x110] sm:$0xff]
    %v643 = vld [vmem:[#allocation7 + $0x118] sm:$0xff]
    %v644 = vld [vmem:[#allocation7 + $0x120] sm:$0xff]
    %v645 = vld [vmem:[#allocation7 + $0x128] sm:$0xff]
    %v646 = vld [vmem:[#allocation7 + $0x130] sm:$0xff]
    %v647 = vld [vmem:[#allocation7 + $0x138] sm:$0xff]
    %v648 = vld [vmem:[#allocation7 + $0x140] sm:$0xff]
    %v649 = vld [vmem:[#allocation7 + $0x148] sm:$0xff]
    %v650 = vld [vmem:[#allocation7 + $0x150] sm:$0xff]
    %v651 = vld [vmem:[#allocation7 + $0x158] sm:$0xff]
    %v652 = vld [vmem:[#allocation7 + $0x160] sm:$0xff]
    %v653 = vld [vmem:[#allocation7 + $0x168] sm:$0xff]
    %v654 = vld [vmem:[#allocation7 + $0x170] sm:$0xff]
    %v655 = vld [vmem:[#allocation7 + $0x178] sm:$0xff]
    %v656 = vld [vmem:[#allocation7 + $0x180] sm:$0xff]
    %v657 = vld [vmem:[#allocation7 + $0x188] sm:$0xff]
    %v658 = vld [vmem:[#allocation7 + $0x190] sm:$0xff]
    %v659 = vld [vmem:[#allocation7 + $0x198] sm:$0xff]
    %v660 = vld [vmem:[#allocation7 + $0x1a0] sm:$0xff]
    %v661 = vld [vmem:[#allocation7 + $0x1a8] sm:$0xff]
    %v662 = vld [vmem:[#allocation7 + $0x1b0] sm:$0xff]
    %v663 = vld [vmem:[#allocation7 + $0x1b8] sm:$0xff]
    %v664 = vld [vmem:[#allocation7 + $0x1c0] sm:$0xff]
    %v665 = vld [vmem:[#allocation7 + $0x1c8] sm:$0xff]
    %v666 = vld [vmem:[#allocation7 + $0x1d0] sm:$0xff]
    %v667 = vld [vmem:[#allocation7 + $0x1d8] sm:$0xff]
    %v668 = vld [vmem:[#allocation7 + $0x1e0] sm:$0xff]
    %v669 = vld [vmem:[#allocation7 + $0x1e8] sm:$0xff]
    %v670 = vld [vmem:[#allocation7 + $0x1f0] sm:$0xff]
    %v671 = vld [vmem:[#allocation7 + $0x1f8] sm:$0xff]
    %v672 = vld [vmem:[#allocation7 + $0x200] sm:$0xff]
    %v673 = vld [vmem:[#allocation7 + $0x208] sm:$0xff]
    %v674 = vld [vmem:[#allocation7 + $0x210] sm:$0xff]
    %v675 = vld [vmem:[#allocation7 + $0x218] sm:$0xff]
    %v676 = vld [vmem:[#allocation7 + $0x220] sm:$0xff]
    %v677 = vld [vmem:[#allocation7 + $0x228] sm:$0xff]
    %v678 = vld [vmem:[#allocation7 + $0x230] sm:$0xff]
    %v679 = vld [vmem:[#allocation7 + $0x238] sm:$0xff]
    %v680 = vld [vmem:[#allocation7 + $0x240] sm:$0xff]
    %v681 = vld [vmem:[#allocation7 + $0x248] sm:$0xff]
    %v682 = vld [vmem:[#allocation7 + $0x250] sm:$0xff]
    %v683 = vld [vmem:[#allocation7 + $0x258] sm:$0xff]
    %v684 = vld [vmem:[#allocation7 + $0x260] sm:$0xff]
    %v685 = vld [vmem:[#allocation7 + $0x268] sm:$0xff]
    %v686 = vld [vmem:[#allocation7 + $0x270] sm:$0xff]
    %v687 = vld [vmem:[#allocation7 + $0x278] sm:$0xff]
    %v688 = vld [vmem:[#allocation7 + $0x280] sm:$0xff]
    %v689 = vld [vmem:[#allocation7 + $0x288] sm:$0xff]
    %v690 = vld [vmem:[#allocation7 + $0x290] sm:$0xff]
    %v691 = vld [vmem:[#allocation7 + $0x298] sm:$0xff]
    %v692 = vld [vmem:[#allocation7 + $0x2a0] sm:$0xff]
    %v693 = vld [vmem:[#allocation7 + $0x2a8] sm:$0xff]
    %v694 = vld [vmem:[#allocation7 + $0x2b0] sm:$0xff]
    %v695 = vld [vmem:[#allocation7 + $0x2b8] sm:$0xff]
    %v696 = vld [vmem:[#allocation7 + $0x2c0] sm:$0xff]
    %v697 = vld [vmem:[#allocation7 + $0x2c8] sm:$0xff]
    %v698 = vld [vmem:[#allocation7 + $0x2d0] sm:$0xff]
    %v699 = vld [vmem:[#allocation7 + $0x2d8] sm:$0xff]
    %v700 = vld [vmem:[#allocation7 + $0x2e0] sm:$0xff]
    %v701 = vld [vmem:[#allocation7 + $0x2e8] sm:$0xff]
    %v702 = vld [vmem:[#allocation7 + $0x2f0] sm:$0xff]
    %v703 = vld [vmem:[#allocation7 + $0x2f8] sm:$0xff]
    %v704 = vld [vmem:[#allocation7 + $0x300] sm:$0xff]
    %v705 = vld [vmem:[#allocation7 + $0x308] sm:$0xff]
    %v706 = vld [vmem:[#allocation7 + $0x310] sm:$0xff]
    %v707 = vld [vmem:[#allocation7 + $0x318] sm:$0xff]
    %v708 = vld [vmem:[#allocation7 + $0x320] sm:$0xff]
    %v709 = vld [vmem:[#allocation7 + $0x328] sm:$0xff]
    %v710 = vld [vmem:[#allocation7 + $0x330] sm:$0xff]
    %v711 = vld [vmem:[#allocation7 + $0x338] sm:$0xff]
    %v712 = vld [vmem:[#allocation7 + $0x340] sm:$0xff]
    %v713 = vld [vmem:[#allocation7 + $0x348] sm:$0xff]
    %v714 = vld [vmem:[#allocation7 + $0x350] sm:$0xff]
    %v715 = vld [vmem:[#allocation7 + $0x358] sm:$0xff]
    %v716 = vld [vmem:[#allocation7 + $0x360] sm:$0xff]
    %v717 = vld [vmem:[#allocation7 + $0x368] sm:$0xff]
    %v718 = vld [vmem:[#allocation7 + $0x370] sm:$0xff]
    %v719 = vld [vmem:[#allocation7 + $0x378] sm:$0xff]
    %v720 = vld [vmem:[#allocation7 + $0x380] sm:$0xff]
    %v721 = vld [vmem:[#allocation7 + $0x388] sm:$0xff]
    %v722 = vld [vmem:[#allocation7 + $0x390] sm:$0xff]
    %v723 = vld [vmem:[#allocation7 + $0x398] sm:$0xff]
    %v724 = vld [vmem:[#allocation7 + $0x3a0] sm:$0xff]
    %v725 = vld [vmem:[#allocation7 + $0x3a8] sm:$0xff]
    %v726 = vld [vmem:[#allocation7 + $0x3b0] sm:$0xff]
    %v727 = vld [vmem:[#allocation7 + $0x3b8] sm:$0xff]
    %v728 = vld [vmem:[#allocation7 + $0x3c0] sm:$0xff]
    %v729 = vld [vmem:[#allocation7 + $0x3c8] sm:$0xff]
    %v730 = vld [vmem:[#allocation7 + $0x3d0] sm:$0xff]
    %v731 = vld [vmem:[#allocation7 + $0x3d8] sm:$0xff]
    %v732 = vld [vmem:[#allocation7 + $0x3e0] sm:$0xff]
    %v733 = vld [vmem:[#allocation7 + $0x3e8] sm:$0xff]
    %v734 = vld [vmem:[#allocation7 + $0x3f0] sm:$0xff]
    %v735 = vld [vmem:[#allocation7 + $0x3f8] sm:$0xff]
    %v736 = vld [vmem:[#allocation7 + $0x400] sm:$0xff]
    %v737 = vld [vmem:[#allocation7 + $0x408] sm:$0xff]
    %v738 = vld [vmem:[#allocation7 + $0x410] sm:$0xff]
    %v739 = vld [vmem:[#allocation7 + $0x418] sm:$0xff]
    %v740 = vld [vmem:[#allocation7 + $0x420] sm:$0xff]
    %v741 = vld [vmem:[#allocation7 + $0x428] sm:$0xff]
    %v742 = vld [vmem:[#allocation7 + $0x430] sm:$0xff]
    %v743 = vld [vmem:[#allocation7 + $0x438] sm:$0xff]
    %v744 = vld [vmem:[#allocation7 + $0x440] sm:$0xff]
    %v745 = vld [vmem:[#allocation7 + $0x448] sm:$0xff]
    %v746 = vld [vmem:[#allocation7 + $0x450] sm:$0xff]
    %v747 = vld [vmem:[#allocation7 + $0x458] sm:$0xff]
    %v748 = vld [vmem:[#allocation7 + $0x460] sm:$0xff]
    %v749 = vld [vmem:[#allocation7 + $0x468] sm:$0xff]
    %v750 = vld [vmem:[#allocation7 + $0x470] sm:$0xff]
    %v751 = vld [vmem:[#allocation7 + $0x478] sm:$0xff]
    %v752 = vld [vmem:[#allocation7 + $0x480] sm:$0xff]
    %v753 = vld [vmem:[#allocation7 + $0x488] sm:$0xff]
    %v754 = vld [vmem:[#allocation7 + $0x490] sm:$0xff]
    %v755 = vld [vmem:[#allocation7 + $0x498] sm:$0xff]
    %v756 = vld [vmem:[#allocation7 + $0x4a0] sm:$0xff]
    %v757 = vld [vmem:[#allocation7 + $0x4a8] sm:$0xff]
    %v758 = vld [vmem:[#allocation7 + $0x4b0] sm:$0xff]
    %v759 = vld [vmem:[#allocation7 + $0x4b8] sm:$0xff]
    %v760 = vld [vmem:[#allocation7 + $0x4c0] sm:$0xff]
    %v761 = vld [vmem:[#allocation7 + $0x4c8] sm:$0xff]
    %v762 = vld [vmem:[#allocation7 + $0x4d0] sm:$0xff]
    %v763 = vld [vmem:[#allocation7 + $0x4d8] sm:$0xff]
    %v764 = vld [vmem:[#allocation7 + $0x4e0] sm:$0xff]
    %v765 = vld [vmem:[#allocation7 + $0x4e8] sm:$0xff]
    %v766 = vld [vmem:[#allocation7 + $0x4f0] sm:$0xff]
    %v767 = vld [vmem:[#allocation7 + $0x4f8] sm:$0xff]
    %v768 = vld [vmem:[#allocation7 + $0x500] sm:$0xff]
    %v769 = vld [vmem:[#allocation7 + $0x508] sm:$0xff]
    %v770 = vld [vmem:[#allocation7 + $0x510] sm:$0xff]
    %v771 = vld [vmem:[#allocation7 + $0x518] sm:$0xff]
    %v772 = vld [vmem:[#allocation7 + $0x520] sm:$0xff]
    %v773 = vld [vmem:[#allocation7 + $0x528] sm:$0xff]
    %v774 = vld [vmem:[#allocation7 + $0x530] sm:$0xff]
    %v775 = vld [vmem:[#allocation7 + $0x538] sm:$0xff]
    %v776 = vld [vmem:[#allocation7 + $0x540] sm:$0xff]
    %v777 = vld [vmem:[#allocation7 + $0x548] sm:$0xff]
    %v778 = vld [vmem:[#allocation7 + $0x550] sm:$0xff]
    %v779 = vld [vmem:[#allocation7 + $0x558] sm:$0xff]
    %v780 = vld [vmem:[#allocation7 + $0x560] sm:$0xff]
    %v781 = vld [vmem:[#allocation7 + $0x568] sm:$0xff]
    %v782 = vld [vmem:[#allocation7 + $0x570] sm:$0xff]
    %v783 = vld [vmem:[#allocation7 + $0x578] sm:$0xff]
    %v784 = vld [vmem:[#allocation7 + $0x580] sm:$0xff]
    %v785 = vld [vmem:[#allocation7 + $0x588] sm:$0xff]
    %v786 = vld [vmem:[#allocation7 + $0x590] sm:$0xff]
    %v787 = vld [vmem:[#allocation7 + $0x598] sm:$0xff]
    %v788 = vld [vmem:[#allocation7 + $0x5a0] sm:$0xff]
    %v789 = vld [vmem:[#allocation7 + $0x5a8] sm:$0xff]
    %v790 = vld [vmem:[#allocation7 + $0x5b0] sm:$0xff]
    %v791 = vld [vmem:[#allocation7 + $0x5b8] sm:$0xff]
    %v792 = vld [vmem:[#allocation7 + $0x5c0] sm:$0xff]
    %v793 = vld [vmem:[#allocation7 + $0x5c8] sm:$0xff]
    %v794 = vld [vmem:[#allocation7 + $0x5d0] sm:$0xff]
    %v795 = vld [vmem:[#allocation7 + $0x5d8] sm:$0xff]
    %v796 = vld [vmem:[#allocation7 + $0x5e0] sm:$0xff]
    %v797 = vld [vmem:[#allocation7 + $0x5e8] sm:$0xff]
    %v798 = vld [vmem:[#allocation7 + $0x5f0] sm:$0xff]
    %v799 = vld [vmem:[#allocation7 + $0x5f8] sm:$0xff]
    %v800 = vld [vmem:[#allocation7 + $0x600] sm:$0xff]
    %v801 = vld [vmem:[#allocation7 + $0x608] sm:$0xff]
    %v802 = vld [vmem:[#allocation7 + $0x610] sm:$0xff]
    %v803 = vld [vmem:[#allocation7 + $0x618] sm:$0xff]
    %v804 = vld [vmem:[#allocation7 + $0x620] sm:$0xff]
    %v805 = vld [vmem:[#allocation7 + $0x628] sm:$0xff]
    %v806 = vld [vmem:[#allocation7 + $0x630] sm:$0xff]
    %v807 = vld [vmem:[#allocation7 + $0x638] sm:$0xff]
    %v808 = vld [vmem:[#allocation7 + $0x640] sm:$0xff]
    %v809 = vld [vmem:[#allocation7 + $0x648] sm:$0xff]
    %v810 = vld [vmem:[#allocation7 + $0x650] sm:$0xff]
    %v811 = vld [vmem:[#allocation7 + $0x658] sm:$0xff]
    %v812 = vld [vmem:[#allocation7 + $0x660] sm:$0xff]
    %v813 = vld [vmem:[#allocation7 + $0x668] sm:$0xff]
    %v814 = vld [vmem:[#allocation7 + $0x670] sm:$0xff]
    %v815 = vld [vmem:[#allocation7 + $0x678] sm:$0xff]
    %v816 = vld [vmem:[#allocation7 + $0x680] sm:$0xff]
    %v817 = vld [vmem:[#allocation7 + $0x688] sm:$0xff]
    %v818 = vld [vmem:[#allocation7 + $0x690] sm:$0xff]
    %v819 = vld [vmem:[#allocation7 + $0x698] sm:$0xff]
    %v820 = vld [vmem:[#allocation7 + $0x6a0] sm:$0xff]
    %v821 = vld [vmem:[#allocation7 + $0x6a8] sm:$0xff]
    %v822 = vld [vmem:[#allocation7 + $0x6b0] sm:$0xff]
    %v823 = vld [vmem:[#allocation7 + $0x6b8] sm:$0xff]
    %v824 = vld [vmem:[#allocation7 + $0x6c0] sm:$0xff]
    %v825 = vld [vmem:[#allocation7 + $0x6c8] sm:$0xff]
    %v826 = vld [vmem:[#allocation7 + $0x6d0] sm:$0xff]
    %v827 = vld [vmem:[#allocation7 + $0x6d8] sm:$0xff]
    %v828 = vld [vmem:[#allocation7 + $0x6e0] sm:$0xff]
    %v829 = vld [vmem:[#allocation7 + $0x6e8] sm:$0xff]
    %v830 = vld [vmem:[#allocation7 + $0x6f0] sm:$0xff]
    %v831 = vld [vmem:[#allocation7 + $0x6f8] sm:$0xff]
    %v832 = vld [vmem:[#allocation7 + $0x700] sm:$0xff]
    %v833 = vld [vmem:[#allocation7 + $0x708] sm:$0xff]
    %v834 = vld [vmem:[#allocation7 + $0x710] sm:$0xff]
    %v835 = vld [vmem:[#allocation7 + $0x718] sm:$0xff]
    %v836 = vld [vmem:[#allocation7 + $0x720] sm:$0xff]
    %v837 = vld [vmem:[#allocation7 + $0x728] sm:$0xff]
    %v838 = vld [vmem:[#allocation7 + $0x730] sm:$0xff]
    %v839 = vld [vmem:[#allocation7 + $0x738] sm:$0xff]
    %v840 = vld [vmem:[#allocation7 + $0x740] sm:$0xff]
    %v841 = vld [vmem:[#allocation7 + $0x748] sm:$0xff]
    %v842 = vld [vmem:[#allocation7 + $0x750] sm:$0xff]
    %v843 = vld [vmem:[#allocation7 + $0x758] sm:$0xff]
    %v844 = vld [vmem:[#allocation7 + $0x760] sm:$0xff]
    %v845 = vld [vmem:[#allocation7 + $0x768] sm:$0xff]
    %v846 = vld [vmem:[#allocation7 + $0x770] sm:$0xff]
    %v847 = vld [vmem:[#allocation7 + $0x778] sm:$0xff]
    %v848 = vld [vmem:[#allocation7 + $0x780] sm:$0xff]
    %v849 = vld [vmem:[#allocation7 + $0x788] sm:$0xff]
    %v850 = vld [vmem:[#allocation7 + $0x790] sm:$0xff]
    %v851 = vld [vmem:[#allocation7 + $0x798] sm:$0xff]
    %v852 = vld [vmem:[#allocation7 + $0x7a0] sm:$0xff]
    %v853 = vld [vmem:[#allocation7 + $0x7a8] sm:$0xff]
    %v854 = vld [vmem:[#allocation7 + $0x7b0] sm:$0xff]
    %v855 = vld [vmem:[#allocation7 + $0x7b8] sm:$0xff]
    %v856 = vld [vmem:[#allocation7 + $0x7c0] sm:$0xff]
    %v857 = vld [vmem:[#allocation7 + $0x7c8] sm:$0xff]
    %v858 = vld [vmem:[#allocation7 + $0x7d0] sm:$0xff]
    %v859 = vld [vmem:[#allocation7 + $0x7d8] sm:$0xff]
    %v860 = vld [vmem:[#allocation7 + $0x7e0] sm:$0xff]
    %v861 = vld [vmem:[#allocation7 + $0x7e8] sm:$0xff]
    %v862 = vld [vmem:[#allocation7 + $0x7f0] sm:$0xff]
    %v863 = vld [vmem:[#allocation7 + $0x7f8] sm:$0xff]
    %v864 = vld [vmem:[#allocation7 + $0x800] sm:$0xff]
    %v865 = vld [vmem:[#allocation7 + $0x808] sm:$0xff]
    %v866 = vld [vmem:[#allocation7 + $0x810] sm:$0xff]
    %v867 = vld [vmem:[#allocation7 + $0x818] sm:$0xff]
    %v868 = vld [vmem:[#allocation7 + $0x820] sm:$0xff]
    %v869 = vld [vmem:[#allocation7 + $0x828] sm:$0xff]
    %v870 = vld [vmem:[#allocation7 + $0x830] sm:$0xff]
    %v871 = vld [vmem:[#allocation7 + $0x838] sm:$0xff]
    %v872 = vld [vmem:[#allocation7 + $0x840] sm:$0xff]
    %v873 = vld [vmem:[#allocation7 + $0x848] sm:$0xff]
    %v874 = vld [vmem:[#allocation7 + $0x850] sm:$0xff]
    %v875 = vld [vmem:[#allocation7 + $0x858] sm:$0xff]
    %v876 = vld [vmem:[#allocation7 + $0x860] sm:$0xff]
    %v877 = vld [vmem:[#allocation7 + $0x868] sm:$0xff]
    %v878 = vld [vmem:[#allocation7 + $0x870] sm:$0xff]
    %v879 = vld [vmem:[#allocation7 + $0x878] sm:$0xff]
    %v880 = vld [vmem:[#allocation7 + $0x880] sm:$0xff]
    %v881 = vld [vmem:[#allocation7 + $0x888] sm:$0xff]
    %v882 = vld [vmem:[#allocation7 + $0x890] sm:$0xff]
    %v883 = vld [vmem:[#allocation7 + $0x898] sm:$0xff]
    %v884 = vld [vmem:[#allocation7 + $0x8a0] sm:$0xff]
    %v885 = vld [vmem:[#allocation7 + $0x8a8] sm:$0xff]
    %v886 = vld [vmem:[#allocation7 + $0x8b0] sm:$0xff]
    %v887 = vld [vmem:[#allocation7 + $0x8b8] sm:$0xff]
    %v888 = vld [vmem:[#allocation7 + $0x8c0] sm:$0xff]
    %v889 = vld [vmem:[#allocation7 + $0x8c8] sm:$0xff]
    %v890 = vld [vmem:[#allocation7 + $0x8d0] sm:$0xff]
    %v891 = vld [vmem:[#allocation7 + $0x8d8] sm:$0xff]
    %v892 = vld [vmem:[#allocation7 + $0x8e0] sm:$0xff]
    %v893 = vld [vmem:[#allocation7 + $0x8e8] sm:$0xff]
    %v894 = vld [vmem:[#allocation7 + $0x8f0] sm:$0xff]
    %v895 = vld [vmem:[#allocation7 + $0x8f8] sm:$0xff]
    %v896 = vld [vmem:[#allocation7 + $0x900] sm:$0xff]
    %v897 = vld [vmem:[#allocation7 + $0x908] sm:$0xff]
    %v898 = vld [vmem:[#allocation7 + $0x910] sm:$0xff]
    %v899 = vld [vmem:[#allocation7 + $0x918] sm:$0xff]
    %v900 = vld [vmem:[#allocation7 + $0x920] sm:$0xff]
    %v901 = vld [vmem:[#allocation7 + $0x928] sm:$0xff]
    %v902 = vld [vmem:[#allocation7 + $0x930] sm:$0xff]
    %v903 = vld [vmem:[#allocation7 + $0x938] sm:$0xff]
    %v904 = vld [vmem:[#allocation7 + $0x940] sm:$0xff]
    %v905 = vld [vmem:[#allocation7 + $0x948] sm:$0xff]
    %v906 = vld [vmem:[#allocation7 + $0x950] sm:$0xff]
    %v907 = vld [vmem:[#allocation7 + $0x958] sm:$0xff]
    %v908 = vld [vmem:[#allocation7 + $0x960] sm:$0xff]
    %v909 = vld [vmem:[#allocation7 + $0x968] sm:$0xff]
    %v910 = vld [vmem:[#allocation7 + $0x970] sm:$0xff]
    %v911 = vld [vmem:[#allocation7 + $0x978] sm:$0xff]
    %v912 = vld [vmem:[#allocation7 + $0x980] sm:$0xff]
    %v913 = vld [vmem:[#allocation7 + $0x988] sm:$0xff]
    %v914 = vld [vmem:[#allocation7 + $0x990] sm:$0xff]
    %v915 = vld [vmem:[#allocation7 + $0x998] sm:$0xff]
    %v916 = vld [vmem:[#allocation7 + $0x9a0] sm:$0xff]
    %v917 = vld [vmem:[#allocation7 + $0x9a8] sm:$0xff]
    %v918 = vld [vmem:[#allocation7 + $0x9b0] sm:$0xff]
    %v919 = vld [vmem:[#allocation7 + $0x9b8] sm:$0xff]
    %v920 = vld [vmem:[#allocation7 + $0x9c0] sm:$0xff]
    %v921 = vld [vmem:[#allocation7 + $0x9c8] sm:$0xff]
    %v922 = vld [vmem:[#allocation7 + $0x9d0] sm:$0xff]
    %v923 = vld [vmem:[#allocation7 + $0x9d8] sm:$0xff]
    %v924 = vld [vmem:[#allocation7 + $0x9e0] sm:$0xff]
    %v925 = vld [vmem:[#allocation7 + $0x9e8] sm:$0xff]
    %v926 = vld [vmem:[#allocation7 + $0x9f0] sm:$0xff]
    %v927 = vld [vmem:[#allocation7 + $0x9f8] sm:$0xff]
    %v928 = vld [vmem:[#allocation7 + $0xa00] sm:$0xff]
    %v929 = vld [vmem:[#allocation7 + $0xa08] sm:$0xff]
    %v930 = vld [vmem:[#allocation7 + $0xa10] sm:$0xff]
    %v931 = vld [vmem:[#allocation7 + $0xa18] sm:$0xff]
    %v932 = vld [vmem:[#allocation7 + $0xa20] sm:$0xff]
    %v933 = vld [vmem:[#allocation7 + $0xa28] sm:$0xff]
    %v934 = vld [vmem:[#allocation7 + $0xa30] sm:$0xff]
    %v935 = vld [vmem:[#allocation7 + $0xa38] sm:$0xff]
    %v936 = vld [vmem:[#allocation7 + $0xa40] sm:$0xff]
    %v937 = vld [vmem:[#allocation7 + $0xa48] sm:$0xff]
    %v938 = vld [vmem:[#allocation7 + $0xa50] sm:$0xff]
    %v939 = vld [vmem:[#allocation7 + $0xa58] sm:$0xff]
    %v940 = vld [vmem:[#allocation7 + $0xa60] sm:$0xff]
    %v941 = vld [vmem:[#allocation7 + $0xa68] sm:$0xff]
    %v942 = vld [vmem:[#allocation7 + $0xa70] sm:$0xff]
    %v943 = vld [vmem:[#allocation7 + $0xa78] sm:$0xff]
    %v944 = vld [vmem:[#allocation7 + $0xa80] sm:$0xff]
    %v945 = vld [vmem:[#allocation7 + $0xa88] sm:$0xff]
    %v946 = vld [vmem:[#allocation7 + $0xa90] sm:$0xff]
    %v947 = vld [vmem:[#allocation7 + $0xa98] sm:$0xff]
    %v948 = vld [vmem:[#allocation7 + $0xaa0] sm:$0xff]
    %v949 = vld [vmem:[#allocation7 + $0xaa8] sm:$0xff]
    %v950 = vld [vmem:[#allocation7 + $0xab0] sm:$0xff]
    %v951 = vld [vmem:[#allocation7 + $0xab8] sm:$0xff]
    %v952 = vld [vmem:[#allocation7 + $0xac0] sm:$0xff]
    %v953 = vld [vmem:[#allocation7 + $0xac8] sm:$0xff]
    %v954 = vld [vmem:[#allocation7 + $0xad0] sm:$0xff]
    %v955 = vld [vmem:[#allocation7 + $0xad8] sm:$0xff]
    %v956 = vld [vmem:[#allocation7 + $0xae0] sm:$0xff]
    %v957 = vld [vmem:[#allocation7 + $0xae8] sm:$0xff]
    %v958 = vld [vmem:[#allocation7 + $0xaf0] sm:$0xff]
    %v959 = vld [vmem:[#allocation7 + $0xaf8] sm:$0xff]
    %v960 = vld [vmem:[#allocation7 + $0xb00] sm:$0xff]
    %v961 = vld [vmem:[#allocation7 + $0xb08] sm:$0xff]
    %v962 = vld [vmem:[#allocation7 + $0xb10] sm:$0xff]
    %v963 = vld [vmem:[#allocation7 + $0xb18] sm:$0xff]
    %v964 = vld [vmem:[#allocation7 + $0xb20] sm:$0xff]
    %v965 = vld [vmem:[#allocation7 + $0xb28] sm:$0xff]
    %v966 = vld [vmem:[#allocation7 + $0xb30] sm:$0xff]
    %v967 = vld [vmem:[#allocation7 + $0xb38] sm:$0xff]
    %v968 = vld [vmem:[#allocation7 + $0xb40] sm:$0xff]
    %v969 = vld [vmem:[#allocation7 + $0xb48] sm:$0xff]
    %v970 = vld [vmem:[#allocation7 + $0xb50] sm:$0xff]
    %v971 = vld [vmem:[#allocation7 + $0xb58] sm:$0xff]
    %v972 = vld [vmem:[#allocation7 + $0xb60] sm:$0xff]
    %v973 = vld [vmem:[#allocation7 + $0xb68] sm:$0xff]
    %v974 = vld [vmem:[#allocation7 + $0xb70] sm:$0xff]
    %v975 = vld [vmem:[#allocation7 + $0xb78] sm:$0xff]
    %v976 = vld [vmem:[#allocation7 + $0xb80] sm:$0xff]
    %v977 = vld [vmem:[#allocation7 + $0xb88] sm:$0xff]
    %v978 = vld [vmem:[#allocation7 + $0xb90] sm:$0xff]
    %v979 = vld [vmem:[#allocation7 + $0xb98] sm:$0xff]
    %v980 = vld [vmem:[#allocation7 + $0xba0] sm:$0xff]
    %v981 = vld [vmem:[#allocation7 + $0xba8] sm:$0xff]
    %v982 = vld [vmem:[#allocation7 + $0xbb0] sm:$0xff]
    %v983 = vld [vmem:[#allocation7 + $0xbb8] sm:$0xff]
    %v984 = vld [vmem:[#allocation7 + $0xbc0] sm:$0xff]
    %v985 = vld [vmem:[#allocation7 + $0xbc8] sm:$0xff]
    %v986 = vld [vmem:[#allocation7 + $0xbd0] sm:$0xff]
    %v987 = vld [vmem:[#allocation7 + $0xbd8] sm:$0xff]
    %v988 = vld [vmem:[#allocation7 + $0xbe0] sm:$0xff]
    %v989 = vld [vmem:[#allocation7 + $0xbe8] sm:$0xff]
    %v990 = vld [vmem:[#allocation7 + $0xbf0] sm:$0xff]
    %v991 = vld [vmem:[#allocation7 + $0xbf8] sm:$0xff]
    %v992 = vld [vmem:[#allocation7 + $0xc00] sm:$0xff]
    %v993 = vld [vmem:[#allocation7 + $0xc08] sm:$0xff]
    %v994 = vld [vmem:[#allocation7 + $0xc10] sm:$0xff]
    %v995 = vld [vmem:[#allocation7 + $0xc18] sm:$0xff]
    %v996 = vld [vmem:[#allocation7 + $0xc20] sm:$0xff]
    %v997 = vld [vmem:[#allocation7 + $0xc28] sm:$0xff]
    %v998 = vld [vmem:[#allocation7 + $0xc30] sm:$0xff]
    %v999 = vld [vmem:[#allocation7 + $0xc38] sm:$0xff]
    %v1000 = vld [vmem:[#allocation7 + $0xc40] sm:$0xff]
    %v1001 = vld [vmem:[#allocation7 + $0xc48] sm:$0xff]
    %v1002 = vld [vmem:[#allocation7 + $0xc50] sm:$0xff]
    %v1003 = vld [vmem:[#allocation7 + $0xc58] sm:$0xff]
    %v1004 = vld [vmem:[#allocation7 + $0xc60] sm:$0xff]
    %v1005 = vld [vmem:[#allocation7 + $0xc68] sm:$0xff]
    %v1006 = vld [vmem:[#allocation7 + $0xc70] sm:$0xff]
    %v1007 = vld [vmem:[#allocation7 + $0xc78] sm:$0xff]
    %v1008 = vld [vmem:[#allocation7 + $0xc80] sm:$0xff]
    %v1009 = vld [vmem:[#allocation7 + $0xc88] sm:$0xff]
    %v1010 = vld [vmem:[#allocation7 + $0xc90] sm:$0xff]
    %v1011 = vld [vmem:[#allocation7 + $0xc98] sm:$0xff]
    %v1012 = vld [vmem:[#allocation7 + $0xca0] sm:$0xff]
    %v1013 = vld [vmem:[#allocation7 + $0xca8] sm:$0xff]
    %v1014 = vld [vmem:[#allocation7 + $0xcb0] sm:$0xff]
    %v1015 = vld [vmem:[#allocation7 + $0xcb8] sm:$0xff]
    %v1016 = vld [vmem:[#allocation7 + $0xcc0] sm:$0xff]
    %v1017 = vld [vmem:[#allocation7 + $0xcc8] sm:$0xff]
    %v1018 = vld [vmem:[#allocation7 + $0xcd0] sm:$0xff]
    %v1019 = vld [vmem:[#allocation7 + $0xcd8] sm:$0xff]
    %v1020 = vld [vmem:[#allocation7 + $0xce0] sm:$0xff]
    %v1021 = vld [vmem:[#allocation7 + $0xce8] sm:$0xff]
    %v1022 = vld [vmem:[#allocation7 + $0xcf0] sm:$0xff]
    %v1023 = vld [vmem:[#allocation7 + $0xcf8] sm:$0xff]
    %v1024 = vld [vmem:[#allocation7 + $0xd00] sm:$0xff]
    %v1025 = vld [vmem:[#allocation7 + $0xd08] sm:$0xff]
    %v1026 = vld [vmem:[#allocation7 + $0xd10] sm:$0xff]
    %v1027 = vld [vmem:[#allocation7 + $0xd18] sm:$0xff]
    %v1028 = vld [vmem:[#allocation7 + $0xd20] sm:$0xff]
    %v1029 = vld [vmem:[#allocation7 + $0xd28] sm:$0xff]
    %v1030 = vld [vmem:[#allocation7 + $0xd30] sm:$0xff]
    %v1031 = vld [vmem:[#allocation7 + $0xd38] sm:$0xff]
    %v1032 = vld [vmem:[#allocation7 + $0xd40] sm:$0xff]
    %v1033 = vld [vmem:[#allocation7 + $0xd48] sm:$0xff]
    %v1034 = vld [vmem:[#allocation7 + $0xd50] sm:$0xff]
    %v1035 = vld [vmem:[#allocation7 + $0xd58] sm:$0xff]
    %v1036 = vld [vmem:[#allocation7 + $0xd60] sm:$0xff]
    %v1037 = vld [vmem:[#allocation7 + $0xd68] sm:$0xff]
    %v1038 = vld [vmem:[#allocation7 + $0xd70] sm:$0xff]
    %v1039 = vld [vmem:[#allocation7 + $0xd78] sm:$0xff]
    %v1040 = vld [vmem:[#allocation7 + $0xd80] sm:$0xff]
    %v1041 = vld [vmem:[#allocation7 + $0xd88] sm:$0xff]
    %v1042 = vld [vmem:[#allocation7 + $0xd90] sm:$0xff]
    %v1043 = vld [vmem:[#allocation7 + $0xd98] sm:$0xff]
    %v1044 = vld [vmem:[#allocation7 + $0xda0] sm:$0xff]
    %v1045 = vld [vmem:[#allocation7 + $0xda8] sm:$0xff]
    %v1046 = vld [vmem:[#allocation7 + $0xdb0] sm:$0xff]
    %v1047 = vld [vmem:[#allocation7 + $0xdb8] sm:$0xff]
    %v1048 = vld [vmem:[#allocation7 + $0xdc0] sm:$0xff]
    %v1049 = vld [vmem:[#allocation7 + $0xdc8] sm:$0xff]
    %v1050 = vld [vmem:[#allocation7 + $0xdd0] sm:$0xff]
    %v1051 = vld [vmem:[#allocation7 + $0xdd8] sm:$0xff]
    %v1052 = vld [vmem:[#allocation7 + $0xde0] sm:$0xff]
    %v1053 = vld [vmem:[#allocation7 + $0xde8] sm:$0xff]
    %v1054 = vld [vmem:[#allocation7 + $0xdf0] sm:$0xff]
    %v1055 = vld [vmem:[#allocation7 + $0xdf8] sm:$0xff]
    %v1056 = vld [vmem:[#allocation7 + $0xe00] sm:$0xff]
    %v1057 = vld [vmem:[#allocation7 + $0xe08] sm:$0xff]
    %v1058 = vld [vmem:[#allocation7 + $0xe10] sm:$0xff]
    %v1059 = vld [vmem:[#allocation7 + $0xe18] sm:$0xff]
    %v1060 = vld [vmem:[#allocation7 + $0xe20] sm:$0xff]
    %v1061 = vld [vmem:[#allocation7 + $0xe28] sm:$0xff]
    %v1062 = vld [vmem:[#allocation7 + $0xe30] sm:$0xff]
    %v1063 = vld [vmem:[#allocation7 + $0xe38] sm:$0xff]
    %v1064 = vld [vmem:[#allocation7 + $0xe40] sm:$0xff]
    %v1065 = vld [vmem:[#allocation7 + $0xe48] sm:$0xff]
    %v1066 = vld [vmem:[#allocation7 + $0xe50] sm:$0xff]
    %v1067 = vld [vmem:[#allocation7 + $0xe58] sm:$0xff]
    %v1068 = vld [vmem:[#allocation7 + $0xe60] sm:$0xff]
    %v1069 = vld [vmem:[#allocation7 + $0xe68] sm:$0xff]
    %v1070 = vld [vmem:[#allocation7 + $0xe70] sm:$0xff]
    %v1071 = vld [vmem:[#allocation7 + $0xe78] sm:$0xff]
    %v1072 = vld [vmem:[#allocation7 + $0xe80] sm:$0xff]
    %v1073 = vld [vmem:[#allocation7 + $0xe88] sm:$0xff]
    %v1074 = vld [vmem:[#allocation7 + $0xe90] sm:$0xff]
    %v1075 = vld [vmem:[#allocation7 + $0xe98] sm:$0xff]
    %v1076 = vld [vmem:[#allocation7 + $0xea0] sm:$0xff]
    %v1077 = vld [vmem:[#allocation7 + $0xea8] sm:$0xff]
    %v1078 = vld [vmem:[#allocation7 + $0xeb0] sm:$0xff]
    %v1079 = vld [vmem:[#allocation7 + $0xeb8] sm:$0xff]
    %v1080 = vld [vmem:[#allocation7 + $0xec0] sm:$0xff]
    %v1081 = vld [vmem:[#allocation7 + $0xec8] sm:$0xff]
    %v1082 = vld [vmem:[#allocation7 + $0xed0] sm:$0xff]
    %v1083 = vld [vmem:[#allocation7 + $0xed8] sm:$0xff]
    %v1084 = vld [vmem:[#allocation7 + $0xee0] sm:$0xff]
    %v1085 = vld [vmem:[#allocation7 + $0xee8] sm:$0xff]
    %v1086 = vld [vmem:[#allocation7 + $0xef0] sm:$0xff]
    %v1087 = vld [vmem:[#allocation7 + $0xef8] sm:$0xff]
    %v1088 = vld [vmem:[#allocation7 + $0xf00] sm:$0xff]
    %v1089 = vld [vmem:[#allocation7 + $0xf08] sm:$0xff]
    %v1090 = vld [vmem:[#allocation7 + $0xf10] sm:$0xff]
    %v1091 = vld [vmem:[#allocation7 + $0xf18] sm:$0xff]
    %v1092 = vld [vmem:[#allocation7 + $0xf20] sm:$0xff]
    %v1093 = vld [vmem:[#allocation7 + $0xf28] sm:$0xff]
    %v1094 = vld [vmem:[#allocation7 + $0xf30] sm:$0xff]
    %v1095 = vld [vmem:[#allocation7 + $0xf38] sm:$0xff]
    %v1096 = vld [vmem:[#allocation7 + $0xf40] sm:$0xff]
    %v1097 = vld [vmem:[#allocation7 + $0xf48] sm:$0xff]
    %v1098 = vld [vmem:[#allocation7 + $0xf50] sm:$0xff]
    %v1099 = vld [vmem:[#allocation7 + $0xf58] sm:$0xff]
    %v1100 = vld [vmem:[#allocation7 + $0xf60] sm:$0xff]
    %v1101 = vld [vmem:[#allocation7 + $0xf68] sm:$0xff]
    %v1102 = vld [vmem:[#allocation7 + $0xf70] sm:$0xff]
    %v1103 = vld [vmem:[#allocation7 + $0xf78] sm:$0xff]
    %v1104 = vld [vmem:[#allocation7 + $0xf80] sm:$0xff]
    %v1105 = vld [vmem:[#allocation7 + $0xf88] sm:$0xff]
    %v1106 = vld [vmem:[#allocation7 + $0xf90] sm:$0xff]
    %v1107 = vld [vmem:[#allocation7 + $0xf98] sm:$0xff]
    %v1108 = vld [vmem:[#allocation7 + $0xfa0] sm:$0xff]
    %v1109 = vld [vmem:[#allocation7 + $0xfa8] sm:$0xff]
    %v1110 = vld [vmem:[#allocation7 + $0xfb0] sm:$0xff]
    %v1111 = vld [vmem:[#allocation7 + $0xfb8] sm:$0xff]
    %v1112 = vld [vmem:[#allocation7 + $0xfc0] sm:$0xff]
    %v1113 = vld [vmem:[#allocation7 + $0xfc8] sm:$0xff]
    %v1114 = vld [vmem:[#allocation7 + $0xfd0] sm:$0xff]
    %v1115 = vld [vmem:[#allocation7 + $0xfd8] sm:$0xff]
    %v1116 = vld [vmem:[#allocation7 + $0xfe0] sm:$0xff]
    %v1117 = vld [vmem:[#allocation7 + $0xfe8] sm:$0xff]
    %v1118 = vld [vmem:[#allocation7 + $0xff0] sm:$0xff]
    %v1119 = vld [vmem:[#allocation7 + $0xff8] sm:$0xff]
    %v1120 = vld [vmem:[#allocation8] sm:$0xf]
    %v1122 = vperm.slane %v1120, 0
    %v1123 = vperm.slane %v1120, 1
    %v1124 = vperm.slane %v1120, 2
    %v1125 = vperm.slane %v1120, 3
    %v1642 = vunpack.c.l.b16 %v608
    %v1643 = vunpack.c.h.b16 %v608
    %v1644 = vunpack.c.l.b16 %v609
    %v1645 = vunpack.c.h.b16 %v609
    %v1646 = vunpack.c.l.b16 %v610
    %v1647 = vunpack.c.h.b16 %v610
    %v1648 = vunpack.c.l.b16 %v611
    %v1649 = vunpack.c.h.b16 %v611
    %v1650 = vunpack.c.l.b16 %v612
    %v1651 = vunpack.c.h.b16 %v612
    %v1652 = vunpack.c.l.b16 %v613
    %v1653 = vunpack.c.h.b16 %v613
    %v1654 = vunpack.c.l.b16 %v614
    %v1655 = vunpack.c.h.b16 %v614
    %v1656 = vunpack.c.l.b16 %v615
    %v1657 = vunpack.c.h.b16 %v615
    %v1658 = vunpack.c.l.b16 %v616
    %v1659 = vunpack.c.h.b16 %v616
    %v1660 = vunpack.c.l.b16 %v617
    %v1661 = vunpack.c.h.b16 %v617
    %v1662 = vunpack.c.l.b16 %v618
    %v1663 = vunpack.c.h.b16 %v618
    %v1664 = vunpack.c.l.b16 %v619
    %v1665 = vunpack.c.h.b16 %v619
    %v1666 = vunpack.c.l.b16 %v620
    %v1667 = vunpack.c.h.b16 %v620
    %v1668 = vunpack.c.l.b16 %v621
    %v1669 = vunpack.c.h.b16 %v621
    %v1670 = vunpack.c.l.b16 %v622
    %v1671 = vunpack.c.h.b16 %v622
    %v1672 = vunpack.c.l.b16 %v623
    %v1673 = vunpack.c.h.b16 %v623
    %v1674 = vunpack.c.l.b16 %v624
    %v1675 = vunpack.c.h.b16 %v624
    %v1676 = vunpack.c.l.b16 %v625
    %v1677 = vunpack.c.h.b16 %v625
    %v1678 = vunpack.c.l.b16 %v626
    %v1679 = vunpack.c.h.b16 %v626
    %v1680 = vunpack.c.l.b16 %v627
    %v1681 = vunpack.c.h.b16 %v627
    %v1682 = vunpack.c.l.b16 %v628
    %v1683 = vunpack.c.h.b16 %v628
    %v1684 = vunpack.c.l.b16 %v629
    %v1685 = vunpack.c.h.b16 %v629
    %v1686 = vunpack.c.l.b16 %v630
    %v1687 = vunpack.c.h.b16 %v630
    %v1688 = vunpack.c.l.b16 %v631
    %v1689 = vunpack.c.h.b16 %v631
    %v1690 = vunpack.c.l.b16 %v632
    %v1691 = vunpack.c.h.b16 %v632
    %v1692 = vunpack.c.l.b16 %v633
    %v1693 = vunpack.c.h.b16 %v633
    %v1694 = vunpack.c.l.b16 %v634
    %v1695 = vunpack.c.h.b16 %v634
    %v1696 = vunpack.c.l.b16 %v635
    %v1697 = vunpack.c.h.b16 %v635
    %v1698 = vunpack.c.l.b16 %v636
    %v1699 = vunpack.c.h.b16 %v636
    %v1700 = vunpack.c.l.b16 %v637
    %v1701 = vunpack.c.h.b16 %v637
    %v1702 = vunpack.c.l.b16 %v638
    %v1703 = vunpack.c.h.b16 %v638
    %v1704 = vunpack.c.l.b16 %v639
    %v1705 = vunpack.c.h.b16 %v639
    %v1706 = vunpack.c.l.b16 %v640
    %v1707 = vunpack.c.h.b16 %v640
    %v1708 = vunpack.c.l.b16 %v641
    %v1709 = vunpack.c.h.b16 %v641
    %v1710 = vunpack.c.l.b16 %v642
    %v1711 = vunpack.c.h.b16 %v642
    %v1712 = vunpack.c.l.b16 %v643
    %v1713 = vunpack.c.h.b16 %v643
    %v1714 = vunpack.c.l.b16 %v644
    %v1715 = vunpack.c.h.b16 %v644
    %v1716 = vunpack.c.l.b16 %v645
    %v1717 = vunpack.c.h.b16 %v645
    %v1718 = vunpack.c.l.b16 %v646
    %v1719 = vunpack.c.h.b16 %v646
    %v1720 = vunpack.c.l.b16 %v647
    %v1721 = vunpack.c.h.b16 %v647
    %v1722 = vunpack.c.l.b16 %v648
    %v1723 = vunpack.c.h.b16 %v648
    %v1724 = vunpack.c.l.b16 %v649
    %v1725 = vunpack.c.h.b16 %v649
    %v1726 = vunpack.c.l.b16 %v650
    %v1727 = vunpack.c.h.b16 %v650
    %v1728 = vunpack.c.l.b16 %v651
    %v1729 = vunpack.c.h.b16 %v651
    %v1730 = vunpack.c.l.b16 %v652
    %v1731 = vunpack.c.h.b16 %v652
    %v1732 = vunpack.c.l.b16 %v653
    %v1733 = vunpack.c.h.b16 %v653
    %v1734 = vunpack.c.l.b16 %v654
    %v1735 = vunpack.c.h.b16 %v654
    %v1736 = vunpack.c.l.b16 %v655
    %v1737 = vunpack.c.h.b16 %v655
    %v1738 = vunpack.c.l.b16 %v656
    %v1739 = vunpack.c.h.b16 %v656
    %v1740 = vunpack.c.l.b16 %v657
    %v1741 = vunpack.c.h.b16 %v657
    %v1742 = vunpack.c.l.b16 %v658
    %v1743 = vunpack.c.h.b16 %v658
    %v1744 = vunpack.c.l.b16 %v659
    %v1745 = vunpack.c.h.b16 %v659
    %v1746 = vunpack.c.l.b16 %v660
    %v1747 = vunpack.c.h.b16 %v660
    %v1748 = vunpack.c.l.b16 %v661
    %v1749 = vunpack.c.h.b16 %v661
    %v1750 = vunpack.c.l.b16 %v662
    %v1751 = vunpack.c.h.b16 %v662
    %v1752 = vunpack.c.l.b16 %v663
    %v1753 = vunpack.c.h.b16 %v663
    %v1754 = vunpack.c.l.b16 %v664
    %v1755 = vunpack.c.h.b16 %v664
    %v1756 = vunpack.c.l.b16 %v665
    %v1757 = vunpack.c.h.b16 %v665
    %v1758 = vunpack.c.l.b16 %v666
    %v1759 = vunpack.c.h.b16 %v666
    %v1760 = vunpack.c.l.b16 %v667
    %v1761 = vunpack.c.h.b16 %v667
    %v1762 = vunpack.c.l.b16 %v668
    %v1763 = vunpack.c.h.b16 %v668
    %v1764 = vunpack.c.l.b16 %v669
    %v1765 = vunpack.c.h.b16 %v669
    %v1766 = vunpack.c.l.b16 %v670
    %v1767 = vunpack.c.h.b16 %v670
    %v1768 = vunpack.c.l.b16 %v671
    %v1769 = vunpack.c.h.b16 %v671
    %v1770 = vunpack.c.l.b16 %v672
    %v1771 = vunpack.c.h.b16 %v672
    %v1772 = vunpack.c.l.b16 %v673
    %v1773 = vunpack.c.h.b16 %v673
    %v1774 = vunpack.c.l.b16 %v674
    %v1775 = vunpack.c.h.b16 %v674
    %v1776 = vunpack.c.l.b16 %v675
    %v1777 = vunpack.c.h.b16 %v675
    %v1778 = vunpack.c.l.b16 %v676
    %v1779 = vunpack.c.h.b16 %v676
    %v1780 = vunpack.c.l.b16 %v677
    %v1781 = vunpack.c.h.b16 %v677
    %v1782 = vunpack.c.l.b16 %v678
    %v1783 = vunpack.c.h.b16 %v678
    %v1784 = vunpack.c.l.b16 %v679
    %v1785 = vunpack.c.h.b16 %v679
    %v1786 = vunpack.c.l.b16 %v680
    %v1787 = vunpack.c.h.b16 %v680
    %v1788 = vunpack.c.l.b16 %v681
    %v1789 = vunpack.c.h.b16 %v681
    %v1790 = vunpack.c.l.b16 %v682
    %v1791 = vunpack.c.h.b16 %v682
    %v1792 = vunpack.c.l.b16 %v683
    %v1793 = vunpack.c.h.b16 %v683
    %v1794 = vunpack.c.l.b16 %v684
    %v1795 = vunpack.c.h.b16 %v684
    %v1796 = vunpack.c.l.b16 %v685
    %v1797 = vunpack.c.h.b16 %v685
    %v1798 = vunpack.c.l.b16 %v686
    %v1799 = vunpack.c.h.b16 %v686
    %v1800 = vunpack.c.l.b16 %v687
    %v1801 = vunpack.c.h.b16 %v687
    %v1802 = vunpack.c.l.b16 %v688
    %v1803 = vunpack.c.h.b16 %v688
    %v1804 = vunpack.c.l.b16 %v689
    %v1805 = vunpack.c.h.b16 %v689
    %v1806 = vunpack.c.l.b16 %v690
    %v1807 = vunpack.c.h.b16 %v690
    %v1808 = vunpack.c.l.b16 %v691
    %v1809 = vunpack.c.h.b16 %v691
    %v1810 = vunpack.c.l.b16 %v692
    %v1811 = vunpack.c.h.b16 %v692
    %v1812 = vunpack.c.l.b16 %v693
    %v1813 = vunpack.c.h.b16 %v693
    %v1814 = vunpack.c.l.b16 %v694
    %v1815 = vunpack.c.h.b16 %v694
    %v1816 = vunpack.c.l.b16 %v695
    %v1817 = vunpack.c.h.b16 %v695
    %v1818 = vunpack.c.l.b16 %v696
    %v1819 = vunpack.c.h.b16 %v696
    %v1820 = vunpack.c.l.b16 %v697
    %v1821 = vunpack.c.h.b16 %v697
    %v1822 = vunpack.c.l.b16 %v698
    %v1823 = vunpack.c.h.b16 %v698
    %v1824 = vunpack.c.l.b16 %v699
    %v1825 = vunpack.c.h.b16 %v699
    %v1826 = vunpack.c.l.b16 %v700
    %v1827 = vunpack.c.h.b16 %v700
    %v1828 = vunpack.c.l.b16 %v701
    %v1829 = vunpack.c.h.b16 %v701
    %v1830 = vunpack.c.l.b16 %v702
    %v1831 = vunpack.c.h.b16 %v702
    %v1832 = vunpack.c.l.b16 %v703
    %v1833 = vunpack.c.h.b16 %v703
    %v1834 = vunpack.c.l.b16 %v704
    %v1835 = vunpack.c.h.b16 %v704
    %v1836 = vunpack.c.l.b16 %v705
    %v1837 = vunpack.c.h.b16 %v705
    %v1838 = vunpack.c.l.b16 %v706
    %v1839 = vunpack.c.h.b16 %v706
    %v1840 = vunpack.c.l.b16 %v707
    %v1841 = vunpack.c.h.b16 %v707
    %v1842 = vunpack.c.l.b16 %v708
    %v1843 = vunpack.c.h.b16 %v708
    %v1844 = vunpack.c.l.b16 %v709
    %v1845 = vunpack.c.h.b16 %v709
    %v1846 = vunpack.c.l.b16 %v710
    %v1847 = vunpack.c.h.b16 %v710
    %v1848 = vunpack.c.l.b16 %v711
    %v1849 = vunpack.c.h.b16 %v711
    %v1850 = vunpack.c.l.b16 %v712
    %v1851 = vunpack.c.h.b16 %v712
    %v1852 = vunpack.c.l.b16 %v713
    %v1853 = vunpack.c.h.b16 %v713
    %v1854 = vunpack.c.l.b16 %v714
    %v1855 = vunpack.c.h.b16 %v714
    %v1856 = vunpack.c.l.b16 %v715
    %v1857 = vunpack.c.h.b16 %v715
    %v1858 = vunpack.c.l.b16 %v716
    %v1859 = vunpack.c.h.b16 %v716
    %v1860 = vunpack.c.l.b16 %v717
    %v1861 = vunpack.c.h.b16 %v717
    %v1862 = vunpack.c.l.b16 %v718
    %v1863 = vunpack.c.h.b16 %v718
    %v1864 = vunpack.c.l.b16 %v719
    %v1865 = vunpack.c.h.b16 %v719
    %v1866 = vunpack.c.l.b16 %v720
    %v1867 = vunpack.c.h.b16 %v720
    %v1868 = vunpack.c.l.b16 %v721
    %v1869 = vunpack.c.h.b16 %v721
    %v1870 = vunpack.c.l.b16 %v722
    %v1871 = vunpack.c.h.b16 %v722
    %v1872 = vunpack.c.l.b16 %v723
    %v1873 = vunpack.c.h.b16 %v723
    %v1874 = vunpack.c.l.b16 %v724
    %v1875 = vunpack.c.h.b16 %v724
    %v1876 = vunpack.c.l.b16 %v725
    %v1877 = vunpack.c.h.b16 %v725
    %v1878 = vunpack.c.l.b16 %v726
    %v1879 = vunpack.c.h.b16 %v726
    %v1880 = vunpack.c.l.b16 %v727
    %v1881 = vunpack.c.h.b16 %v727
    %v1882 = vunpack.c.l.b16 %v728
    %v1883 = vunpack.c.h.b16 %v728
    %v1884 = vunpack.c.l.b16 %v729
    %v1885 = vunpack.c.h.b16 %v729
    %v1886 = vunpack.c.l.b16 %v730
    %v1887 = vunpack.c.h.b16 %v730
    %v1888 = vunpack.c.l.b16 %v731
    %v1889 = vunpack.c.h.b16 %v731
    %v1890 = vunpack.c.l.b16 %v732
    %v1891 = vunpack.c.h.b16 %v732
    %v1892 = vunpack.c.l.b16 %v733
    %v1893 = vunpack.c.h.b16 %v733
    %v1894 = vunpack.c.l.b16 %v734
    %v1895 = vunpack.c.h.b16 %v734
    %v1896 = vunpack.c.l.b16 %v735
    %v1897 = vunpack.c.h.b16 %v735
    %v1898 = vunpack.c.l.b16 %v736
    %v1899 = vunpack.c.h.b16 %v736
    %v1900 = vunpack.c.l.b16 %v737
    %v1901 = vunpack.c.h.b16 %v737
    %v1902 = vunpack.c.l.b16 %v738
    %v1903 = vunpack.c.h.b16 %v738
    %v1904 = vunpack.c.l.b16 %v739
    %v1905 = vunpack.c.h.b16 %v739
    %v1906 = vunpack.c.l.b16 %v740
    %v1907 = vunpack.c.h.b16 %v740
    %v1908 = vunpack.c.l.b16 %v741
    %v1909 = vunpack.c.h.b16 %v741
    %v1910 = vunpack.c.l.b16 %v742
    %v1911 = vunpack.c.h.b16 %v742
    %v1912 = vunpack.c.l.b16 %v743
    %v1913 = vunpack.c.h.b16 %v743
    %v1914 = vunpack.c.l.b16 %v744
    %v1915 = vunpack.c.h.b16 %v744
    %v1916 = vunpack.c.l.b16 %v745
    %v1917 = vunpack.c.h.b16 %v745
    %v1918 = vunpack.c.l.b16 %v746
    %v1919 = vunpack.c.h.b16 %v746
    %v1920 = vunpack.c.l.b16 %v747
    %v1921 = vunpack.c.h.b16 %v747
    %v1922 = vunpack.c.l.b16 %v748
    %v1923 = vunpack.c.h.b16 %v748
    %v1924 = vunpack.c.l.b16 %v749
    %v1925 = vunpack.c.h.b16 %v749
    %v1926 = vunpack.c.l.b16 %v750
    %v1927 = vunpack.c.h.b16 %v750
    %v1928 = vunpack.c.l.b16 %v751
    %v1929 = vunpack.c.h.b16 %v751
    %v1930 = vunpack.c.l.b16 %v752
    %v1931 = vunpack.c.h.b16 %v752
    %v1932 = vunpack.c.l.b16 %v753
    %v1933 = vunpack.c.h.b16 %v753
    %v1934 = vunpack.c.l.b16 %v754
    %v1935 = vunpack.c.h.b16 %v754
    %v1936 = vunpack.c.l.b16 %v755
    %v1937 = vunpack.c.h.b16 %v755
    %v1938 = vunpack.c.l.b16 %v756
    %v1939 = vunpack.c.h.b16 %v756
    %v1940 = vunpack.c.l.b16 %v757
    %v1941 = vunpack.c.h.b16 %v757
    %v1942 = vunpack.c.l.b16 %v758
    %v1943 = vunpack.c.h.b16 %v758
    %v1944 = vunpack.c.l.b16 %v759
    %v1945 = vunpack.c.h.b16 %v759
    %v1946 = vunpack.c.l.b16 %v760
    %v1947 = vunpack.c.h.b16 %v760
    %v1948 = vunpack.c.l.b16 %v761
    %v1949 = vunpack.c.h.b16 %v761
    %v1950 = vunpack.c.l.b16 %v762
    %v1951 = vunpack.c.h.b16 %v762
    %v1952 = vunpack.c.l.b16 %v763
    %v1953 = vunpack.c.h.b16 %v763
    %v1954 = vunpack.c.l.b16 %v764
    %v1955 = vunpack.c.h.b16 %v764
    %v1956 = vunpack.c.l.b16 %v765
    %v1957 = vunpack.c.h.b16 %v765
    %v1958 = vunpack.c.l.b16 %v766
    %v1959 = vunpack.c.h.b16 %v766
    %v1960 = vunpack.c.l.b16 %v767
    %v1961 = vunpack.c.h.b16 %v767
    %v1962 = vunpack.c.l.b16 %v768
    %v1963 = vunpack.c.h.b16 %v768
    %v1964 = vunpack.c.l.b16 %v769
    %v1965 = vunpack.c.h.b16 %v769
    %v1966 = vunpack.c.l.b16 %v770
    %v1967 = vunpack.c.h.b16 %v770
    %v1968 = vunpack.c.l.b16 %v771
    %v1969 = vunpack.c.h.b16 %v771
    %v1970 = vunpack.c.l.b16 %v772
    %v1971 = vunpack.c.h.b16 %v772
    %v1972 = vunpack.c.l.b16 %v773
    %v1973 = vunpack.c.h.b16 %v773
    %v1974 = vunpack.c.l.b16 %v774
    %v1975 = vunpack.c.h.b16 %v774
    %v1976 = vunpack.c.l.b16 %v775
    %v1977 = vunpack.c.h.b16 %v775
    %v1978 = vunpack.c.l.b16 %v776
    %v1979 = vunpack.c.h.b16 %v776
    %v1980 = vunpack.c.l.b16 %v777
    %v1981 = vunpack.c.h.b16 %v777
    %v1982 = vunpack.c.l.b16 %v778
    %v1983 = vunpack.c.h.b16 %v778
    %v1984 = vunpack.c.l.b16 %v779
    %v1985 = vunpack.c.h.b16 %v779
    %v1986 = vunpack.c.l.b16 %v780
    %v1987 = vunpack.c.h.b16 %v780
    %v1988 = vunpack.c.l.b16 %v781
    %v1989 = vunpack.c.h.b16 %v781
    %v1990 = vunpack.c.l.b16 %v782
    %v1991 = vunpack.c.h.b16 %v782
    %v1992 = vunpack.c.l.b16 %v783
    %v1993 = vunpack.c.h.b16 %v783
    %v1994 = vunpack.c.l.b16 %v784
    %v1995 = vunpack.c.h.b16 %v784
    %v1996 = vunpack.c.l.b16 %v785
    %v1997 = vunpack.c.h.b16 %v785
    %v1998 = vunpack.c.l.b16 %v786
    %v1999 = vunpack.c.h.b16 %v786
    %v2000 = vunpack.c.l.b16 %v787
    %v2001 = vunpack.c.h.b16 %v787
    %v2002 = vunpack.c.l.b16 %v788
    %v2003 = vunpack.c.h.b16 %v788
    %v2004 = vunpack.c.l.b16 %v789
    %v2005 = vunpack.c.h.b16 %v789
    %v2006 = vunpack.c.l.b16 %v790
    %v2007 = vunpack.c.h.b16 %v790
    %v2008 = vunpack.c.l.b16 %v791
    %v2009 = vunpack.c.h.b16 %v791
    %v2010 = vunpack.c.l.b16 %v792
    %v2011 = vunpack.c.h.b16 %v792
    %v2012 = vunpack.c.l.b16 %v793
    %v2013 = vunpack.c.h.b16 %v793
    %v2014 = vunpack.c.l.b16 %v794
    %v2015 = vunpack.c.h.b16 %v794
    %v2016 = vunpack.c.l.b16 %v795
    %v2017 = vunpack.c.h.b16 %v795
    %v2018 = vunpack.c.l.b16 %v796
    %v2019 = vunpack.c.h.b16 %v796
    %v2020 = vunpack.c.l.b16 %v797
    %v2021 = vunpack.c.h.b16 %v797
    %v2022 = vunpack.c.l.b16 %v798
    %v2023 = vunpack.c.h.b16 %v798
    %v2024 = vunpack.c.l.b16 %v799
    %v2025 = vunpack.c.h.b16 %v799
    %v2026 = vunpack.c.l.b16 %v800
    %v2027 = vunpack.c.h.b16 %v800
    %v2028 = vunpack.c.l.b16 %v801
    %v2029 = vunpack.c.h.b16 %v801
    %v2030 = vunpack.c.l.b16 %v802
    %v2031 = vunpack.c.h.b16 %v802
    %v2032 = vunpack.c.l.b16 %v803
    %v2033 = vunpack.c.h.b16 %v803
    %v2034 = vunpack.c.l.b16 %v804
    %v2035 = vunpack.c.h.b16 %v804
    %v2036 = vunpack.c.l.b16 %v805
    %v2037 = vunpack.c.h.b16 %v805
    %v2038 = vunpack.c.l.b16 %v806
    %v2039 = vunpack.c.h.b16 %v806
    %v2040 = vunpack.c.l.b16 %v807
    %v2041 = vunpack.c.h.b16 %v807
    %v2042 = vunpack.c.l.b16 %v808
    %v2043 = vunpack.c.h.b16 %v808
    %v2044 = vunpack.c.l.b16 %v809
    %v2045 = vunpack.c.h.b16 %v809
    %v2046 = vunpack.c.l.b16 %v810
    %v2047 = vunpack.c.h.b16 %v810
    %v2048 = vunpack.c.l.b16 %v811
    %v2049 = vunpack.c.h.b16 %v811
    %v2050 = vunpack.c.l.b16 %v812
    %v2051 = vunpack.c.h.b16 %v812
    %v2052 = vunpack.c.l.b16 %v813
    %v2053 = vunpack.c.h.b16 %v813
    %v2054 = vunpack.c.l.b16 %v814
    %v2055 = vunpack.c.h.b16 %v814
    %v2056 = vunpack.c.l.b16 %v815
    %v2057 = vunpack.c.h.b16 %v815
    %v2058 = vunpack.c.l.b16 %v816
    %v2059 = vunpack.c.h.b16 %v816
    %v2060 = vunpack.c.l.b16 %v817
    %v2061 = vunpack.c.h.b16 %v817
    %v2062 = vunpack.c.l.b16 %v818
    %v2063 = vunpack.c.h.b16 %v818
    %v2064 = vunpack.c.l.b16 %v819
    %v2065 = vunpack.c.h.b16 %v819
    %v2066 = vunpack.c.l.b16 %v820
    %v2067 = vunpack.c.h.b16 %v820
    %v2068 = vunpack.c.l.b16 %v821
    %v2069 = vunpack.c.h.b16 %v821
    %v2070 = vunpack.c.l.b16 %v822
    %v2071 = vunpack.c.h.b16 %v822
    %v2072 = vunpack.c.l.b16 %v823
    %v2073 = vunpack.c.h.b16 %v823
    %v2074 = vunpack.c.l.b16 %v824
    %v2075 = vunpack.c.h.b16 %v824
    %v2076 = vunpack.c.l.b16 %v825
    %v2077 = vunpack.c.h.b16 %v825
    %v2078 = vunpack.c.l.b16 %v826
    %v2079 = vunpack.c.h.b16 %v826
    %v2080 = vunpack.c.l.b16 %v827
    %v2081 = vunpack.c.h.b16 %v827
    %v2082 = vunpack.c.l.b16 %v828
    %v2083 = vunpack.c.h.b16 %v828
    %v2084 = vunpack.c.l.b16 %v829
    %v2085 = vunpack.c.h.b16 %v829
    %v2086 = vunpack.c.l.b16 %v830
    %v2087 = vunpack.c.h.b16 %v830
    %v2088 = vunpack.c.l.b16 %v831
    %v2089 = vunpack.c.h.b16 %v831
    %v2090 = vunpack.c.l.b16 %v832
    %v2091 = vunpack.c.h.b16 %v832
    %v2092 = vunpack.c.l.b16 %v833
    %v2093 = vunpack.c.h.b16 %v833
    %v2094 = vunpack.c.l.b16 %v834
    %v2095 = vunpack.c.h.b16 %v834
    %v2096 = vunpack.c.l.b16 %v835
    %v2097 = vunpack.c.h.b16 %v835
    %v2098 = vunpack.c.l.b16 %v836
    %v2099 = vunpack.c.h.b16 %v836
    %v2100 = vunpack.c.l.b16 %v837
    %v2101 = vunpack.c.h.b16 %v837
    %v2102 = vunpack.c.l.b16 %v838
    %v2103 = vunpack.c.h.b16 %v838
    %v2104 = vunpack.c.l.b16 %v839
    %v2105 = vunpack.c.h.b16 %v839
    %v2106 = vunpack.c.l.b16 %v840
    %v2107 = vunpack.c.h.b16 %v840
    %v2108 = vunpack.c.l.b16 %v841
    %v2109 = vunpack.c.h.b16 %v841
    %v2110 = vunpack.c.l.b16 %v842
    %v2111 = vunpack.c.h.b16 %v842
    %v2112 = vunpack.c.l.b16 %v843
    %v2113 = vunpack.c.h.b16 %v843
    %v2114 = vunpack.c.l.b16 %v844
    %v2115 = vunpack.c.h.b16 %v844
    %v2116 = vunpack.c.l.b16 %v845
    %v2117 = vunpack.c.h.b16 %v845
    %v2118 = vunpack.c.l.b16 %v846
    %v2119 = vunpack.c.h.b16 %v846
    %v2120 = vunpack.c.l.b16 %v847
    %v2121 = vunpack.c.h.b16 %v847
    %v2122 = vunpack.c.l.b16 %v848
    %v2123 = vunpack.c.h.b16 %v848
    %v2124 = vunpack.c.l.b16 %v849
    %v2125 = vunpack.c.h.b16 %v849
    %v2126 = vunpack.c.l.b16 %v850
    %v2127 = vunpack.c.h.b16 %v850
    %v2128 = vunpack.c.l.b16 %v851
    %v2129 = vunpack.c.h.b16 %v851
    %v2130 = vunpack.c.l.b16 %v852
    %v2131 = vunpack.c.h.b16 %v852
    %v2132 = vunpack.c.l.b16 %v853
    %v2133 = vunpack.c.h.b16 %v853
    %v2134 = vunpack.c.l.b16 %v854
    %v2135 = vunpack.c.h.b16 %v854
    %v2136 = vunpack.c.l.b16 %v855
    %v2137 = vunpack.c.h.b16 %v855
    %v2138 = vunpack.c.l.b16 %v856
    %v2139 = vunpack.c.h.b16 %v856
    %v2140 = vunpack.c.l.b16 %v857
    %v2141 = vunpack.c.h.b16 %v857
    %v2142 = vunpack.c.l.b16 %v858
    %v2143 = vunpack.c.h.b16 %v858
    %v2144 = vunpack.c.l.b16 %v859
    %v2145 = vunpack.c.h.b16 %v859
    %v2146 = vunpack.c.l.b16 %v860
    %v2147 = vunpack.c.h.b16 %v860
    %v2148 = vunpack.c.l.b16 %v861
    %v2149 = vunpack.c.h.b16 %v861
    %v2150 = vunpack.c.l.b16 %v862
    %v2151 = vunpack.c.h.b16 %v862
    %v2152 = vunpack.c.l.b16 %v863
    %v2153 = vunpack.c.h.b16 %v863
    %v2154 = vunpack.c.l.b16 %v864
    %v2155 = vunpack.c.h.b16 %v864
    %v2156 = vunpack.c.l.b16 %v865
    %v2157 = vunpack.c.h.b16 %v865
    %v2158 = vunpack.c.l.b16 %v866
    %v2159 = vunpack.c.h.b16 %v866
    %v2160 = vunpack.c.l.b16 %v867
    %v2161 = vunpack.c.h.b16 %v867
    %v2162 = vunpack.c.l.b16 %v868
    %v2163 = vunpack.c.h.b16 %v868
    %v2164 = vunpack.c.l.b16 %v869
    %v2165 = vunpack.c.h.b16 %v869
    %v2166 = vunpack.c.l.b16 %v870
    %v2167 = vunpack.c.h.b16 %v870
    %v2168 = vunpack.c.l.b16 %v871
    %v2169 = vunpack.c.h.b16 %v871
    %v2170 = vunpack.c.l.b16 %v872
    %v2171 = vunpack.c.h.b16 %v872
    %v2172 = vunpack.c.l.b16 %v873
    %v2173 = vunpack.c.h.b16 %v873
    %v2174 = vunpack.c.l.b16 %v874
    %v2175 = vunpack.c.h.b16 %v874
    %v2176 = vunpack.c.l.b16 %v875
    %v2177 = vunpack.c.h.b16 %v875
    %v2178 = vunpack.c.l.b16 %v876
    %v2179 = vunpack.c.h.b16 %v876
    %v2180 = vunpack.c.l.b16 %v877
    %v2181 = vunpack.c.h.b16 %v877
    %v2182 = vunpack.c.l.b16 %v878
    %v2183 = vunpack.c.h.b16 %v878
    %v2184 = vunpack.c.l.b16 %v879
    %v2185 = vunpack.c.h.b16 %v879
    %v2186 = vunpack.c.l.b16 %v880
    %v2187 = vunpack.c.h.b16 %v880
    %v2188 = vunpack.c.l.b16 %v881
    %v2189 = vunpack.c.h.b16 %v881
    %v2190 = vunpack.c.l.b16 %v882
    %v2191 = vunpack.c.h.b16 %v882
    %v2192 = vunpack.c.l.b16 %v883
    %v2193 = vunpack.c.h.b16 %v883
    %v2194 = vunpack.c.l.b16 %v884
    %v2195 = vunpack.c.h.b16 %v884
    %v2196 = vunpack.c.l.b16 %v885
    %v2197 = vunpack.c.h.b16 %v885
    %v2198 = vunpack.c.l.b16 %v886
    %v2199 = vunpack.c.h.b16 %v886
    %v2200 = vunpack.c.l.b16 %v887
    %v2201 = vunpack.c.h.b16 %v887
    %v2202 = vunpack.c.l.b16 %v888
    %v2203 = vunpack.c.h.b16 %v888
    %v2204 = vunpack.c.l.b16 %v889
    %v2205 = vunpack.c.h.b16 %v889
    %v2206 = vunpack.c.l.b16 %v890
    %v2207 = vunpack.c.h.b16 %v890
    %v2208 = vunpack.c.l.b16 %v891
    %v2209 = vunpack.c.h.b16 %v891
    %v2210 = vunpack.c.l.b16 %v892
    %v2211 = vunpack.c.h.b16 %v892
    %v2212 = vunpack.c.l.b16 %v893
    %v2213 = vunpack.c.h.b16 %v893
    %v2214 = vunpack.c.l.b16 %v894
    %v2215 = vunpack.c.h.b16 %v894
    %v2216 = vunpack.c.l.b16 %v895
    %v2217 = vunpack.c.h.b16 %v895
    %v2218 = vunpack.c.l.b16 %v896
    %v2219 = vunpack.c.h.b16 %v896
    %v2220 = vunpack.c.l.b16 %v897
    %v2221 = vunpack.c.h.b16 %v897
    %v2222 = vunpack.c.l.b16 %v898
    %v2223 = vunpack.c.h.b16 %v898
    %v2224 = vunpack.c.l.b16 %v899
    %v2225 = vunpack.c.h.b16 %v899
    %v2226 = vunpack.c.l.b16 %v900
    %v2227 = vunpack.c.h.b16 %v900
    %v2228 = vunpack.c.l.b16 %v901
    %v2229 = vunpack.c.h.b16 %v901
    %v2230 = vunpack.c.l.b16 %v902
    %v2231 = vunpack.c.h.b16 %v902
    %v2232 = vunpack.c.l.b16 %v903
    %v2233 = vunpack.c.h.b16 %v903
    %v2234 = vunpack.c.l.b16 %v904
    %v2235 = vunpack.c.h.b16 %v904
    %v2236 = vunpack.c.l.b16 %v905
    %v2237 = vunpack.c.h.b16 %v905
    %v2238 = vunpack.c.l.b16 %v906
    %v2239 = vunpack.c.h.b16 %v906
    %v2240 = vunpack.c.l.b16 %v907
    %v2241 = vunpack.c.h.b16 %v907
    %v2242 = vunpack.c.l.b16 %v908
    %v2243 = vunpack.c.h.b16 %v908
    %v2244 = vunpack.c.l.b16 %v909
    %v2245 = vunpack.c.h.b16 %v909
    %v2246 = vunpack.c.l.b16 %v910
    %v2247 = vunpack.c.h.b16 %v910
    %v2248 = vunpack.c.l.b16 %v911
    %v2249 = vunpack.c.h.b16 %v911
    %v2250 = vunpack.c.l.b16 %v912
    %v2251 = vunpack.c.h.b16 %v912
    %v2252 = vunpack.c.l.b16 %v913
    %v2253 = vunpack.c.h.b16 %v913
    %v2254 = vunpack.c.l.b16 %v914
    %v2255 = vunpack.c.h.b16 %v914
    %v2256 = vunpack.c.l.b16 %v915
    %v2257 = vunpack.c.h.b16 %v915
    %v2258 = vunpack.c.l.b16 %v916
    %v2259 = vunpack.c.h.b16 %v916
    %v2260 = vunpack.c.l.b16 %v917
    %v2261 = vunpack.c.h.b16 %v917
    %v2262 = vunpack.c.l.b16 %v918
    %v2263 = vunpack.c.h.b16 %v918
    %v2264 = vunpack.c.l.b16 %v919
    %v2265 = vunpack.c.h.b16 %v919
    %v2266 = vunpack.c.l.b16 %v920
    %v2267 = vunpack.c.h.b16 %v920
    %v2268 = vunpack.c.l.b16 %v921
    %v2269 = vunpack.c.h.b16 %v921
    %v2270 = vunpack.c.l.b16 %v922
    %v2271 = vunpack.c.h.b16 %v922
    %v2272 = vunpack.c.l.b16 %v923
    %v2273 = vunpack.c.h.b16 %v923
    %v2274 = vunpack.c.l.b16 %v924
    %v2275 = vunpack.c.h.b16 %v924
    %v2276 = vunpack.c.l.b16 %v925
    %v2277 = vunpack.c.h.b16 %v925
    %v2278 = vunpack.c.l.b16 %v926
    %v2279 = vunpack.c.h.b16 %v926
    %v2280 = vunpack.c.l.b16 %v927
    %v2281 = vunpack.c.h.b16 %v927
    %v2282 = vunpack.c.l.b16 %v928
    %v2283 = vunpack.c.h.b16 %v928
    %v2284 = vunpack.c.l.b16 %v929
    %v2285 = vunpack.c.h.b16 %v929
    %v2286 = vunpack.c.l.b16 %v930
    %v2287 = vunpack.c.h.b16 %v930
    %v2288 = vunpack.c.l.b16 %v931
    %v2289 = vunpack.c.h.b16 %v931
    %v2290 = vunpack.c.l.b16 %v932
    %v2291 = vunpack.c.h.b16 %v932
    %v2292 = vunpack.c.l.b16 %v933
    %v2293 = vunpack.c.h.b16 %v933
    %v2294 = vunpack.c.l.b16 %v934
    %v2295 = vunpack.c.h.b16 %v934
    %v2296 = vunpack.c.l.b16 %v935
    %v2297 = vunpack.c.h.b16 %v935
    %v2298 = vunpack.c.l.b16 %v936
    %v2299 = vunpack.c.h.b16 %v936
    %v2300 = vunpack.c.l.b16 %v937
    %v2301 = vunpack.c.h.b16 %v937
    %v2302 = vunpack.c.l.b16 %v938
    %v2303 = vunpack.c.h.b16 %v938
    %v2304 = vunpack.c.l.b16 %v939
    %v2305 = vunpack.c.h.b16 %v939
    %v2306 = vunpack.c.l.b16 %v940
    %v2307 = vunpack.c.h.b16 %v940
    %v2308 = vunpack.c.l.b16 %v941
    %v2309 = vunpack.c.h.b16 %v941
    %v2310 = vunpack.c.l.b16 %v942
    %v2311 = vunpack.c.h.b16 %v942
    %v2312 = vunpack.c.l.b16 %v943
    %v2313 = vunpack.c.h.b16 %v943
    %v2314 = vunpack.c.l.b16 %v944
    %v2315 = vunpack.c.h.b16 %v944
    %v2316 = vunpack.c.l.b16 %v945
    %v2317 = vunpack.c.h.b16 %v945
    %v2318 = vunpack.c.l.b16 %v946
    %v2319 = vunpack.c.h.b16 %v946
    %v2320 = vunpack.c.l.b16 %v947
    %v2321 = vunpack.c.h.b16 %v947
    %v2322 = vunpack.c.l.b16 %v948
    %v2323 = vunpack.c.h.b16 %v948
    %v2324 = vunpack.c.l.b16 %v949
    %v2325 = vunpack.c.h.b16 %v949
    %v2326 = vunpack.c.l.b16 %v950
    %v2327 = vunpack.c.h.b16 %v950
    %v2328 = vunpack.c.l.b16 %v951
    %v2329 = vunpack.c.h.b16 %v951
    %v2330 = vunpack.c.l.b16 %v952
    %v2331 = vunpack.c.h.b16 %v952
    %v2332 = vunpack.c.l.b16 %v953
    %v2333 = vunpack.c.h.b16 %v953
    %v2334 = vunpack.c.l.b16 %v954
    %v2335 = vunpack.c.h.b16 %v954
    %v2336 = vunpack.c.l.b16 %v955
    %v2337 = vunpack.c.h.b16 %v955
    %v2338 = vunpack.c.l.b16 %v956
    %v2339 = vunpack.c.h.b16 %v956
    %v2340 = vunpack.c.l.b16 %v957
    %v2341 = vunpack.c.h.b16 %v957
    %v2342 = vunpack.c.l.b16 %v958
    %v2343 = vunpack.c.h.b16 %v958
    %v2344 = vunpack.c.l.b16 %v959
    %v2345 = vunpack.c.h.b16 %v959
    %v2346 = vunpack.c.l.b16 %v960
    %v2347 = vunpack.c.h.b16 %v960
    %v2348 = vunpack.c.l.b16 %v961
    %v2349 = vunpack.c.h.b16 %v961
    %v2350 = vunpack.c.l.b16 %v962
    %v2351 = vunpack.c.h.b16 %v962
    %v2352 = vunpack.c.l.b16 %v963
    %v2353 = vunpack.c.h.b16 %v963
    %v2354 = vunpack.c.l.b16 %v964
    %v2355 = vunpack.c.h.b16 %v964
    %v2356 = vunpack.c.l.b16 %v965
    %v2357 = vunpack.c.h.b16 %v965
    %v2358 = vunpack.c.l.b16 %v966
    %v2359 = vunpack.c.h.b16 %v966
    %v2360 = vunpack.c.l.b16 %v967
    %v2361 = vunpack.c.h.b16 %v967
    %v2362 = vunpack.c.l.b16 %v968
    %v2363 = vunpack.c.h.b16 %v968
    %v2364 = vunpack.c.l.b16 %v969
    %v2365 = vunpack.c.h.b16 %v969
    %v2366 = vunpack.c.l.b16 %v970
    %v2367 = vunpack.c.h.b16 %v970
    %v2368 = vunpack.c.l.b16 %v971
    %v2369 = vunpack.c.h.b16 %v971
    %v2370 = vunpack.c.l.b16 %v972
    %v2371 = vunpack.c.h.b16 %v972
    %v2372 = vunpack.c.l.b16 %v973
    %v2373 = vunpack.c.h.b16 %v973
    %v2374 = vunpack.c.l.b16 %v974
    %v2375 = vunpack.c.h.b16 %v974
    %v2376 = vunpack.c.l.b16 %v975
    %v2377 = vunpack.c.h.b16 %v975
    %v2378 = vunpack.c.l.b16 %v976
    %v2379 = vunpack.c.h.b16 %v976
    %v2380 = vunpack.c.l.b16 %v977
    %v2381 = vunpack.c.h.b16 %v977
    %v2382 = vunpack.c.l.b16 %v978
    %v2383 = vunpack.c.h.b16 %v978
    %v2384 = vunpack.c.l.b16 %v979
    %v2385 = vunpack.c.h.b16 %v979
    %v2386 = vunpack.c.l.b16 %v980
    %v2387 = vunpack.c.h.b16 %v980
    %v2388 = vunpack.c.l.b16 %v981
    %v2389 = vunpack.c.h.b16 %v981
    %v2390 = vunpack.c.l.b16 %v982
    %v2391 = vunpack.c.h.b16 %v982
    %v2392 = vunpack.c.l.b16 %v983
    %v2393 = vunpack.c.h.b16 %v983
    %v2394 = vunpack.c.l.b16 %v984
    %v2395 = vunpack.c.h.b16 %v984
    %v2396 = vunpack.c.l.b16 %v985
    %v2397 = vunpack.c.h.b16 %v985
    %v2398 = vunpack.c.l.b16 %v986
    %v2399 = vunpack.c.h.b16 %v986
    %v2400 = vunpack.c.l.b16 %v987
    %v2401 = vunpack.c.h.b16 %v987
    %v2402 = vunpack.c.l.b16 %v988
    %v2403 = vunpack.c.h.b16 %v988
    %v2404 = vunpack.c.l.b16 %v989
    %v2405 = vunpack.c.h.b16 %v989
    %v2406 = vunpack.c.l.b16 %v990
    %v2407 = vunpack.c.h.b16 %v990
    %v2408 = vunpack.c.l.b16 %v991
    %v2409 = vunpack.c.h.b16 %v991
    %v2410 = vunpack.c.l.b16 %v992
    %v2411 = vunpack.c.h.b16 %v992
    %v2412 = vunpack.c.l.b16 %v993
    %v2413 = vunpack.c.h.b16 %v993
    %v2414 = vunpack.c.l.b16 %v994
    %v2415 = vunpack.c.h.b16 %v994
    %v2416 = vunpack.c.l.b16 %v995
    %v2417 = vunpack.c.h.b16 %v995
    %v2418 = vunpack.c.l.b16 %v996
    %v2419 = vunpack.c.h.b16 %v996
    %v2420 = vunpack.c.l.b16 %v997
    %v2421 = vunpack.c.h.b16 %v997
    %v2422 = vunpack.c.l.b16 %v998
    %v2423 = vunpack.c.h.b16 %v998
    %v2424 = vunpack.c.l.b16 %v999
    %v2425 = vunpack.c.h.b16 %v999
    %v2426 = vunpack.c.l.b16 %v1000
    %v2427 = vunpack.c.h.b16 %v1000
    %v2428 = vunpack.c.l.b16 %v1001
    %v2429 = vunpack.c.h.b16 %v1001
    %v2430 = vunpack.c.l.b16 %v1002
    %v2431 = vunpack.c.h.b16 %v1002
    %v2432 = vunpack.c.l.b16 %v1003
    %v2433 = vunpack.c.h.b16 %v1003
    %v2434 = vunpack.c.l.b16 %v1004
    %v2435 = vunpack.c.h.b16 %v1004
    %v2436 = vunpack.c.l.b16 %v1005
    %v2437 = vunpack.c.h.b16 %v1005
    %v2438 = vunpack.c.l.b16 %v1006
    %v2439 = vunpack.c.h.b16 %v1006
    %v2440 = vunpack.c.l.b16 %v1007
    %v2441 = vunpack.c.h.b16 %v1007
    %v2442 = vunpack.c.l.b16 %v1008
    %v2443 = vunpack.c.h.b16 %v1008
    %v2444 = vunpack.c.l.b16 %v1009
    %v2445 = vunpack.c.h.b16 %v1009
    %v2446 = vunpack.c.l.b16 %v1010
    %v2447 = vunpack.c.h.b16 %v1010
    %v2448 = vunpack.c.l.b16 %v1011
    %v2449 = vunpack.c.h.b16 %v1011
    %v2450 = vunpack.c.l.b16 %v1012
    %v2451 = vunpack.c.h.b16 %v1012
    %v2452 = vunpack.c.l.b16 %v1013
    %v2453 = vunpack.c.h.b16 %v1013
    %v2454 = vunpack.c.l.b16 %v1014
    %v2455 = vunpack.c.h.b16 %v1014
    %v2456 = vunpack.c.l.b16 %v1015
    %v2457 = vunpack.c.h.b16 %v1015
    %v2458 = vunpack.c.l.b16 %v1016
    %v2459 = vunpack.c.h.b16 %v1016
    %v2460 = vunpack.c.l.b16 %v1017
    %v2461 = vunpack.c.h.b16 %v1017
    %v2462 = vunpack.c.l.b16 %v1018
    %v2463 = vunpack.c.h.b16 %v1018
    %v2464 = vunpack.c.l.b16 %v1019
    %v2465 = vunpack.c.h.b16 %v1019
    %v2466 = vunpack.c.l.b16 %v1020
    %v2467 = vunpack.c.h.b16 %v1020
    %v2468 = vunpack.c.l.b16 %v1021
    %v2469 = vunpack.c.h.b16 %v1021
    %v2470 = vunpack.c.l.b16 %v1022
    %v2471 = vunpack.c.h.b16 %v1022
    %v2472 = vunpack.c.l.b16 %v1023
    %v2473 = vunpack.c.h.b16 %v1023
    %v2474 = vunpack.c.l.b16 %v1024
    %v2475 = vunpack.c.h.b16 %v1024
    %v2476 = vunpack.c.l.b16 %v1025
    %v2477 = vunpack.c.h.b16 %v1025
    %v2478 = vunpack.c.l.b16 %v1026
    %v2479 = vunpack.c.h.b16 %v1026
    %v2480 = vunpack.c.l.b16 %v1027
    %v2481 = vunpack.c.h.b16 %v1027
    %v2482 = vunpack.c.l.b16 %v1028
    %v2483 = vunpack.c.h.b16 %v1028
    %v2484 = vunpack.c.l.b16 %v1029
    %v2485 = vunpack.c.h.b16 %v1029
    %v2486 = vunpack.c.l.b16 %v1030
    %v2487 = vunpack.c.h.b16 %v1030
    %v2488 = vunpack.c.l.b16 %v1031
    %v2489 = vunpack.c.h.b16 %v1031
    %v2490 = vunpack.c.l.b16 %v1032
    %v2491 = vunpack.c.h.b16 %v1032
    %v2492 = vunpack.c.l.b16 %v1033
    %v2493 = vunpack.c.h.b16 %v1033
    %v2494 = vunpack.c.l.b16 %v1034
    %v2495 = vunpack.c.h.b16 %v1034
    %v2496 = vunpack.c.l.b16 %v1035
    %v2497 = vunpack.c.h.b16 %v1035
    %v2498 = vunpack.c.l.b16 %v1036
    %v2499 = vunpack.c.h.b16 %v1036
    %v2500 = vunpack.c.l.b16 %v1037
    %v2501 = vunpack.c.h.b16 %v1037
    %v2502 = vunpack.c.l.b16 %v1038
    %v2503 = vunpack.c.h.b16 %v1038
    %v2504 = vunpack.c.l.b16 %v1039
    %v2505 = vunpack.c.h.b16 %v1039
    %v2506 = vunpack.c.l.b16 %v1040
    %v2507 = vunpack.c.h.b16 %v1040
    %v2508 = vunpack.c.l.b16 %v1041
    %v2509 = vunpack.c.h.b16 %v1041
    %v2510 = vunpack.c.l.b16 %v1042
    %v2511 = vunpack.c.h.b16 %v1042
    %v2512 = vunpack.c.l.b16 %v1043
    %v2513 = vunpack.c.h.b16 %v1043
    %v2514 = vunpack.c.l.b16 %v1044
    %v2515 = vunpack.c.h.b16 %v1044
    %v2516 = vunpack.c.l.b16 %v1045
    %v2517 = vunpack.c.h.b16 %v1045
    %v2518 = vunpack.c.l.b16 %v1046
    %v2519 = vunpack.c.h.b16 %v1046
    %v2520 = vunpack.c.l.b16 %v1047
    %v2521 = vunpack.c.h.b16 %v1047
    %v2522 = vunpack.c.l.b16 %v1048
    %v2523 = vunpack.c.h.b16 %v1048
    %v2524 = vunpack.c.l.b16 %v1049
    %v2525 = vunpack.c.h.b16 %v1049
    %v2526 = vunpack.c.l.b16 %v1050
    %v2527 = vunpack.c.h.b16 %v1050
    %v2528 = vunpack.c.l.b16 %v1051
    %v2529 = vunpack.c.h.b16 %v1051
    %v2530 = vunpack.c.l.b16 %v1052
    %v2531 = vunpack.c.h.b16 %v1052
    %v2532 = vunpack.c.l.b16 %v1053
    %v2533 = vunpack.c.h.b16 %v1053
    %v2534 = vunpack.c.l.b16 %v1054
    %v2535 = vunpack.c.h.b16 %v1054
    %v2536 = vunpack.c.l.b16 %v1055
    %v2537 = vunpack.c.h.b16 %v1055
    %v2538 = vunpack.c.l.b16 %v1056
    %v2539 = vunpack.c.h.b16 %v1056
    %v2540 = vunpack.c.l.b16 %v1057
    %v2541 = vunpack.c.h.b16 %v1057
    %v2542 = vunpack.c.l.b16 %v1058
    %v2543 = vunpack.c.h.b16 %v1058
    %v2544 = vunpack.c.l.b16 %v1059
    %v2545 = vunpack.c.h.b16 %v1059
    %v2546 = vunpack.c.l.b16 %v1060
    %v2547 = vunpack.c.h.b16 %v1060
    %v2548 = vunpack.c.l.b16 %v1061
    %v2549 = vunpack.c.h.b16 %v1061
    %v2550 = vunpack.c.l.b16 %v1062
    %v2551 = vunpack.c.h.b16 %v1062
    %v2552 = vunpack.c.l.b16 %v1063
    %v2553 = vunpack.c.h.b16 %v1063
    %v2554 = vunpack.c.l.b16 %v1064
    %v2555 = vunpack.c.h.b16 %v1064
    %v2556 = vunpack.c.l.b16 %v1065
    %v2557 = vunpack.c.h.b16 %v1065
    %v2558 = vunpack.c.l.b16 %v1066
    %v2559 = vunpack.c.h.b16 %v1066
    %v2560 = vunpack.c.l.b16 %v1067
    %v2561 = vunpack.c.h.b16 %v1067
    %v2562 = vunpack.c.l.b16 %v1068
    %v2563 = vunpack.c.h.b16 %v1068
    %v2564 = vunpack.c.l.b16 %v1069
    %v2565 = vunpack.c.h.b16 %v1069
    %v2566 = vunpack.c.l.b16 %v1070
    %v2567 = vunpack.c.h.b16 %v1070
    %v2568 = vunpack.c.l.b16 %v1071
    %v2569 = vunpack.c.h.b16 %v1071
    %v2570 = vunpack.c.l.b16 %v1072
    %v2571 = vunpack.c.h.b16 %v1072
    %v2572 = vunpack.c.l.b16 %v1073
    %v2573 = vunpack.c.h.b16 %v1073
    %v2574 = vunpack.c.l.b16 %v1074
    %v2575 = vunpack.c.h.b16 %v1074
    %v2576 = vunpack.c.l.b16 %v1075
    %v2577 = vunpack.c.h.b16 %v1075
    %v2578 = vunpack.c.l.b16 %v1076
    %v2579 = vunpack.c.h.b16 %v1076
    %v2580 = vunpack.c.l.b16 %v1077
    %v2581 = vunpack.c.h.b16 %v1077
    %v2582 = vunpack.c.l.b16 %v1078
    %v2583 = vunpack.c.h.b16 %v1078
    %v2584 = vunpack.c.l.b16 %v1079
    %v2585 = vunpack.c.h.b16 %v1079
    %v2586 = vunpack.c.l.b16 %v1080
    %v2587 = vunpack.c.h.b16 %v1080
    %v2588 = vunpack.c.l.b16 %v1081
    %v2589 = vunpack.c.h.b16 %v1081
    %v2590 = vunpack.c.l.b16 %v1082
    %v2591 = vunpack.c.h.b16 %v1082
    %v2592 = vunpack.c.l.b16 %v1083
    %v2593 = vunpack.c.h.b16 %v1083
    %v2594 = vunpack.c.l.b16 %v1084
    %v2595 = vunpack.c.h.b16 %v1084
    %v2596 = vunpack.c.l.b16 %v1085
    %v2597 = vunpack.c.h.b16 %v1085
    %v2598 = vunpack.c.l.b16 %v1086
    %v2599 = vunpack.c.h.b16 %v1086
    %v2600 = vunpack.c.l.b16 %v1087
    %v2601 = vunpack.c.h.b16 %v1087
    %v2602 = vunpack.c.l.b16 %v1088
    %v2603 = vunpack.c.h.b16 %v1088
    %v2604 = vunpack.c.l.b16 %v1089
    %v2605 = vunpack.c.h.b16 %v1089
    %v2606 = vunpack.c.l.b16 %v1090
    %v2607 = vunpack.c.h.b16 %v1090
    %v2608 = vunpack.c.l.b16 %v1091
    %v2609 = vunpack.c.h.b16 %v1091
    %v2610 = vunpack.c.l.b16 %v1092
    %v2611 = vunpack.c.h.b16 %v1092
    %v2612 = vunpack.c.l.b16 %v1093
    %v2613 = vunpack.c.h.b16 %v1093
    %v2614 = vunpack.c.l.b16 %v1094
    %v2615 = vunpack.c.h.b16 %v1094
    %v2616 = vunpack.c.l.b16 %v1095
    %v2617 = vunpack.c.h.b16 %v1095
    %v2618 = vunpack.c.l.b16 %v1096
    %v2619 = vunpack.c.h.b16 %v1096
    %v2620 = vunpack.c.l.b16 %v1097
    %v2621 = vunpack.c.h.b16 %v1097
    %v2622 = vunpack.c.l.b16 %v1098
    %v2623 = vunpack.c.h.b16 %v1098
    %v2624 = vunpack.c.l.b16 %v1099
    %v2625 = vunpack.c.h.b16 %v1099
    %v2626 = vunpack.c.l.b16 %v1100
    %v2627 = vunpack.c.h.b16 %v1100
    %v2628 = vunpack.c.l.b16 %v1101
    %v2629 = vunpack.c.h.b16 %v1101
    %v2630 = vunpack.c.l.b16 %v1102
    %v2631 = vunpack.c.h.b16 %v1102
    %v2632 = vunpack.c.l.b16 %v1103
    %v2633 = vunpack.c.h.b16 %v1103
    %v2634 = vunpack.c.l.b16 %v1104
    %v2635 = vunpack.c.h.b16 %v1104
    %v2636 = vunpack.c.l.b16 %v1105
    %v2637 = vunpack.c.h.b16 %v1105
    %v2638 = vunpack.c.l.b16 %v1106
    %v2639 = vunpack.c.h.b16 %v1106
    %v2640 = vunpack.c.l.b16 %v1107
    %v2641 = vunpack.c.h.b16 %v1107
    %v2642 = vunpack.c.l.b16 %v1108
    %v2643 = vunpack.c.h.b16 %v1108
    %v2644 = vunpack.c.l.b16 %v1109
    %v2645 = vunpack.c.h.b16 %v1109
    %v2646 = vunpack.c.l.b16 %v1110
    %v2647 = vunpack.c.h.b16 %v1110
    %v2648 = vunpack.c.l.b16 %v1111
    %v2649 = vunpack.c.h.b16 %v1111
    %v2650 = vunpack.c.l.b16 %v1112
    %v2651 = vunpack.c.h.b16 %v1112
    %v2652 = vunpack.c.l.b16 %v1113
    %v2653 = vunpack.c.h.b16 %v1113
    %v2654 = vunpack.c.l.b16 %v1114
    %v2655 = vunpack.c.h.b16 %v1114
    %v2656 = vunpack.c.l.b16 %v1115
    %v2657 = vunpack.c.h.b16 %v1115
    %v2658 = vunpack.c.l.b16 %v1116
    %v2659 = vunpack.c.h.b16 %v1116
    %v2660 = vunpack.c.l.b16 %v1117
    %v2661 = vunpack.c.h.b16 %v1117
    %v2662 = vunpack.c.l.b16 %v1118
    %v2663 = vunpack.c.h.b16 %v1118
    %v2664 = vunpack.c.l.b16 %v1119
    %v2665 = vunpack.c.h.b16 %v1119
    %v2666 = vpack.c.b16 %v1646, %v1642
    %v2667 = vpack.c.b16 %v1647, %v1643
    %v2668 = vpack.c.b16 %v1648, %v1644
    %v2669 = vpack.c.b16 %v1649, %v1645
    %v2670 = vpack.c.b16 %v1654, %v1650
    %v2671 = vpack.c.b16 %v1655, %v1651
    %v2672 = vpack.c.b16 %v1656, %v1652
    %v2673 = vpack.c.b16 %v1657, %v1653
    %v2674 = vpack.c.b16 %v1662, %v1658
    %v2675 = vpack.c.b16 %v1663, %v1659
    %v2676 = vpack.c.b16 %v1664, %v1660
    %v2677 = vpack.c.b16 %v1665, %v1661
    %v2678 = vpack.c.b16 %v1670, %v1666
    %v2679 = vpack.c.b16 %v1671, %v1667
    %v2680 = vpack.c.b16 %v1672, %v1668
    %v2681 = vpack.c.b16 %v1673, %v1669
    %v2682 = vpack.c.b16 %v1678, %v1674
    %v2683 = vpack.c.b16 %v1679, %v1675
    %v2684 = vpack.c.b16 %v1680, %v1676
    %v2685 = vpack.c.b16 %v1681, %v1677
    %v2686 = vpack.c.b16 %v1686, %v1682
    %v2687 = vpack.c.b16 %v1687, %v1683
    %v2688 = vpack.c.b16 %v1688, %v1684
    %v2689 = vpack.c.b16 %v1689, %v1685
    %v2690 = vpack.c.b16 %v1694, %v1690
    %v2691 = vpack.c.b16 %v1695, %v1691
    %v2692 = vpack.c.b16 %v1696, %v1692
    %v2693 = vpack.c.b16 %v1697, %v1693
    %v2694 = vpack.c.b16 %v1702, %v1698
    %v2695 = vpack.c.b16 %v1703, %v1699
    %v2696 = vpack.c.b16 %v1704, %v1700
    %v2697 = vpack.c.b16 %v1705, %v1701
    %v2698 = vpack.c.b16 %v1710, %v1706
    %v2699 = vpack.c.b16 %v1711, %v1707
    %v2700 = vpack.c.b16 %v1712, %v1708
    %v2701 = vpack.c.b16 %v1713, %v1709
    %v2702 = vpack.c.b16 %v1718, %v1714
    %v2703 = vpack.c.b16 %v1719, %v1715
    %v2704 = vpack.c.b16 %v1720, %v1716
    %v2705 = vpack.c.b16 %v1721, %v1717
    %v2706 = vpack.c.b16 %v1726, %v1722
    %v2707 = vpack.c.b16 %v1727, %v1723
    %v2708 = vpack.c.b16 %v1728, %v1724
    %v2709 = vpack.c.b16 %v1729, %v1725
    %v2710 = vpack.c.b16 %v1734, %v1730
    %v2711 = vpack.c.b16 %v1735, %v1731
    %v2712 = vpack.c.b16 %v1736, %v1732
    %v2713 = vpack.c.b16 %v1737, %v1733
    %v2714 = vpack.c.b16 %v1742, %v1738
    %v2715 = vpack.c.b16 %v1743, %v1739
    %v2716 = vpack.c.b16 %v1744, %v1740
    %v2717 = vpack.c.b16 %v1745, %v1741
    %v2718 = vpack.c.b16 %v1750, %v1746
    %v2719 = vpack.c.b16 %v1751, %v1747
    %v2720 = vpack.c.b16 %v1752, %v1748
    %v2721 = vpack.c.b16 %v1753, %v1749
    %v2722 = vpack.c.b16 %v1758, %v1754
    %v2723 = vpack.c.b16 %v1759, %v1755
    %v2724 = vpack.c.b16 %v1760, %v1756
    %v2725 = vpack.c.b16 %v1761, %v1757
    %v2726 = vpack.c.b16 %v1766, %v1762
    %v2727 = vpack.c.b16 %v1767, %v1763
    %v2728 = vpack.c.b16 %v1768, %v1764
    %v2729 = vpack.c.b16 %v1769, %v1765
    %v2730 = vpack.c.b16 %v1774, %v1770
    %v2731 = vpack.c.b16 %v1775, %v1771
    %v2732 = vpack.c.b16 %v1776, %v1772
    %v2733 = vpack.c.b16 %v1777, %v1773
    %v2734 = vpack.c.b16 %v1782, %v1778
    %v2735 = vpack.c.b16 %v1783, %v1779
    %v2736 = vpack.c.b16 %v1784, %v1780
    %v2737 = vpack.c.b16 %v1785, %v1781
    %v2738 = vpack.c.b16 %v1790, %v1786
    %v2739 = vpack.c.b16 %v1791, %v1787
    %v2740 = vpack.c.b16 %v1792, %v1788
    %v2741 = vpack.c.b16 %v1793, %v1789
    %v2742 = vpack.c.b16 %v1798, %v1794
    %v2743 = vpack.c.b16 %v1799, %v1795
    %v2744 = vpack.c.b16 %v1800, %v1796
    %v2745 = vpack.c.b16 %v1801, %v1797
    %v2746 = vpack.c.b16 %v1806, %v1802
    %v2747 = vpack.c.b16 %v1807, %v1803
    %v2748 = vpack.c.b16 %v1808, %v1804
    %v2749 = vpack.c.b16 %v1809, %v1805
    %v2750 = vpack.c.b16 %v1814, %v1810
    %v2751 = vpack.c.b16 %v1815, %v1811
    %v2752 = vpack.c.b16 %v1816, %v1812
    %v2753 = vpack.c.b16 %v1817, %v1813
    %v2754 = vpack.c.b16 %v1822, %v1818
    %v2755 = vpack.c.b16 %v1823, %v1819
    %v2756 = vpack.c.b16 %v1824, %v1820
    %v2757 = vpack.c.b16 %v1825, %v1821
    %v2758 = vpack.c.b16 %v1830, %v1826
    %v2759 = vpack.c.b16 %v1831, %v1827
    %v2760 = vpack.c.b16 %v1832, %v1828
    %v2761 = vpack.c.b16 %v1833, %v1829
    %v2762 = vpack.c.b16 %v1838, %v1834
    %v2763 = vpack.c.b16 %v1839, %v1835
    %v2764 = vpack.c.b16 %v1840, %v1836
    %v2765 = vpack.c.b16 %v1841, %v1837
    %v2766 = vpack.c.b16 %v1846, %v1842
    %v2767 = vpack.c.b16 %v1847, %v1843
    %v2768 = vpack.c.b16 %v1848, %v1844
    %v2769 = vpack.c.b16 %v1849, %v1845
    %v2770 = vpack.c.b16 %v1854, %v1850
    %v2771 = vpack.c.b16 %v1855, %v1851
    %v2772 = vpack.c.b16 %v1856, %v1852
    %v2773 = vpack.c.b16 %v1857, %v1853
    %v2774 = vpack.c.b16 %v1862, %v1858
    %v2775 = vpack.c.b16 %v1863, %v1859
    %v2776 = vpack.c.b16 %v1864, %v1860
    %v2777 = vpack.c.b16 %v1865, %v1861
    %v2778 = vpack.c.b16 %v1870, %v1866
    %v2779 = vpack.c.b16 %v1871, %v1867
    %v2780 = vpack.c.b16 %v1872, %v1868
    %v2781 = vpack.c.b16 %v1873, %v1869
    %v2782 = vpack.c.b16 %v1878, %v1874
    %v2783 = vpack.c.b16 %v1879, %v1875
    %v2784 = vpack.c.b16 %v1880, %v1876
    %v2785 = vpack.c.b16 %v1881, %v1877
    %v2786 = vpack.c.b16 %v1886, %v1882
    %v2787 = vpack.c.b16 %v1887, %v1883
    %v2788 = vpack.c.b16 %v1888, %v1884
    %v2789 = vpack.c.b16 %v1889, %v1885
    %v2790 = vpack.c.b16 %v1894, %v1890
    %v2791 = vpack.c.b16 %v1895, %v1891
    %v2792 = vpack.c.b16 %v1896, %v1892
    %v2793 = vpack.c.b16 %v1897, %v1893
    %v2794 = vpack.c.b16 %v1902, %v1898
    %v2795 = vpack.c.b16 %v1903, %v1899
    %v2796 = vpack.c.b16 %v1904, %v1900
    %v2797 = vpack.c.b16 %v1905, %v1901
    %v2798 = vpack.c.b16 %v1910, %v1906
    %v2799 = vpack.c.b16 %v1911, %v1907
    %v2800 = vpack.c.b16 %v1912, %v1908
    %v2801 = vpack.c.b16 %v1913, %v1909
    %v2802 = vpack.c.b16 %v1918, %v1914
    %v2803 = vpack.c.b16 %v1919, %v1915
    %v2804 = vpack.c.b16 %v1920, %v1916
    %v2805 = vpack.c.b16 %v1921, %v1917
    %v2806 = vpack.c.b16 %v1926, %v1922
    %v2807 = vpack.c.b16 %v1927, %v1923
    %v2808 = vpack.c.b16 %v1928, %v1924
    %v2809 = vpack.c.b16 %v1929, %v1925
    %v2810 = vpack.c.b16 %v1934, %v1930
    %v2811 = vpack.c.b16 %v1935, %v1931
    %v2812 = vpack.c.b16 %v1936, %v1932
    %v2813 = vpack.c.b16 %v1937, %v1933
    %v2814 = vpack.c.b16 %v1942, %v1938
    %v2815 = vpack.c.b16 %v1943, %v1939
    %v2816 = vpack.c.b16 %v1944, %v1940
    %v2817 = vpack.c.b16 %v1945, %v1941
    %v2818 = vpack.c.b16 %v1950, %v1946
    %v2819 = vpack.c.b16 %v1951, %v1947
    %v2820 = vpack.c.b16 %v1952, %v1948
    %v2821 = vpack.c.b16 %v1953, %v1949
    %v2822 = vpack.c.b16 %v1958, %v1954
    %v2823 = vpack.c.b16 %v1959, %v1955
    %v2824 = vpack.c.b16 %v1960, %v1956
    %v2825 = vpack.c.b16 %v1961, %v1957
    %v2826 = vpack.c.b16 %v1966, %v1962
    %v2827 = vpack.c.b16 %v1967, %v1963
    %v2828 = vpack.c.b16 %v1968, %v1964
    %v2829 = vpack.c.b16 %v1969, %v1965
    %v2830 = vpack.c.b16 %v1974, %v1970
    %v2831 = vpack.c.b16 %v1975, %v1971
    %v2832 = vpack.c.b16 %v1976, %v1972
    %v2833 = vpack.c.b16 %v1977, %v1973
    %v2834 = vpack.c.b16 %v1982, %v1978
    %v2835 = vpack.c.b16 %v1983, %v1979
    %v2836 = vpack.c.b16 %v1984, %v1980
    %v2837 = vpack.c.b16 %v1985, %v1981
    %v2838 = vpack.c.b16 %v1990, %v1986
    %v2839 = vpack.c.b16 %v1991, %v1987
    %v2840 = vpack.c.b16 %v1992, %v1988
    %v2841 = vpack.c.b16 %v1993, %v1989
    %v2842 = vpack.c.b16 %v1998, %v1994
    %v2843 = vpack.c.b16 %v1999, %v1995
    %v2844 = vpack.c.b16 %v2000, %v1996
    %v2845 = vpack.c.b16 %v2001, %v1997
    %v2846 = vpack.c.b16 %v2006, %v2002
    %v2847 = vpack.c.b16 %v2007, %v2003
    %v2848 = vpack.c.b16 %v2008, %v2004
    %v2849 = vpack.c.b16 %v2009, %v2005
    %v2850 = vpack.c.b16 %v2014, %v2010
    %v2851 = vpack.c.b16 %v2015, %v2011
    %v2852 = vpack.c.b16 %v2016, %v2012
    %v2853 = vpack.c.b16 %v2017, %v2013
    %v2854 = vpack.c.b16 %v2022, %v2018
    %v2855 = vpack.c.b16 %v2023, %v2019
    %v2856 = vpack.c.b16 %v2024, %v2020
    %v2857 = vpack.c.b16 %v2025, %v2021
    %v2858 = vpack.c.b16 %v2030, %v2026
    %v2859 = vpack.c.b16 %v2031, %v2027
    %v2860 = vpack.c.b16 %v2032, %v2028
    %v2861 = vpack.c.b16 %v2033, %v2029
    %v2862 = vpack.c.b16 %v2038, %v2034
    %v2863 = vpack.c.b16 %v2039, %v2035
    %v2864 = vpack.c.b16 %v2040, %v2036
    %v2865 = vpack.c.b16 %v2041, %v2037
    %v2866 = vpack.c.b16 %v2046, %v2042
    %v2867 = vpack.c.b16 %v2047, %v2043
    %v2868 = vpack.c.b16 %v2048, %v2044
    %v2869 = vpack.c.b16 %v2049, %v2045
    %v2870 = vpack.c.b16 %v2054, %v2050
    %v2871 = vpack.c.b16 %v2055, %v2051
    %v2872 = vpack.c.b16 %v2056, %v2052
    %v2873 = vpack.c.b16 %v2057, %v2053
    %v2874 = vpack.c.b16 %v2062, %v2058
    %v2875 = vpack.c.b16 %v2063, %v2059
    %v2876 = vpack.c.b16 %v2064, %v2060
    %v2877 = vpack.c.b16 %v2065, %v2061
    %v2878 = vpack.c.b16 %v2070, %v2066
    %v2879 = vpack.c.b16 %v2071, %v2067
    %v2880 = vpack.c.b16 %v2072, %v2068
    %v2881 = vpack.c.b16 %v2073, %v2069
    %v2882 = vpack.c.b16 %v2078, %v2074
    %v2883 = vpack.c.b16 %v2079, %v2075
    %v2884 = vpack.c.b16 %v2080, %v2076
    %v2885 = vpack.c.b16 %v2081, %v2077
    %v2886 = vpack.c.b16 %v2086, %v2082
    %v2887 = vpack.c.b16 %v2087, %v2083
    %v2888 = vpack.c.b16 %v2088, %v2084
    %v2889 = vpack.c.b16 %v2089, %v2085
    %v2890 = vpack.c.b16 %v2094, %v2090
    %v2891 = vpack.c.b16 %v2095, %v2091
    %v2892 = vpack.c.b16 %v2096, %v2092
    %v2893 = vpack.c.b16 %v2097, %v2093
    %v2894 = vpack.c.b16 %v2102, %v2098
    %v2895 = vpack.c.b16 %v2103, %v2099
    %v2896 = vpack.c.b16 %v2104, %v2100
    %v2897 = vpack.c.b16 %v2105, %v2101
    %v2898 = vpack.c.b16 %v2110, %v2106
    %v2899 = vpack.c.b16 %v2111, %v2107
    %v2900 = vpack.c.b16 %v2112, %v2108
    %v2901 = vpack.c.b16 %v2113, %v2109
    %v2902 = vpack.c.b16 %v2118, %v2114
    %v2903 = vpack.c.b16 %v2119, %v2115
    %v2904 = vpack.c.b16 %v2120, %v2116
    %v2905 = vpack.c.b16 %v2121, %v2117
    %v2906 = vpack.c.b16 %v2126, %v2122
    %v2907 = vpack.c.b16 %v2127, %v2123
    %v2908 = vpack.c.b16 %v2128, %v2124
    %v2909 = vpack.c.b16 %v2129, %v2125
    %v2910 = vpack.c.b16 %v2134, %v2130
    %v2911 = vpack.c.b16 %v2135, %v2131
    %v2912 = vpack.c.b16 %v2136, %v2132
    %v2913 = vpack.c.b16 %v2137, %v2133
    %v2914 = vpack.c.b16 %v2142, %v2138
    %v2915 = vpack.c.b16 %v2143, %v2139
    %v2916 = vpack.c.b16 %v2144, %v2140
    %v2917 = vpack.c.b16 %v2145, %v2141
    %v2918 = vpack.c.b16 %v2150, %v2146
    %v2919 = vpack.c.b16 %v2151, %v2147
    %v2920 = vpack.c.b16 %v2152, %v2148
    %v2921 = vpack.c.b16 %v2153, %v2149
    %v2922 = vpack.c.b16 %v2158, %v2154
    %v2923 = vpack.c.b16 %v2159, %v2155
    %v2924 = vpack.c.b16 %v2160, %v2156
    %v2925 = vpack.c.b16 %v2161, %v2157
    %v2926 = vpack.c.b16 %v2166, %v2162
    %v2927 = vpack.c.b16 %v2167, %v2163
    %v2928 = vpack.c.b16 %v2168, %v2164
    %v2929 = vpack.c.b16 %v2169, %v2165
    %v2930 = vpack.c.b16 %v2174, %v2170
    %v2931 = vpack.c.b16 %v2175, %v2171
    %v2932 = vpack.c.b16 %v2176, %v2172
    %v2933 = vpack.c.b16 %v2177, %v2173
    %v2934 = vpack.c.b16 %v2182, %v2178
    %v2935 = vpack.c.b16 %v2183, %v2179
    %v2936 = vpack.c.b16 %v2184, %v2180
    %v2937 = vpack.c.b16 %v2185, %v2181
    %v2938 = vpack.c.b16 %v2190, %v2186
    %v2939 = vpack.c.b16 %v2191, %v2187
    %v2940 = vpack.c.b16 %v2192, %v2188
    %v2941 = vpack.c.b16 %v2193, %v2189
    %v2942 = vpack.c.b16 %v2198, %v2194
    %v2943 = vpack.c.b16 %v2199, %v2195
    %v2944 = vpack.c.b16 %v2200, %v2196
    %v2945 = vpack.c.b16 %v2201, %v2197
    %v2946 = vpack.c.b16 %v2206, %v2202
    %v2947 = vpack.c.b16 %v2207, %v2203
    %v2948 = vpack.c.b16 %v2208, %v2204
    %v2949 = vpack.c.b16 %v2209, %v2205
    %v2950 = vpack.c.b16 %v2214, %v2210
    %v2951 = vpack.c.b16 %v2215, %v2211
    %v2952 = vpack.c.b16 %v2216, %v2212
    %v2953 = vpack.c.b16 %v2217, %v2213
    %v2954 = vpack.c.b16 %v2222, %v2218
    %v2955 = vpack.c.b16 %v2223, %v2219
    %v2956 = vpack.c.b16 %v2224, %v2220
    %v2957 = vpack.c.b16 %v2225, %v2221
    %v2958 = vpack.c.b16 %v2230, %v2226
    %v2959 = vpack.c.b16 %v2231, %v2227
    %v2960 = vpack.c.b16 %v2232, %v2228
    %v2961 = vpack.c.b16 %v2233, %v2229
    %v2962 = vpack.c.b16 %v2238, %v2234
    %v2963 = vpack.c.b16 %v2239, %v2235
    %v2964 = vpack.c.b16 %v2240, %v2236
    %v2965 = vpack.c.b16 %v2241, %v2237
    %v2966 = vpack.c.b16 %v2246, %v2242
    %v2967 = vpack.c.b16 %v2247, %v2243
    %v2968 = vpack.c.b16 %v2248, %v2244
    %v2969 = vpack.c.b16 %v2249, %v2245
    %v2970 = vpack.c.b16 %v2254, %v2250
    %v2971 = vpack.c.b16 %v2255, %v2251
    %v2972 = vpack.c.b16 %v2256, %v2252
    %v2973 = vpack.c.b16 %v2257, %v2253
    %v2974 = vpack.c.b16 %v2262, %v2258
    %v2975 = vpack.c.b16 %v2263, %v2259
    %v2976 = vpack.c.b16 %v2264, %v2260
    %v2977 = vpack.c.b16 %v2265, %v2261
    %v2978 = vpack.c.b16 %v2270, %v2266
    %v2979 = vpack.c.b16 %v2271, %v2267
    %v2980 = vpack.c.b16 %v2272, %v2268
    %v2981 = vpack.c.b16 %v2273, %v2269
    %v2982 = vpack.c.b16 %v2278, %v2274
    %v2983 = vpack.c.b16 %v2279, %v2275
    %v2984 = vpack.c.b16 %v2280, %v2276
    %v2985 = vpack.c.b16 %v2281, %v2277
    %v2986 = vpack.c.b16 %v2286, %v2282
    %v2987 = vpack.c.b16 %v2287, %v2283
    %v2988 = vpack.c.b16 %v2288, %v2284
    %v2989 = vpack.c.b16 %v2289, %v2285
    %v2990 = vpack.c.b16 %v2294, %v2290
    %v2991 = vpack.c.b16 %v2295, %v2291
    %v2992 = vpack.c.b16 %v2296, %v2292
    %v2993 = vpack.c.b16 %v2297, %v2293
    %v2994 = vpack.c.b16 %v2302, %v2298
    %v2995 = vpack.c.b16 %v2303, %v2299
    %v2996 = vpack.c.b16 %v2304, %v2300
    %v2997 = vpack.c.b16 %v2305, %v2301
    %v2998 = vpack.c.b16 %v2310, %v2306
    %v2999 = vpack.c.b16 %v2311, %v2307
    %v3000 = vpack.c.b16 %v2312, %v2308
    %v3001 = vpack.c.b16 %v2313, %v2309
    %v3002 = vpack.c.b16 %v2318, %v2314
    %v3003 = vpack.c.b16 %v2319, %v2315
    %v3004 = vpack.c.b16 %v2320, %v2316
    %v3005 = vpack.c.b16 %v2321, %v2317
    %v3006 = vpack.c.b16 %v2326, %v2322
    %v3007 = vpack.c.b16 %v2327, %v2323
    %v3008 = vpack.c.b16 %v2328, %v2324
    %v3009 = vpack.c.b16 %v2329, %v2325
    %v3010 = vpack.c.b16 %v2334, %v2330
    %v3011 = vpack.c.b16 %v2335, %v2331
    %v3012 = vpack.c.b16 %v2336, %v2332
    %v3013 = vpack.c.b16 %v2337, %v2333
    %v3014 = vpack.c.b16 %v2342, %v2338
    %v3015 = vpack.c.b16 %v2343, %v2339
    %v3016 = vpack.c.b16 %v2344, %v2340
    %v3017 = vpack.c.b16 %v2345, %v2341
    %v3018 = vpack.c.b16 %v2350, %v2346
    %v3019 = vpack.c.b16 %v2351, %v2347
    %v3020 = vpack.c.b16 %v2352, %v2348
    %v3021 = vpack.c.b16 %v2353, %v2349
    %v3022 = vpack.c.b16 %v2358, %v2354
    %v3023 = vpack.c.b16 %v2359, %v2355
    %v3024 = vpack.c.b16 %v2360, %v2356
    %v3025 = vpack.c.b16 %v2361, %v2357
    %v3026 = vpack.c.b16 %v2366, %v2362
    %v3027 = vpack.c.b16 %v2367, %v2363
    %v3028 = vpack.c.b16 %v2368, %v2364
    %v3029 = vpack.c.b16 %v2369, %v2365
    %v3030 = vpack.c.b16 %v2374, %v2370
    %v3031 = vpack.c.b16 %v2375, %v2371
    %v3032 = vpack.c.b16 %v2376, %v2372
    %v3033 = vpack.c.b16 %v2377, %v2373
    %v3034 = vpack.c.b16 %v2382, %v2378
    %v3035 = vpack.c.b16 %v2383, %v2379
    %v3036 = vpack.c.b16 %v2384, %v2380
    %v3037 = vpack.c.b16 %v2385, %v2381
    %v3038 = vpack.c.b16 %v2390, %v2386
    %v3039 = vpack.c.b16 %v2391, %v2387
    %v3040 = vpack.c.b16 %v2392, %v2388
    %v3041 = vpack.c.b16 %v2393, %v2389
    %v3042 = vpack.c.b16 %v2398, %v2394
    %v3043 = vpack.c.b16 %v2399, %v2395
    %v3044 = vpack.c.b16 %v2400, %v2396
    %v3045 = vpack.c.b16 %v2401, %v2397
    %v3046 = vpack.c.b16 %v2406, %v2402
    %v3047 = vpack.c.b16 %v2407, %v2403
    %v3048 = vpack.c.b16 %v2408, %v2404
    %v3049 = vpack.c.b16 %v2409, %v2405
    %v3050 = vpack.c.b16 %v2414, %v2410
    %v3051 = vpack.c.b16 %v2415, %v2411
    %v3052 = vpack.c.b16 %v2416, %v2412
    %v3053 = vpack.c.b16 %v2417, %v2413
    %v3054 = vpack.c.b16 %v2422, %v2418
    %v3055 = vpack.c.b16 %v2423, %v2419
    %v3056 = vpack.c.b16 %v2424, %v2420
    %v3057 = vpack.c.b16 %v2425, %v2421
    %v3058 = vpack.c.b16 %v2430, %v2426
    %v3059 = vpack.c.b16 %v2431, %v2427
    %v3060 = vpack.c.b16 %v2432, %v2428
    %v3061 = vpack.c.b16 %v2433, %v2429
    %v3062 = vpack.c.b16 %v2438, %v2434
    %v3063 = vpack.c.b16 %v2439, %v2435
    %v3064 = vpack.c.b16 %v2440, %v2436
    %v3065 = vpack.c.b16 %v2441, %v2437
    %v3066 = vpack.c.b16 %v2446, %v2442
    %v3067 = vpack.c.b16 %v2447, %v2443
    %v3068 = vpack.c.b16 %v2448, %v2444
    %v3069 = vpack.c.b16 %v2449, %v2445
    %v3070 = vpack.c.b16 %v2454, %v2450
    %v3071 = vpack.c.b16 %v2455, %v2451
    %v3072 = vpack.c.b16 %v2456, %v2452
    %v3073 = vpack.c.b16 %v2457, %v2453
    %v3074 = vpack.c.b16 %v2462, %v2458
    %v3075 = vpack.c.b16 %v2463, %v2459
    %v3076 = vpack.c.b16 %v2464, %v2460
    %v3077 = vpack.c.b16 %v2465, %v2461
    %v3078 = vpack.c.b16 %v2470, %v2466
    %v3079 = vpack.c.b16 %v2471, %v2467
    %v3080 = vpack.c.b16 %v2472, %v2468
    %v3081 = vpack.c.b16 %v2473, %v2469
    %v3082 = vpack.c.b16 %v2478, %v2474
    %v3083 = vpack.c.b16 %v2479, %v2475
    %v3084 = vpack.c.b16 %v2480, %v2476
    %v3085 = vpack.c.b16 %v2481, %v2477
    %v3086 = vpack.c.b16 %v2486, %v2482
    %v3087 = vpack.c.b16 %v2487, %v2483
    %v3088 = vpack.c.b16 %v2488, %v2484
    %v3089 = vpack.c.b16 %v2489, %v2485
    %v3090 = vpack.c.b16 %v2494, %v2490
    %v3091 = vpack.c.b16 %v2495, %v2491
    %v3092 = vpack.c.b16 %v2496, %v2492
    %v3093 = vpack.c.b16 %v2497, %v2493
    %v3094 = vpack.c.b16 %v2502, %v2498
    %v3095 = vpack.c.b16 %v2503, %v2499
    %v3096 = vpack.c.b16 %v2504, %v2500
    %v3097 = vpack.c.b16 %v2505, %v2501
    %v3098 = vpack.c.b16 %v2510, %v2506
    %v3099 = vpack.c.b16 %v2511, %v2507
    %v3100 = vpack.c.b16 %v2512, %v2508
    %v3101 = vpack.c.b16 %v2513, %v2509
    %v3102 = vpack.c.b16 %v2518, %v2514
    %v3103 = vpack.c.b16 %v2519, %v2515
    %v3104 = vpack.c.b16 %v2520, %v2516
    %v3105 = vpack.c.b16 %v2521, %v2517
    %v3106 = vpack.c.b16 %v2526, %v2522
    %v3107 = vpack.c.b16 %v2527, %v2523
    %v3108 = vpack.c.b16 %v2528, %v2524
    %v3109 = vpack.c.b16 %v2529, %v2525
    %v3110 = vpack.c.b16 %v2534, %v2530
    %v3111 = vpack.c.b16 %v2535, %v2531
    %v3112 = vpack.c.b16 %v2536, %v2532
    %v3113 = vpack.c.b16 %v2537, %v2533
    %v3114 = vpack.c.b16 %v2542, %v2538
    %v3115 = vpack.c.b16 %v2543, %v2539
    %v3116 = vpack.c.b16 %v2544, %v2540
    %v3117 = vpack.c.b16 %v2545, %v2541
    %v3118 = vpack.c.b16 %v2550, %v2546
    %v3119 = vpack.c.b16 %v2551, %v2547
    %v3120 = vpack.c.b16 %v2552, %v2548
    %v3121 = vpack.c.b16 %v2553, %v2549
    %v3122 = vpack.c.b16 %v2558, %v2554
    %v3123 = vpack.c.b16 %v2559, %v2555
    %v3124 = vpack.c.b16 %v2560, %v2556
    %v3125 = vpack.c.b16 %v2561, %v2557
    %v3126 = vpack.c.b16 %v2566, %v2562
    %v3127 = vpack.c.b16 %v2567, %v2563
    %v3128 = vpack.c.b16 %v2568, %v2564
    %v3129 = vpack.c.b16 %v2569, %v2565
    %v3130 = vpack.c.b16 %v2574, %v2570
    %v3131 = vpack.c.b16 %v2575, %v2571
    %v3132 = vpack.c.b16 %v2576, %v2572
    %v3133 = vpack.c.b16 %v2577, %v2573
    %v3134 = vpack.c.b16 %v2582, %v2578
    %v3135 = vpack.c.b16 %v2583, %v2579
    %v3136 = vpack.c.b16 %v2584, %v2580
    %v3137 = vpack.c.b16 %v2585, %v2581
    %v3138 = vpack.c.b16 %v2590, %v2586
    %v3139 = vpack.c.b16 %v2591, %v2587
    %v3140 = vpack.c.b16 %v2592, %v2588
    %v3141 = vpack.c.b16 %v2593, %v2589
    %v3142 = vpack.c.b16 %v2598, %v2594
    %v3143 = vpack.c.b16 %v2599, %v2595
    %v3144 = vpack.c.b16 %v2600, %v2596
    %v3145 = vpack.c.b16 %v2601, %v2597
    %v3146 = vpack.c.b16 %v2606, %v2602
    %v3147 = vpack.c.b16 %v2607, %v2603
    %v3148 = vpack.c.b16 %v2608, %v2604
    %v3149 = vpack.c.b16 %v2609, %v2605
    %v3150 = vpack.c.b16 %v2614, %v2610
    %v3151 = vpack.c.b16 %v2615, %v2611
    %v3152 = vpack.c.b16 %v2616, %v2612
    %v3153 = vpack.c.b16 %v2617, %v2613
    %v3154 = vpack.c.b16 %v2622, %v2618
    %v3155 = vpack.c.b16 %v2623, %v2619
    %v3156 = vpack.c.b16 %v2624, %v2620
    %v3157 = vpack.c.b16 %v2625, %v2621
    %v3158 = vpack.c.b16 %v2630, %v2626
    %v3159 = vpack.c.b16 %v2631, %v2627
    %v3160 = vpack.c.b16 %v2632, %v2628
    %v3161 = vpack.c.b16 %v2633, %v2629
    %v3162 = vpack.c.b16 %v2638, %v2634
    %v3163 = vpack.c.b16 %v2639, %v2635
    %v3164 = vpack.c.b16 %v2640, %v2636
    %v3165 = vpack.c.b16 %v2641, %v2637
    %v3166 = vpack.c.b16 %v2646, %v2642
    %v3167 = vpack.c.b16 %v2647, %v2643
    %v3168 = vpack.c.b16 %v2648, %v2644
    %v3169 = vpack.c.b16 %v2649, %v2645
    %v3170 = vpack.c.b16 %v2654, %v2650
    %v3171 = vpack.c.b16 %v2655, %v2651
    %v3172 = vpack.c.b16 %v2656, %v2652
    %v3173 = vpack.c.b16 %v2657, %v2653
    %v3174 = vpack.c.b16 %v2662, %v2658
    %v3175 = vpack.c.b16 %v2663, %v2659
    %v3176 = vpack.c.b16 %v2664, %v2660
    %v3177 = vpack.c.b16 %v2665, %v2661
    %3690 = vmatpush.bf16.msra.mxu0 %v2694
    %3691 = vmatpush.bf16.msra.mxu0 %v2690
    %3692 = vmatpush.bf16.msra.mxu0 %v2686
    %3693 = vmatpush.bf16.msra.mxu0 %v2682
    %3694 = vmatpush.bf16.msra.mxu0 %v2678
    %3695 = vmatpush.bf16.msra.mxu0 %v2674
    %3696 = vmatpush.bf16.msra.mxu0 %v2670
    %3697 = vmatpush.bf16.msra.mxu0 %v2666
    %3698 = vmatmul.bf16.gmra.mxu0 %v592
    %v3699 = vpop.f32.mrf.mxu0
    %v3700 = vadd.f32 %v1122, %v3699
    %v3701 = vpop.f32.mrf.mxu0
    %3702 = vdwg.mxu0
    %3703 = vmatpush.bf16.msra.mxu0 %v2726
    %3704 = vmatpush.bf16.msra.mxu0 %v2722
    %3705 = vmatpush.bf16.msra.mxu0 %v2718
    %3706 = vmatpush.bf16.msra.mxu0 %v2714
    %3707 = vmatpush.bf16.msra.mxu0 %v2710
    %3708 = vmatpush.bf16.msra.mxu0 %v2706
    %3709 = vmatpush.bf16.msra.mxu0 %v2702
    %3710 = vmatpush.bf16.msra.mxu0 %v2698
    %3711 = vmatmul.bf16.gmra.mxu0 %v593
    %v3712 = vpop.f32.mrf.mxu0
    %v3713 = vadd.f32 %v3700, %v3712
    %v3714 = vpop.f32.mrf.mxu0
    %3715 = vdwg.mxu0
    %3716 = vmatpush.bf16.msra.mxu0 %v2758
    %3717 = vmatpush.bf16.msra.mxu0 %v2754
    %3718 = vmatpush.bf16.msra.mxu0 %v2750
    %3719 = vmatpush.bf16.msra.mxu0 %v2746
    %3720 = vmatpush.bf16.msra.mxu0 %v2742
    %3721 = vmatpush.bf16.msra.mxu0 %v2738
    %3722 = vmatpush.bf16.msra.mxu0 %v2734
    %3723 = vmatpush.bf16.msra.mxu0 %v2730
    %3724 = vmatmul.bf16.gmra.mxu0 %v594
    %v3725 = vpop.f32.mrf.mxu0
    %v3726 = vadd.f32 %v3713, %v3725
    %v3727 = vpop.f32.mrf.mxu0
    %3728 = vdwg.mxu0
    %3729 = vmatpush.bf16.msra.mxu0 %v2790
    %3730 = vmatpush.bf16.msra.mxu0 %v2786
    %3731 = vmatpush.bf16.msra.mxu0 %v2782
    %3732 = vmatpush.bf16.msra.mxu0 %v2778
    %3733 = vmatpush.bf16.msra.mxu0 %v2774
    %3734 = vmatpush.bf16.msra.mxu0 %v2770
    %3735 = vmatpush.bf16.msra.mxu0 %v2766
    %3736 = vmatpush.bf16.msra.mxu0 %v2762
    %3737 = vmatmul.bf16.gmra.mxu0 %v595
    %v3738 = vpop.f32.mrf.mxu0
    %v3739 = vadd.f32 %v3726, %v3738
    %v3740 = vpop.f32.mrf.mxu0
    %3741 = vdwg.mxu0
    %3742 = vmatpush.bf16.msra.mxu0 %v2822
    %3743 = vmatpush.bf16.msra.mxu0 %v2818
    %3744 = vmatpush.bf16.msra.mxu0 %v2814
    %3745 = vmatpush.bf16.msra.mxu0 %v2810
    %3746 = vmatpush.bf16.msra.mxu0 %v2806
    %3747 = vmatpush.bf16.msra.mxu0 %v2802
    %3748 = vmatpush.bf16.msra.mxu0 %v2798
    %3749 = vmatpush.bf16.msra.mxu0 %v2794
    %3750 = vmatmul.bf16.gmra.mxu0 %v596
    %v3751 = vpop.f32.mrf.mxu0
    %v3752 = vadd.f32 %v3739, %v3751
    %v3753 = vpop.f32.mrf.mxu0
    %3754 = vdwg.mxu0
    %3755 = vmatpush.bf16.msra.mxu0 %v2854
    %3756 = vmatpush.bf16.msra.mxu0 %v2850
    %3757 = vmatpush.bf16.msra.mxu0 %v2846
    %3758 = vmatpush.bf16.msra.mxu0 %v2842
    %3759 = vmatpush.bf16.msra.mxu0 %v2838
    %3760 = vmatpush.bf16.msra.mxu0 %v2834
    %3761 = vmatpush.bf16.msra.mxu0 %v2830
    %3762 = vmatpush.bf16.msra.mxu0 %v2826
    %3763 = vmatmul.bf16.gmra.mxu0 %v597
    %v3764 = vpop.f32.mrf.mxu0
    %v3765 = vadd.f32 %v3752, %v3764
    %v3766 = vpop.f32.mrf.mxu0
    %3767 = vdwg.mxu0
    %3768 = vmatpush.bf16.msra.mxu0 %v2886
    %3769 = vmatpush.bf16.msra.mxu0 %v2882
    %3770 = vmatpush.bf16.msra.mxu0 %v2878
    %3771 = vmatpush.bf16.msra.mxu0 %v2874
    %3772 = vmatpush.bf16.msra.mxu0 %v2870
    %3773 = vmatpush.bf16.msra.mxu0 %v2866
    %3774 = vmatpush.bf16.msra.mxu0 %v2862
    %3775 = vmatpush.bf16.msra.mxu0 %v2858
    %3776 = vmatmul.bf16.gmra.mxu0 %v598
    %v3777 = vpop.f32.mrf.mxu0
    %v3778 = vadd.f32 %v3765, %v3777
    %v3779 = vpop.f32.mrf.mxu0
    %3780 = vdwg.mxu0
    %3781 = vmatpush.bf16.msra.mxu0 %v2918
    %3782 = vmatpush.bf16.msra.mxu0 %v2914
    %3783 = vmatpush.bf16.msra.mxu0 %v2910
    %3784 = vmatpush.bf16.msra.mxu0 %v2906
    %3785 = vmatpush.bf16.msra.mxu0 %v2902
    %3786 = vmatpush.bf16.msra.mxu0 %v2898
    %3787 = vmatpush.bf16.msra.mxu0 %v2894
    %3788 = vmatpush.bf16.msra.mxu0 %v2890
    %3789 = vmatmul.bf16.gmra.mxu0 %v599
    %v3790 = vpop.f32.mrf.mxu0
    %v3791 = vadd.f32 %v3778, %v3790
    %v3792 = vpop.f32.mrf.mxu0
    %3793 = vdwg.mxu0
    %3794 = vmatpush.bf16.msra.mxu0 %v2950
    %3795 = vmatpush.bf16.msra.mxu0 %v2946
    %3796 = vmatpush.bf16.msra.mxu0 %v2942
    %3797 = vmatpush.bf16.msra.mxu0 %v2938
    %3798 = vmatpush.bf16.msra.mxu0 %v2934
    %3799 = vmatpush.bf16.msra.mxu0 %v2930
    %3800 = vmatpush.bf16.msra.mxu0 %v2926
    %3801 = vmatpush.bf16.msra.mxu0 %v2922
    %3802 = vmatmul.bf16.gmra.mxu0 %v600
    %v3803 = vpop.f32.mrf.mxu0
    %v3804 = vadd.f32 %v3791, %v3803
    %v3805 = vpop.f32.mrf.mxu0
    %3806 = vdwg.mxu0
    %3807 = vmatpush.bf16.msra.mxu0 %v2982
    %3808 = vmatpush.bf16.msra.mxu0 %v2978
    %3809 = vmatpush.bf16.msra.mxu0 %v2974
    %3810 = vmatpush.bf16.msra.mxu0 %v2970
    %3811 = vmatpush.bf16.msra.mxu0 %v2966
    %3812 = vmatpush.bf16.msra.mxu0 %v2962
    %3813 = vmatpush.bf16.msra.mxu0 %v2958
    %3814 = vmatpush.bf16.msra.mxu0 %v2954
    %3815 = vmatmul.bf16.gmra.mxu0 %v601
    %v3816 = vpop.f32.mrf.mxu0
    %v3817 = vadd.f32 %v3804, %v3816
    %v3818 = vpop.f32.mrf.mxu0
    %3819 = vdwg.mxu0
    %3820 = vmatpush.bf16.msra.mxu0 %v3014
    %3821 = vmatpush.bf16.msra.mxu0 %v3010
    %3822 = vmatpush.bf16.msra.mxu0 %v3006
    %3823 = vmatpush.bf16.msra.mxu0 %v3002
    %3824 = vmatpush.bf16.msra.mxu0 %v2998
    %3825 = vmatpush.bf16.msra.mxu0 %v2994
    %3826 = vmatpush.bf16.msra.mxu0 %v2990
    %3827 = vmatpush.bf16.msra.mxu0 %v2986
    %3828 = vmatmul.bf16.gmra.mxu0 %v602
    %v3829 = vpop.f32.mrf.mxu0
    %v3830 = vadd.f32 %v3817, %v3829
    %v3831 = vpop.f32.mrf.mxu0
    %3832 = vdwg.mxu0
    %3833 = vmatpush.bf16.msra.mxu0 %v3046
    %3834 = vmatpush.bf16.msra.mxu0 %v3042
    %3835 = vmatpush.bf16.msra.mxu0 %v3038
    %3836 = vmatpush.bf16.msra.mxu0 %v3034
    %3837 = vmatpush.bf16.msra.mxu0 %v3030
    %3838 = vmatpush.bf16.msra.mxu0 %v3026
    %3839 = vmatpush.bf16.msra.mxu0 %v3022
    %3840 = vmatpush.bf16.msra.mxu0 %v3018
    %3841 = vmatmul.bf16.gmra.mxu0 %v603
    %v3842 = vpop.f32.mrf.mxu0
    %v3843 = vadd.f32 %v3830, %v3842
    %v3844 = vpop.f32.mrf.mxu0
    %3845 = vdwg.mxu0
    %3846 = vmatpush.bf16.msra.mxu0 %v3078
    %3847 = vmatpush.bf16.msra.mxu0 %v3074
    %3848 = vmatpush.bf16.msra.mxu0 %v3070
    %3849 = vmatpush.bf16.msra.mxu0 %v3066
    %3850 = vmatpush.bf16.msra.mxu0 %v3062
    %3851 = vmatpush.bf16.msra.mxu0 %v3058
    %3852 = vmatpush.bf16.msra.mxu0 %v3054
    %3853 = vmatpush.bf16.msra.mxu0 %v3050
    %3854 = vmatmul.bf16.gmra.mxu0 %v604
    %v3855 = vpop.f32.mrf.mxu0
    %v3856 = vadd.f32 %v3843, %v3855
    %v3857 = vpop.f32.mrf.mxu0
    %3858 = vdwg.mxu0
    %3859 = vmatpush.bf16.msra.mxu0 %v3110
    %3860 = vmatpush.bf16.msra.mxu0 %v3106
    %3861 = vmatpush.bf16.msra.mxu0 %v3102
    %3862 = vmatpush.bf16.msra.mxu0 %v3098
    %3863 = vmatpush.bf16.msra.mxu0 %v3094
    %3864 = vmatpush.bf16.msra.mxu0 %v3090
    %3865 = vmatpush.bf16.msra.mxu0 %v3086
    %3866 = vmatpush.bf16.msra.mxu0 %v3082
    %3867 = vmatmul.bf16.gmra.mxu0 %v605
    %v3868 = vpop.f32.mrf.mxu0
    %v3869 = vadd.f32 %v3856, %v3868
    %v3870 = vpop.f32.mrf.mxu0
    %3871 = vdwg.mxu0
    %3872 = vmatpush.bf16.msra.mxu0 %v3142
    %3873 = vmatpush.bf16.msra.mxu0 %v3138
    %3874 = vmatpush.bf16.msra.mxu0 %v3134
    %3875 = vmatpush.bf16.msra.mxu0 %v3130
    %3876 = vmatpush.bf16.msra.mxu0 %v3126
    %3877 = vmatpush.bf16.msra.mxu0 %v3122
    %3878 = vmatpush.bf16.msra.mxu0 %v3118
    %3879 = vmatpush.bf16.msra.mxu0 %v3114
    %3880 = vmatmul.bf16.gmra.mxu0 %v606
    %v3881 = vpop.f32.mrf.mxu0
    %v3882 = vadd.f32 %v3869, %v3881
    %v3883 = vpop.f32.mrf.mxu0
    %3884 = vdwg.mxu0
    %3885 = vmatpush.bf16.msra.mxu0 %v3174
    %3886 = vmatpush.bf16.msra.mxu0 %v3170
    %3887 = vmatpush.bf16.msra.mxu0 %v3166
    %3888 = vmatpush.bf16.msra.mxu0 %v3162
    %3889 = vmatpush.bf16.msra.mxu0 %v3158
    %3890 = vmatpush.bf16.msra.mxu0 %v3154
    %3891 = vmatpush.bf16.msra.mxu0 %v3150
    %3892 = vmatpush.bf16.msra.mxu0 %v3146
    %3893 = vmatmul.bf16.gmra.mxu0 %v607
    %v3894 = vpop.f32.mrf.mxu0
    %v3895 = vadd.f32 %v3882, %v3894
    %v3896 = vpop.f32.mrf.mxu0
    %3897 = vdwg.mxu0
    %3898 = vmatpush.bf16.msra.mxu0 %v2695
    %3899 = vmatpush.bf16.msra.mxu0 %v2691
    %3900 = vmatpush.bf16.msra.mxu0 %v2687
    %3901 = vmatpush.bf16.msra.mxu0 %v2683
    %3902 = vmatpush.bf16.msra.mxu0 %v2679
    %3903 = vmatpush.bf16.msra.mxu0 %v2675
    %3904 = vmatpush.bf16.msra.mxu0 %v2671
    %3905 = vmatpush.bf16.msra.mxu0 %v2667
    %3906 = vmatmul.bf16.gmra.mxu0 %v592
    %v3907 = vpop.f32.mrf.mxu0
    %v3908 = vadd.f32 %v1123, %v3907
    %v3909 = vpop.f32.mrf.mxu0
    %3910 = vdwg.mxu0
    %3911 = vmatpush.bf16.msra.mxu0 %v2727
    %3912 = vmatpush.bf16.msra.mxu0 %v2723
    %3913 = vmatpush.bf16.msra.mxu0 %v2719
    %3914 = vmatpush.bf16.msra.mxu0 %v2715
    %3915 = vmatpush.bf16.msra.mxu0 %v2711
    %3916 = vmatpush.bf16.msra.mxu0 %v2707
    %3917 = vmatpush.bf16.msra.mxu0 %v2703
    %3918 = vmatpush.bf16.msra.mxu0 %v2699
    %3919 = vmatmul.bf16.gmra.mxu0 %v593
    %v3920 = vpop.f32.mrf.mxu0
    %v3921 = vadd.f32 %v3908, %v3920
    %v3922 = vpop.f32.mrf.mxu0
    %3923 = vdwg.mxu0
    %3924 = vmatpush.bf16.msra.mxu0 %v2759
    %3925 = vmatpush.bf16.msra.mxu0 %v2755
    %3926 = vmatpush.bf16.msra.mxu0 %v2751
    %3927 = vmatpush.bf16.msra.mxu0 %v2747
    %3928 = vmatpush.bf16.msra.mxu0 %v2743
    %3929 = vmatpush.bf16.msra.mxu0 %v2739
    %3930 = vmatpush.bf16.msra.mxu0 %v2735
    %3931 = vmatpush.bf16.msra.mxu0 %v2731
    %3932 = vmatmul.bf16.gmra.mxu0 %v594
    %v3933 = vpop.f32.mrf.mxu0
    %v3934 = vadd.f32 %v3921, %v3933
    %v3935 = vpop.f32.mrf.mxu0
    %3936 = vdwg.mxu0
    %3937 = vmatpush.bf16.msra.mxu0 %v2791
    %3938 = vmatpush.bf16.msra.mxu0 %v2787
    %3939 = vmatpush.bf16.msra.mxu0 %v2783
    %3940 = vmatpush.bf16.msra.mxu0 %v2779
    %3941 = vmatpush.bf16.msra.mxu0 %v2775
    %3942 = vmatpush.bf16.msra.mxu0 %v2771
    %3943 = vmatpush.bf16.msra.mxu0 %v2767
    %3944 = vmatpush.bf16.msra.mxu0 %v2763
    %3945 = vmatmul.bf16.gmra.mxu0 %v595
    %v3946 = vpop.f32.mrf.mxu0
    %v3947 = vadd.f32 %v3934, %v3946
    %v3948 = vpop.f32.mrf.mxu0
    %3949 = vdwg.mxu0
    %3950 = vmatpush.bf16.msra.mxu0 %v2823
    %3951 = vmatpush.bf16.msra.mxu0 %v2819
    %3952 = vmatpush.bf16.msra.mxu0 %v2815
    %3953 = vmatpush.bf16.msra.mxu0 %v2811
    %3954 = vmatpush.bf16.msra.mxu0 %v2807
    %3955 = vmatpush.bf16.msra.mxu0 %v2803
    %3956 = vmatpush.bf16.msra.mxu0 %v2799
    %3957 = vmatpush.bf16.msra.mxu0 %v2795
    %3958 = vmatmul.bf16.gmra.mxu0 %v596
    %v3959 = vpop.f32.mrf.mxu0
    %v3960 = vadd.f32 %v3947, %v3959
    %v3961 = vpop.f32.mrf.mxu0
    %3962 = vdwg.mxu0
    %3963 = vmatpush.bf16.msra.mxu0 %v2855
    %3964 = vmatpush.bf16.msra.mxu0 %v2851
    %3965 = vmatpush.bf16.msra.mxu0 %v2847
    %3966 = vmatpush.bf16.msra.mxu0 %v2843
    %3967 = vmatpush.bf16.msra.mxu0 %v2839
    %3968 = vmatpush.bf16.msra.mxu0 %v2835
    %3969 = vmatpush.bf16.msra.mxu0 %v2831
    %3970 = vmatpush.bf16.msra.mxu0 %v2827
    %3971 = vmatmul.bf16.gmra.mxu0 %v597
    %v3972 = vpop.f32.mrf.mxu0
    %v3973 = vadd.f32 %v3960, %v3972
    %v3974 = vpop.f32.mrf.mxu0
    %3975 = vdwg.mxu0
    %3976 = vmatpush.bf16.msra.mxu0 %v2887
    %3977 = vmatpush.bf16.msra.mxu0 %v2883
    %3978 = vmatpush.bf16.msra.mxu0 %v2879
    %3979 = vmatpush.bf16.msra.mxu0 %v2875
    %3980 = vmatpush.bf16.msra.mxu0 %v2871
    %3981 = vmatpush.bf16.msra.mxu0 %v2867
    %3982 = vmatpush.bf16.msra.mxu0 %v2863
    %3983 = vmatpush.bf16.msra.mxu0 %v2859
    %3984 = vmatmul.bf16.gmra.mxu0 %v598
    %v3985 = vpop.f32.mrf.mxu0
    %v3986 = vadd.f32 %v3973, %v3985
    %v3987 = vpop.f32.mrf.mxu0
    %3988 = vdwg.mxu0
    %3989 = vmatpush.bf16.msra.mxu0 %v2919
    %3990 = vmatpush.bf16.msra.mxu0 %v2915
    %3991 = vmatpush.bf16.msra.mxu0 %v2911
    %3992 = vmatpush.bf16.msra.mxu0 %v2907
    %3993 = vmatpush.bf16.msra.mxu0 %v2903
    %3994 = vmatpush.bf16.msra.mxu0 %v2899
    %3995 = vmatpush.bf16.msra.mxu0 %v2895
    %3996 = vmatpush.bf16.msra.mxu0 %v2891
    %3997 = vmatmul.bf16.gmra.mxu0 %v599
    %v3998 = vpop.f32.mrf.mxu0
    %v3999 = vadd.f32 %v3986, %v3998
    %v4000 = vpop.f32.mrf.mxu0
    %4001 = vdwg.mxu0
    %4002 = vmatpush.bf16.msra.mxu0 %v2951
    %4003 = vmatpush.bf16.msra.mxu0 %v2947
    %4004 = vmatpush.bf16.msra.mxu0 %v2943
    %4005 = vmatpush.bf16.msra.mxu0 %v2939
    %4006 = vmatpush.bf16.msra.mxu0 %v2935
    %4007 = vmatpush.bf16.msra.mxu0 %v2931
    %4008 = vmatpush.bf16.msra.mxu0 %v2927
    %4009 = vmatpush.bf16.msra.mxu0 %v2923
    %4010 = vmatmul.bf16.gmra.mxu0 %v600
    %v4011 = vpop.f32.mrf.mxu0
    %v4012 = vadd.f32 %v3999, %v4011
    %v4013 = vpop.f32.mrf.mxu0
    %4014 = vdwg.mxu0
    %4015 = vmatpush.bf16.msra.mxu0 %v2983
    %4016 = vmatpush.bf16.msra.mxu0 %v2979
    %4017 = vmatpush.bf16.msra.mxu0 %v2975
    %4018 = vmatpush.bf16.msra.mxu0 %v2971
    %4019 = vmatpush.bf16.msra.mxu0 %v2967
    %4020 = vmatpush.bf16.msra.mxu0 %v2963
    %4021 = vmatpush.bf16.msra.mxu0 %v2959
    %4022 = vmatpush.bf16.msra.mxu0 %v2955
    %4023 = vmatmul.bf16.gmra.mxu0 %v601
    %v4024 = vpop.f32.mrf.mxu0
    %v4025 = vadd.f32 %v4012, %v4024
    %v4026 = vpop.f32.mrf.mxu0
    %4027 = vdwg.mxu0
    %4028 = vmatpush.bf16.msra.mxu0 %v3015
    %4029 = vmatpush.bf16.msra.mxu0 %v3011
    %4030 = vmatpush.bf16.msra.mxu0 %v3007
    %4031 = vmatpush.bf16.msra.mxu0 %v3003
    %4032 = vmatpush.bf16.msra.mxu0 %v2999
    %4033 = vmatpush.bf16.msra.mxu0 %v2995
    %4034 = vmatpush.bf16.msra.mxu0 %v2991
    %4035 = vmatpush.bf16.msra.mxu0 %v2987
    %4036 = vmatmul.bf16.gmra.mxu0 %v602
    %v4037 = vpop.f32.mrf.mxu0
    %v4038 = vadd.f32 %v4025, %v4037
    %v4039 = vpop.f32.mrf.mxu0
    %4040 = vdwg.mxu0
    %4041 = vmatpush.bf16.msra.mxu0 %v3047
    %4042 = vmatpush.bf16.msra.mxu0 %v3043
    %4043 = vmatpush.bf16.msra.mxu0 %v3039
    %4044 = vmatpush.bf16.msra.mxu0 %v3035
    %4045 = vmatpush.bf16.msra.mxu0 %v3031
    %4046 = vmatpush.bf16.msra.mxu0 %v3027
    %4047 = vmatpush.bf16.msra.mxu0 %v3023
    %4048 = vmatpush.bf16.msra.mxu0 %v3019
    %4049 = vmatmul.bf16.gmra.mxu0 %v603
    %v4050 = vpop.f32.mrf.mxu0
    %v4051 = vadd.f32 %v4038, %v4050
    %v4052 = vpop.f32.mrf.mxu0
    %4053 = vdwg.mxu0
    %4054 = vmatpush.bf16.msra.mxu0 %v3079
    %4055 = vmatpush.bf16.msra.mxu0 %v3075
    %4056 = vmatpush.bf16.msra.mxu0 %v3071
    %4057 = vmatpush.bf16.msra.mxu0 %v3067
    %4058 = vmatpush.bf16.msra.mxu0 %v3063
    %4059 = vmatpush.bf16.msra.mxu0 %v3059
    %4060 = vmatpush.bf16.msra.mxu0 %v3055
    %4061 = vmatpush.bf16.msra.mxu0 %v3051
    %4062 = vmatmul.bf16.gmra.mxu0 %v604
    %v4063 = vpop.f32.mrf.mxu0
    %v4064 = vadd.f32 %v4051, %v4063
    %v4065 = vpop.f32.mrf.mxu0
    %4066 = vdwg.mxu0
    %4067 = vmatpush.bf16.msra.mxu0 %v3111
    %4068 = vmatpush.bf16.msra.mxu0 %v3107
    %4069 = vmatpush.bf16.msra.mxu0 %v3103
    %4070 = vmatpush.bf16.msra.mxu0 %v3099
    %4071 = vmatpush.bf16.msra.mxu0 %v3095
    %4072 = vmatpush.bf16.msra.mxu0 %v3091
    %4073 = vmatpush.bf16.msra.mxu0 %v3087
    %4074 = vmatpush.bf16.msra.mxu0 %v3083
    %4075 = vmatmul.bf16.gmra.mxu0 %v605
    %v4076 = vpop.f32.mrf.mxu0
    %v4077 = vadd.f32 %v4064, %v4076
    %v4078 = vpop.f32.mrf.mxu0
    %4079 = vdwg.mxu0
    %4080 = vmatpush.bf16.msra.mxu0 %v3143
    %4081 = vmatpush.bf16.msra.mxu0 %v3139
    %4082 = vmatpush.bf16.msra.mxu0 %v3135
    %4083 = vmatpush.bf16.msra.mxu0 %v3131
    %4084 = vmatpush.bf16.msra.mxu0 %v3127
    %4085 = vmatpush.bf16.msra.mxu0 %v3123
    %4086 = vmatpush.bf16.msra.mxu0 %v3119
    %4087 = vmatpush.bf16.msra.mxu0 %v3115
    %4088 = vmatmul.bf16.gmra.mxu0 %v606
    %v4089 = vpop.f32.mrf.mxu0
    %v4090 = vadd.f32 %v4077, %v4089
    %v4091 = vpop.f32.mrf.mxu0
    %4092 = vdwg.mxu0
    %4093 = vmatpush.bf16.msra.mxu0 %v3175
    %4094 = vmatpush.bf16.msra.mxu0 %v3171
    %4095 = vmatpush.bf16.msra.mxu0 %v3167
    %4096 = vmatpush.bf16.msra.mxu0 %v3163
    %4097 = vmatpush.bf16.msra.mxu0 %v3159
    %4098 = vmatpush.bf16.msra.mxu0 %v3155
    %4099 = vmatpush.bf16.msra.mxu0 %v3151
    %4100 = vmatpush.bf16.msra.mxu0 %v3147
    %4101 = vmatmul.bf16.gmra.mxu0 %v607
    %v4102 = vpop.f32.mrf.mxu0
    %v4103 = vadd.f32 %v4090, %v4102
    %v4104 = vpop.f32.mrf.mxu0
    %4105 = vdwg.mxu0
    %4106 = vmatpush.bf16.msra.mxu0 %v2696
    %4107 = vmatpush.bf16.msra.mxu0 %v2692
    %4108 = vmatpush.bf16.msra.mxu0 %v2688
    %4109 = vmatpush.bf16.msra.mxu0 %v2684
    %4110 = vmatpush.bf16.msra.mxu0 %v2680
    %4111 = vmatpush.bf16.msra.mxu0 %v2676
    %4112 = vmatpush.bf16.msra.mxu0 %v2672
    %4113 = vmatpush.bf16.msra.mxu0 %v2668
    %4114 = vmatmul.bf16.gmra.mxu0 %v592
    %v4115 = vpop.f32.mrf.mxu0
    %v4116 = vadd.f32 %v1124, %v4115
    %v4117 = vpop.f32.mrf.mxu0
    %4118 = vdwg.mxu0
    %4119 = vmatpush.bf16.msra.mxu0 %v2728
    %4120 = vmatpush.bf16.msra.mxu0 %v2724
    %4121 = vmatpush.bf16.msra.mxu0 %v2720
    %4122 = vmatpush.bf16.msra.mxu0 %v2716
    %4123 = vmatpush.bf16.msra.mxu0 %v2712
    %4124 = vmatpush.bf16.msra.mxu0 %v2708
    %4125 = vmatpush.bf16.msra.mxu0 %v2704
    %4126 = vmatpush.bf16.msra.mxu0 %v2700
    %4127 = vmatmul.bf16.gmra.mxu0 %v593
    %v4128 = vpop.f32.mrf.mxu0
    %v4129 = vadd.f32 %v4116, %v4128
    %v4130 = vpop.f32.mrf.mxu0
    %4131 = vdwg.mxu0
    %4132 = vmatpush.bf16.msra.mxu0 %v2760
    %4133 = vmatpush.bf16.msra.mxu0 %v2756
    %4134 = vmatpush.bf16.msra.mxu0 %v2752
    %4135 = vmatpush.bf16.msra.mxu0 %v2748
    %4136 = vmatpush.bf16.msra.mxu0 %v2744
    %4137 = vmatpush.bf16.msra.mxu0 %v2740
    %4138 = vmatpush.bf16.msra.mxu0 %v2736
    %4139 = vmatpush.bf16.msra.mxu0 %v2732
    %4140 = vmatmul.bf16.gmra.mxu0 %v594
    %v4141 = vpop.f32.mrf.mxu0
    %v4142 = vadd.f32 %v4129, %v4141
    %v4143 = vpop.f32.mrf.mxu0
    %4144 = vdwg.mxu0
    %4145 = vmatpush.bf16.msra.mxu0 %v2792
    %4146 = vmatpush.bf16.msra.mxu0 %v2788
    %4147 = vmatpush.bf16.msra.mxu0 %v2784
    %4148 = vmatpush.bf16.msra.mxu0 %v2780
    %4149 = vmatpush.bf16.msra.mxu0 %v2776
    %4150 = vmatpush.bf16.msra.mxu0 %v2772
    %4151 = vmatpush.bf16.msra.mxu0 %v2768
    %4152 = vmatpush.bf16.msra.mxu0 %v2764
    %4153 = vmatmul.bf16.gmra.mxu0 %v595
    %v4154 = vpop.f32.mrf.mxu0
    %v4155 = vadd.f32 %v4142, %v4154
    %v4156 = vpop.f32.mrf.mxu0
    %4157 = vdwg.mxu0
    %4158 = vmatpush.bf16.msra.mxu0 %v2824
    %4159 = vmatpush.bf16.msra.mxu0 %v2820
    %4160 = vmatpush.bf16.msra.mxu0 %v2816
    %4161 = vmatpush.bf16.msra.mxu0 %v2812
    %4162 = vmatpush.bf16.msra.mxu0 %v2808
    %4163 = vmatpush.bf16.msra.mxu0 %v2804
    %4164 = vmatpush.bf16.msra.mxu0 %v2800
    %4165 = vmatpush.bf16.msra.mxu0 %v2796
    %4166 = vmatmul.bf16.gmra.mxu0 %v596
    %v4167 = vpop.f32.mrf.mxu0
    %v4168 = vadd.f32 %v4155, %v4167
    %v4169 = vpop.f32.mrf.mxu0
    %4170 = vdwg.mxu0
    %4171 = vmatpush.bf16.msra.mxu0 %v2856
    %4172 = vmatpush.bf16.msra.mxu0 %v2852
    %4173 = vmatpush.bf16.msra.mxu0 %v2848
    %4174 = vmatpush.bf16.msra.mxu0 %v2844
    %4175 = vmatpush.bf16.msra.mxu0 %v2840
    %4176 = vmatpush.bf16.msra.mxu0 %v2836
    %4177 = vmatpush.bf16.msra.mxu0 %v2832
    %4178 = vmatpush.bf16.msra.mxu0 %v2828
    %4179 = vmatmul.bf16.gmra.mxu0 %v597
    %v4180 = vpop.f32.mrf.mxu0
    %v4181 = vadd.f32 %v4168, %v4180
    %v4182 = vpop.f32.mrf.mxu0
    %4183 = vdwg.mxu0
    %4184 = vmatpush.bf16.msra.mxu0 %v2888
    %4185 = vmatpush.bf16.msra.mxu0 %v2884
    %4186 = vmatpush.bf16.msra.mxu0 %v2880
    %4187 = vmatpush.bf16.msra.mxu0 %v2876
    %4188 = vmatpush.bf16.msra.mxu0 %v2872
    %4189 = vmatpush.bf16.msra.mxu0 %v2868
    %4190 = vmatpush.bf16.msra.mxu0 %v2864
    %4191 = vmatpush.bf16.msra.mxu0 %v2860
    %4192 = vmatmul.bf16.gmra.mxu0 %v598
    %v4193 = vpop.f32.mrf.mxu0
    %v4194 = vadd.f32 %v4181, %v4193
    %v4195 = vpop.f32.mrf.mxu0
    %4196 = vdwg.mxu0
    %4197 = vmatpush.bf16.msra.mxu0 %v2920
    %4198 = vmatpush.bf16.msra.mxu0 %v2916
    %4199 = vmatpush.bf16.msra.mxu0 %v2912
    %4200 = vmatpush.bf16.msra.mxu0 %v2908
    %4201 = vmatpush.bf16.msra.mxu0 %v2904
    %4202 = vmatpush.bf16.msra.mxu0 %v2900
    %4203 = vmatpush.bf16.msra.mxu0 %v2896
    %4204 = vmatpush.bf16.msra.mxu0 %v2892
    %4205 = vmatmul.bf16.gmra.mxu0 %v599
    %v4206 = vpop.f32.mrf.mxu0
    %v4207 = vadd.f32 %v4194, %v4206
    %v4208 = vpop.f32.mrf.mxu0
    %4209 = vdwg.mxu0
    %4210 = vmatpush.bf16.msra.mxu0 %v2952
    %4211 = vmatpush.bf16.msra.mxu0 %v2948
    %4212 = vmatpush.bf16.msra.mxu0 %v2944
    %4213 = vmatpush.bf16.msra.mxu0 %v2940
    %4214 = vmatpush.bf16.msra.mxu0 %v2936
    %4215 = vmatpush.bf16.msra.mxu0 %v2932
    %4216 = vmatpush.bf16.msra.mxu0 %v2928
    %4217 = vmatpush.bf16.msra.mxu0 %v2924
    %4218 = vmatmul.bf16.gmra.mxu0 %v600
    %v4219 = vpop.f32.mrf.mxu0
    %v4220 = vadd.f32 %v4207, %v4219
    %v4221 = vpop.f32.mrf.mxu0
    %4222 = vdwg.mxu0
    %4223 = vmatpush.bf16.msra.mxu0 %v2984
    %4224 = vmatpush.bf16.msra.mxu0 %v2980
    %4225 = vmatpush.bf16.msra.mxu0 %v2976
    %4226 = vmatpush.bf16.msra.mxu0 %v2972
    %4227 = vmatpush.bf16.msra.mxu0 %v2968
    %4228 = vmatpush.bf16.msra.mxu0 %v2964
    %4229 = vmatpush.bf16.msra.mxu0 %v2960
    %4230 = vmatpush.bf16.msra.mxu0 %v2956
    %4231 = vmatmul.bf16.gmra.mxu0 %v601
    %v4232 = vpop.f32.mrf.mxu0
    %v4233 = vadd.f32 %v4220, %v4232
    %v4234 = vpop.f32.mrf.mxu0
    %4235 = vdwg.mxu0
    %4236 = vmatpush.bf16.msra.mxu0 %v3016
    %4237 = vmatpush.bf16.msra.mxu0 %v3012
    %4238 = vmatpush.bf16.msra.mxu0 %v3008
    %4239 = vmatpush.bf16.msra.mxu0 %v3004
    %4240 = vmatpush.bf16.msra.mxu0 %v3000
    %4241 = vmatpush.bf16.msra.mxu0 %v2996
    %4242 = vmatpush.bf16.msra.mxu0 %v2992
    %4243 = vmatpush.bf16.msra.mxu0 %v2988
    %4244 = vmatmul.bf16.gmra.mxu0 %v602
    %v4245 = vpop.f32.mrf.mxu0
    %v4246 = vadd.f32 %v4233, %v4245
    %v4247 = vpop.f32.mrf.mxu0
    %4248 = vdwg.mxu0
    %4249 = vmatpush.bf16.msra.mxu0 %v3048
    %4250 = vmatpush.bf16.msra.mxu0 %v3044
    %4251 = vmatpush.bf16.msra.mxu0 %v3040
    %4252 = vmatpush.bf16.msra.mxu0 %v3036
    %4253 = vmatpush.bf16.msra.mxu0 %v3032
    %4254 = vmatpush.bf16.msra.mxu0 %v3028
    %4255 = vmatpush.bf16.msra.mxu0 %v3024
    %4256 = vmatpush.bf16.msra.mxu0 %v3020
    %4257 = vmatmul.bf16.gmra.mxu0 %v603
    %v4258 = vpop.f32.mrf.mxu0
    %v4259 = vadd.f32 %v4246, %v4258
    %v4260 = vpop.f32.mrf.mxu0
    %4261 = vdwg.mxu0
    %4262 = vmatpush.bf16.msra.mxu0 %v3080
    %4263 = vmatpush.bf16.msra.mxu0 %v3076
    %4264 = vmatpush.bf16.msra.mxu0 %v3072
    %4265 = vmatpush.bf16.msra.mxu0 %v3068
    %4266 = vmatpush.bf16.msra.mxu0 %v3064
    %4267 = vmatpush.bf16.msra.mxu0 %v3060
    %4268 = vmatpush.bf16.msra.mxu0 %v3056
    %4269 = vmatpush.bf16.msra.mxu0 %v3052
    %4270 = vmatmul.bf16.gmra.mxu0 %v604
    %v4271 = vpop.f32.mrf.mxu0
    %v4272 = vadd.f32 %v4259, %v4271
    %v4273 = vpop.f32.mrf.mxu0
    %4274 = vdwg.mxu0
    %4275 = vmatpush.bf16.msra.mxu0 %v3112
    %4276 = vmatpush.bf16.msra.mxu0 %v3108
    %4277 = vmatpush.bf16.msra.mxu0 %v3104
    %4278 = vmatpush.bf16.msra.mxu0 %v3100
    %4279 = vmatpush.bf16.msra.mxu0 %v3096
    %4280 = vmatpush.bf16.msra.mxu0 %v3092
    %4281 = vmatpush.bf16.msra.mxu0 %v3088
    %4282 = vmatpush.bf16.msra.mxu0 %v3084
    %4283 = vmatmul.bf16.gmra.mxu0 %v605
    %v4284 = vpop.f32.mrf.mxu0
    %v4285 = vadd.f32 %v4272, %v4284
    %v4286 = vpop.f32.mrf.mxu0
    %4287 = vdwg.mxu0
    %4288 = vmatpush.bf16.msra.mxu0 %v3144
    %4289 = vmatpush.bf16.msra.mxu0 %v3140
    %4290 = vmatpush.bf16.msra.mxu0 %v3136
    %4291 = vmatpush.bf16.msra.mxu0 %v3132
    %4292 = vmatpush.bf16.msra.mxu0 %v3128
    %4293 = vmatpush.bf16.msra.mxu0 %v3124
    %4294 = vmatpush.bf16.msra.mxu0 %v3120
    %4295 = vmatpush.bf16.msra.mxu0 %v3116
    %4296 = vmatmul.bf16.gmra.mxu0 %v606
    %v4297 = vpop.f32.mrf.mxu0
    %v4298 = vadd.f32 %v4285, %v4297
    %v4299 = vpop.f32.mrf.mxu0
    %4300 = vdwg.mxu0
    %4301 = vmatpush.bf16.msra.mxu0 %v3176
    %4302 = vmatpush.bf16.msra.mxu0 %v3172
    %4303 = vmatpush.bf16.msra.mxu0 %v3168
    %4304 = vmatpush.bf16.msra.mxu0 %v3164
    %4305 = vmatpush.bf16.msra.mxu0 %v3160
    %4306 = vmatpush.bf16.msra.mxu0 %v3156
    %4307 = vmatpush.bf16.msra.mxu0 %v3152
    %4308 = vmatpush.bf16.msra.mxu0 %v3148
    %4309 = vmatmul.bf16.gmra.mxu0 %v607
    %v4310 = vpop.f32.mrf.mxu0
    %v4311 = vadd.f32 %v4298, %v4310
    %v4312 = vpop.f32.mrf.mxu0
    %4313 = vdwg.mxu0
    %4314 = vmatpush.bf16.msra.mxu0 %v2697
    %4315 = vmatpush.bf16.msra.mxu0 %v2693
    %4316 = vmatpush.bf16.msra.mxu0 %v2689
    %4317 = vmatpush.bf16.msra.mxu0 %v2685
    %4318 = vmatpush.bf16.msra.mxu0 %v2681
    %4319 = vmatpush.bf16.msra.mxu0 %v2677
    %4320 = vmatpush.bf16.msra.mxu0 %v2673
    %4321 = vmatpush.bf16.msra.mxu0 %v2669
    %4322 = vmatmul.bf16.gmra.mxu0 %v592
    %v4323 = vpop.f32.mrf.mxu0
    %v4324 = vadd.f32 %v1125, %v4323
    %v4325 = vpop.f32.mrf.mxu0
    %4326 = vdwg.mxu0
    %4327 = vmatpush.bf16.msra.mxu0 %v2729
    %4328 = vmatpush.bf16.msra.mxu0 %v2725
    %4329 = vmatpush.bf16.msra.mxu0 %v2721
    %4330 = vmatpush.bf16.msra.mxu0 %v2717
    %4331 = vmatpush.bf16.msra.mxu0 %v2713
    %4332 = vmatpush.bf16.msra.mxu0 %v2709
    %4333 = vmatpush.bf16.msra.mxu0 %v2705
    %4334 = vmatpush.bf16.msra.mxu0 %v2701
    %4335 = vmatmul.bf16.gmra.mxu0 %v593
    %v4336 = vpop.f32.mrf.mxu0
    %v4337 = vadd.f32 %v4324, %v4336
    %v4338 = vpop.f32.mrf.mxu0
    %4339 = vdwg.mxu0
    %4340 = vmatpush.bf16.msra.mxu0 %v2761
    %4341 = vmatpush.bf16.msra.mxu0 %v2757
    %4342 = vmatpush.bf16.msra.mxu0 %v2753
    %4343 = vmatpush.bf16.msra.mxu0 %v2749
    %4344 = vmatpush.bf16.msra.mxu0 %v2745
    %4345 = vmatpush.bf16.msra.mxu0 %v2741
    %4346 = vmatpush.bf16.msra.mxu0 %v2737
    %4347 = vmatpush.bf16.msra.mxu0 %v2733
    %4348 = vmatmul.bf16.gmra.mxu0 %v594
    %v4349 = vpop.f32.mrf.mxu0
    %v4350 = vadd.f32 %v4337, %v4349
    %v4351 = vpop.f32.mrf.mxu0
    %4352 = vdwg.mxu0
    %4353 = vmatpush.bf16.msra.mxu0 %v2793
    %4354 = vmatpush.bf16.msra.mxu0 %v2789
    %4355 = vmatpush.bf16.msra.mxu0 %v2785
    %4356 = vmatpush.bf16.msra.mxu0 %v2781
    %4357 = vmatpush.bf16.msra.mxu0 %v2777
    %4358 = vmatpush.bf16.msra.mxu0 %v2773
    %4359 = vmatpush.bf16.msra.mxu0 %v2769
    %4360 = vmatpush.bf16.msra.mxu0 %v2765
    %4361 = vmatmul.bf16.gmra.mxu0 %v595
    %v4362 = vpop.f32.mrf.mxu0
    %v4363 = vadd.f32 %v4350, %v4362
    %v4364 = vpop.f32.mrf.mxu0
    %4365 = vdwg.mxu0
    %4366 = vmatpush.bf16.msra.mxu0 %v2825
    %4367 = vmatpush.bf16.msra.mxu0 %v2821
    %4368 = vmatpush.bf16.msra.mxu0 %v2817
    %4369 = vmatpush.bf16.msra.mxu0 %v2813
    %4370 = vmatpush.bf16.msra.mxu0 %v2809
    %4371 = vmatpush.bf16.msra.mxu0 %v2805
    %4372 = vmatpush.bf16.msra.mxu0 %v2801
    %4373 = vmatpush.bf16.msra.mxu0 %v2797
    %4374 = vmatmul.bf16.gmra.mxu0 %v596
    %v4375 = vpop.f32.mrf.mxu0
    %v4376 = vadd.f32 %v4363, %v4375
    %v4377 = vpop.f32.mrf.mxu0
    %4378 = vdwg.mxu0
    %4379 = vmatpush.bf16.msra.mxu0 %v2857
    %4380 = vmatpush.bf16.msra.mxu0 %v2853
    %4381 = vmatpush.bf16.msra.mxu0 %v2849
    %4382 = vmatpush.bf16.msra.mxu0 %v2845
    %4383 = vmatpush.bf16.msra.mxu0 %v2841
    %4384 = vmatpush.bf16.msra.mxu0 %v2837
    %4385 = vmatpush.bf16.msra.mxu0 %v2833
    %4386 = vmatpush.bf16.msra.mxu0 %v2829
    %4387 = vmatmul.bf16.gmra.mxu0 %v597
    %v4388 = vpop.f32.mrf.mxu0
    %v4389 = vadd.f32 %v4376, %v4388
    %v4390 = vpop.f32.mrf.mxu0
    %4391 = vdwg.mxu0
    %4392 = vmatpush.bf16.msra.mxu0 %v2889
    %4393 = vmatpush.bf16.msra.mxu0 %v2885
    %4394 = vmatpush.bf16.msra.mxu0 %v2881
    %4395 = vmatpush.bf16.msra.mxu0 %v2877
    %4396 = vmatpush.bf16.msra.mxu0 %v2873
    %4397 = vmatpush.bf16.msra.mxu0 %v2869
    %4398 = vmatpush.bf16.msra.mxu0 %v2865
    %4399 = vmatpush.bf16.msra.mxu0 %v2861
    %4400 = vmatmul.bf16.gmra.mxu0 %v598
    %v4401 = vpop.f32.mrf.mxu0
    %v4402 = vadd.f32 %v4389, %v4401
    %v4403 = vpop.f32.mrf.mxu0
    %4404 = vdwg.mxu0
    %4405 = vmatpush.bf16.msra.mxu0 %v2921
    %4406 = vmatpush.bf16.msra.mxu0 %v2917
    %4407 = vmatpush.bf16.msra.mxu0 %v2913
    %4408 = vmatpush.bf16.msra.mxu0 %v2909
    %4409 = vmatpush.bf16.msra.mxu0 %v2905
    %4410 = vmatpush.bf16.msra.mxu0 %v2901
    %4411 = vmatpush.bf16.msra.mxu0 %v2897
    %4412 = vmatpush.bf16.msra.mxu0 %v2893
    %4413 = vmatmul.bf16.gmra.mxu0 %v599
    %v4414 = vpop.f32.mrf.mxu0
    %v4415 = vadd.f32 %v4402, %v4414
    %v4416 = vpop.f32.mrf.mxu0
    %4417 = vdwg.mxu0
    %4418 = vmatpush.bf16.msra.mxu0 %v2953
    %4419 = vmatpush.bf16.msra.mxu0 %v2949
    %4420 = vmatpush.bf16.msra.mxu0 %v2945
    %4421 = vmatpush.bf16.msra.mxu0 %v2941
    %4422 = vmatpush.bf16.msra.mxu0 %v2937
    %4423 = vmatpush.bf16.msra.mxu0 %v2933
    %4424 = vmatpush.bf16.msra.mxu0 %v2929
    %4425 = vmatpush.bf16.msra.mxu0 %v2925
    %4426 = vmatmul.bf16.gmra.mxu0 %v600
    %v4427 = vpop.f32.mrf.mxu0
    %v4428 = vadd.f32 %v4415, %v4427
    %v4429 = vpop.f32.mrf.mxu0
    %4430 = vdwg.mxu0
    %4431 = vmatpush.bf16.msra.mxu0 %v2985
    %4432 = vmatpush.bf16.msra.mxu0 %v2981
    %4433 = vmatpush.bf16.msra.mxu0 %v2977
    %4434 = vmatpush.bf16.msra.mxu0 %v2973
    %4435 = vmatpush.bf16.msra.mxu0 %v2969
    %4436 = vmatpush.bf16.msra.mxu0 %v2965
    %4437 = vmatpush.bf16.msra.mxu0 %v2961
    %4438 = vmatpush.bf16.msra.mxu0 %v2957
    %4439 = vmatmul.bf16.gmra.mxu0 %v601
    %v4440 = vpop.f32.mrf.mxu0
    %v4441 = vadd.f32 %v4428, %v4440
    %v4442 = vpop.f32.mrf.mxu0
    %4443 = vdwg.mxu0
    %4444 = vmatpush.bf16.msra.mxu0 %v3017
    %4445 = vmatpush.bf16.msra.mxu0 %v3013
    %4446 = vmatpush.bf16.msra.mxu0 %v3009
    %4447 = vmatpush.bf16.msra.mxu0 %v3005
    %4448 = vmatpush.bf16.msra.mxu0 %v3001
    %4449 = vmatpush.bf16.msra.mxu0 %v2997
    %4450 = vmatpush.bf16.msra.mxu0 %v2993
    %4451 = vmatpush.bf16.msra.mxu0 %v2989
    %4452 = vmatmul.bf16.gmra.mxu0 %v602
    %v4453 = vpop.f32.mrf.mxu0
    %v4454 = vadd.f32 %v4441, %v4453
    %v4455 = vpop.f32.mrf.mxu0
    %4456 = vdwg.mxu0
    %4457 = vmatpush.bf16.msra.mxu0 %v3049
    %4458 = vmatpush.bf16.msra.mxu0 %v3045
    %4459 = vmatpush.bf16.msra.mxu0 %v3041
    %4460 = vmatpush.bf16.msra.mxu0 %v3037
    %4461 = vmatpush.bf16.msra.mxu0 %v3033
    %4462 = vmatpush.bf16.msra.mxu0 %v3029
    %4463 = vmatpush.bf16.msra.mxu0 %v3025
    %4464 = vmatpush.bf16.msra.mxu0 %v3021
    %4465 = vmatmul.bf16.gmra.mxu0 %v603
    %v4466 = vpop.f32.mrf.mxu0
    %v4467 = vadd.f32 %v4454, %v4466
    %v4468 = vpop.f32.mrf.mxu0
    %4469 = vdwg.mxu0
    %4470 = vmatpush.bf16.msra.mxu0 %v3081
    %4471 = vmatpush.bf16.msra.mxu0 %v3077
    %4472 = vmatpush.bf16.msra.mxu0 %v3073
    %4473 = vmatpush.bf16.msra.mxu0 %v3069
    %4474 = vmatpush.bf16.msra.mxu0 %v3065
    %4475 = vmatpush.bf16.msra.mxu0 %v3061
    %4476 = vmatpush.bf16.msra.mxu0 %v3057
    %4477 = vmatpush.bf16.msra.mxu0 %v3053
    %4478 = vmatmul.bf16.gmra.mxu0 %v604
    %v4479 = vpop.f32.mrf.mxu0
    %v4480 = vadd.f32 %v4467, %v4479
    %v4481 = vpop.f32.mrf.mxu0
    %4482 = vdwg.mxu0
    %4483 = vmatpush.bf16.msra.mxu0 %v3113
    %4484 = vmatpush.bf16.msra.mxu0 %v3109
    %4485 = vmatpush.bf16.msra.mxu0 %v3105
    %4486 = vmatpush.bf16.msra.mxu0 %v3101
    %4487 = vmatpush.bf16.msra.mxu0 %v3097
    %4488 = vmatpush.bf16.msra.mxu0 %v3093
    %4489 = vmatpush.bf16.msra.mxu0 %v3089
    %4490 = vmatpush.bf16.msra.mxu0 %v3085
    %4491 = vmatmul.bf16.gmra.mxu0 %v605
    %v4492 = vpop.f32.mrf.mxu0
    %v4493 = vadd.f32 %v4480, %v4492
    %v4494 = vpop.f32.mrf.mxu0
    %4495 = vdwg.mxu0
    %4496 = vmatpush.bf16.msra.mxu0 %v3145
    %4497 = vmatpush.bf16.msra.mxu0 %v3141
    %4498 = vmatpush.bf16.msra.mxu0 %v3137
    %4499 = vmatpush.bf16.msra.mxu0 %v3133
    %4500 = vmatpush.bf16.msra.mxu0 %v3129
    %4501 = vmatpush.bf16.msra.mxu0 %v3125
    %4502 = vmatpush.bf16.msra.mxu0 %v3121
    %4503 = vmatpush.bf16.msra.mxu0 %v3117
    %4504 = vmatmul.bf16.gmra.mxu0 %v606
    %v4505 = vpop.f32.mrf.mxu0
    %v4506 = vadd.f32 %v4493, %v4505
    %v4507 = vpop.f32.mrf.mxu0
    %4508 = vdwg.mxu0
    %4509 = vmatpush.bf16.msra.mxu0 %v3177
    %4510 = vmatpush.bf16.msra.mxu0 %v3173
    %4511 = vmatpush.bf16.msra.mxu0 %v3169
    %4512 = vmatpush.bf16.msra.mxu0 %v3165
    %4513 = vmatpush.bf16.msra.mxu0 %v3161
    %4514 = vmatpush.bf16.msra.mxu0 %v3157
    %4515 = vmatpush.bf16.msra.mxu0 %v3153
    %4516 = vmatpush.bf16.msra.mxu0 %v3149
    %4517 = vmatmul.bf16.gmra.mxu0 %v607
    %v4518 = vpop.f32.mrf.mxu0
    %v4519 = vadd.f32 %v4506, %v4518
    %v4520 = vpop.f32.mrf.mxu0
    %4521 = vdwg.mxu0
    %v4522 = vmax.f32 %v3895, 0.0
    %v4523 = vmax.f32 %v4103, 0.0
    %v4524 = vmax.f32 %v4311, 0.0
    %v4525 = vmax.f32 %v4519, 0.0
    %v4526 = vpack.c.bf16 %v4522, %v4522
    %v4527 = vpack.c.bf16 %v4523, %v4523
    %v4528 = vpack.c.bf16 %v4524, %v4524
    %v4529 = vpack.c.bf16 %v4525, %v4525
    %v4530 = vld [vmem:[#allocation10] sm:$0xff]
    %v4531 = vld [vmem:[#allocation10 + $0x8] sm:$0xff]
    %v4532 = vld [vmem:[#allocation10 + $0x10] sm:$0xff]
    %v4533 = vld [vmem:[#allocation10 + $0x18] sm:$0xff]
    %v4534 = vld [vmem:[#allocation10 + $0x20] sm:$0xff]
    %v4535 = vld [vmem:[#allocation10 + $0x28] sm:$0xff]
    %v4536 = vld [vmem:[#allocation10 + $0x30] sm:$0xff]
    %v4537 = vld [vmem:[#allocation10 + $0x38] sm:$0xff]
    %v4538 = vld [vmem:[#allocation10 + $0x40] sm:$0xff]
    %v4539 = vld [vmem:[#allocation10 + $0x48] sm:$0xff]
    %v4540 = vld [vmem:[#allocation10 + $0x50] sm:$0xff]
    %v4541 = vld [vmem:[#allocation10 + $0x58] sm:$0xff]
    %v4542 = vld [vmem:[#allocation10 + $0x60] sm:$0xff]
    %v4543 = vld [vmem:[#allocation10 + $0x68] sm:$0xff]
    %v4544 = vld [vmem:[#allocation10 + $0x70] sm:$0xff]
    %v4545 = vld [vmem:[#allocation10 + $0x78] sm:$0xff]
    %v4546 = vld [vmem:[#allocation10 + $0x80] sm:$0xff]
    %v4547 = vld [vmem:[#allocation10 + $0x88] sm:$0xff]
    %v4548 = vld [vmem:[#allocation10 + $0x90] sm:$0xff]
    %v4549 = vld [vmem:[#allocation10 + $0x98] sm:$0xff]
    %v4550 = vld [vmem:[#allocation10 + $0xa0] sm:$0xff]
    %v4551 = vld [vmem:[#allocation10 + $0xa8] sm:$0xff]
    %v4552 = vld [vmem:[#allocation10 + $0xb0] sm:$0xff]
    %v4553 = vld [vmem:[#allocation10 + $0xb8] sm:$0xff]
    %v4554 = vld [vmem:[#allocation10 + $0xc0] sm:$0xff]
    %v4555 = vld [vmem:[#allocation10 + $0xc8] sm:$0xff]
    %v4556 = vld [vmem:[#allocation10 + $0xd0] sm:$0xff]
    %v4557 = vld [vmem:[#allocation10 + $0xd8] sm:$0xff]
    %v4558 = vld [vmem:[#allocation10 + $0xe0] sm:$0xff]
    %v4559 = vld [vmem:[#allocation10 + $0xe8] sm:$0xff]
    %v4560 = vld [vmem:[#allocation10 + $0xf0] sm:$0xff]
    %v4561 = vld [vmem:[#allocation10 + $0xf8] sm:$0xff]
    %v4562 = vld [vmem:[#allocation10 + $0x100] sm:$0xff]
    %v4563 = vld [vmem:[#allocation10 + $0x108] sm:$0xff]
    %v4564 = vld [vmem:[#allocation10 + $0x110] sm:$0xff]
    %v4565 = vld [vmem:[#allocation10 + $0x118] sm:$0xff]
    %v4566 = vld [vmem:[#allocation10 + $0x120] sm:$0xff]
    %v4567 = vld [vmem:[#allocation10 + $0x128] sm:$0xff]
    %v4568 = vld [vmem:[#allocation10 + $0x130] sm:$0xff]
    %v4569 = vld [vmem:[#allocation10 + $0x138] sm:$0xff]
    %v4570 = vld [vmem:[#allocation10 + $0x140] sm:$0xff]
    %v4571 = vld [vmem:[#allocation10 + $0x148] sm:$0xff]
    %v4572 = vld [vmem:[#allocation10 + $0x150] sm:$0xff]
    %v4573 = vld [vmem:[#allocation10 + $0x158] sm:$0xff]
    %v4574 = vld [vmem:[#allocation10 + $0x160] sm:$0xff]
    %v4575 = vld [vmem:[#allocation10 + $0x168] sm:$0xff]
    %v4576 = vld [vmem:[#allocation10 + $0x170] sm:$0xff]
    %v4577 = vld [vmem:[#allocation10 + $0x178] sm:$0xff]
    %v4578 = vld [vmem:[#allocation10 + $0x180] sm:$0xff]
    %v4579 = vld [vmem:[#allocation10 + $0x188] sm:$0xff]
    %v4580 = vld [vmem:[#allocation10 + $0x190] sm:$0xff]
    %v4581 = vld [vmem:[#allocation10 + $0x198] sm:$0xff]
    %v4582 = vld [vmem:[#allocation10 + $0x1a0] sm:$0xff]
    %v4583 = vld [vmem:[#allocation10 + $0x1a8] sm:$0xff]
    %v4584 = vld [vmem:[#allocation10 + $0x1b0] sm:$0xff]
    %v4585 = vld [vmem:[#allocation10 + $0x1b8] sm:$0xff]
    %v4586 = vld [vmem:[#allocation10 + $0x1c0] sm:$0xff]
    %v4587 = vld [vmem:[#allocation10 + $0x1c8] sm:$0xff]
    %v4588 = vld [vmem:[#allocation10 + $0x1d0] sm:$0xff]
    %v4589 = vld [vmem:[#allocation10 + $0x1d8] sm:$0xff]
    %v4590 = vld [vmem:[#allocation10 + $0x1e0] sm:$0xff]
    %v4591 = vld [vmem:[#allocation10 + $0x1e8] sm:$0xff]
    %v4592 = vld [vmem:[#allocation10 + $0x1f0] sm:$0xff]
    %v4593 = vld [vmem:[#allocation10 + $0x1f8] sm:$0xff]
    %v4594 = vld [vmem:[#allocation10 + $0x200] sm:$0xff]
    %v4595 = vld [vmem:[#allocation10 + $0x208] sm:$0xff]
    %v4596 = vld [vmem:[#allocation10 + $0x210] sm:$0xff]
    %v4597 = vld [vmem:[#allocation10 + $0x218] sm:$0xff]
    %v4598 = vld [vmem:[#allocation10 + $0x220] sm:$0xff]
    %v4599 = vld [vmem:[#allocation10 + $0x228] sm:$0xff]
    %v4600 = vld [vmem:[#allocation10 + $0x230] sm:$0xff]
    %v4601 = vld [vmem:[#allocation10 + $0x238] sm:$0xff]
    %v4602 = vld [vmem:[#allocation10 + $0x240] sm:$0xff]
    %v4603 = vld [vmem:[#allocation10 + $0x248] sm:$0xff]
    %v4604 = vld [vmem:[#allocation10 + $0x250] sm:$0xff]
    %v4605 = vld [vmem:[#allocation10 + $0x258] sm:$0xff]
    %v4606 = vld [vmem:[#allocation10 + $0x260] sm:$0xff]
    %v4607 = vld [vmem:[#allocation10 + $0x268] sm:$0xff]
    %v4608 = vld [vmem:[#allocation10 + $0x270] sm:$0xff]
    %v4609 = vld [vmem:[#allocation10 + $0x278] sm:$0xff]
    %v4610 = vld [vmem:[#allocation10 + $0x280] sm:$0xff]
    %v4611 = vld [vmem:[#allocation10 + $0x288] sm:$0xff]
    %v4612 = vld [vmem:[#allocation10 + $0x290] sm:$0xff]
    %v4613 = vld [vmem:[#allocation10 + $0x298] sm:$0xff]
    %v4614 = vld [vmem:[#allocation10 + $0x2a0] sm:$0xff]
    %v4615 = vld [vmem:[#allocation10 + $0x2a8] sm:$0xff]
    %v4616 = vld [vmem:[#allocation10 + $0x2b0] sm:$0xff]
    %v4617 = vld [vmem:[#allocation10 + $0x2b8] sm:$0xff]
    %v4618 = vld [vmem:[#allocation10 + $0x2c0] sm:$0xff]
    %v4619 = vld [vmem:[#allocation10 + $0x2c8] sm:$0xff]
    %v4620 = vld [vmem:[#allocation10 + $0x2d0] sm:$0xff]
    %v4621 = vld [vmem:[#allocation10 + $0x2d8] sm:$0xff]
    %v4622 = vld [vmem:[#allocation10 + $0x2e0] sm:$0xff]
    %v4623 = vld [vmem:[#allocation10 + $0x2e8] sm:$0xff]
    %v4624 = vld [vmem:[#allocation10 + $0x2f0] sm:$0xff]
    %v4625 = vld [vmem:[#allocation10 + $0x2f8] sm:$0xff]
    %v4626 = vld [vmem:[#allocation10 + $0x300] sm:$0xff]
    %v4627 = vld [vmem:[#allocation10 + $0x308] sm:$0xff]
    %v4628 = vld [vmem:[#allocation10 + $0x310] sm:$0xff]
    %v4629 = vld [vmem:[#allocation10 + $0x318] sm:$0xff]
    %v4630 = vld [vmem:[#allocation10 + $0x320] sm:$0xff]
    %v4631 = vld [vmem:[#allocation10 + $0x328] sm:$0xff]
    %v4632 = vld [vmem:[#allocation10 + $0x330] sm:$0xff]
    %v4633 = vld [vmem:[#allocation10 + $0x338] sm:$0xff]
    %v4634 = vld [vmem:[#allocation10 + $0x340] sm:$0xff]
    %v4635 = vld [vmem:[#allocation10 + $0x348] sm:$0xff]
    %v4636 = vld [vmem:[#allocation10 + $0x350] sm:$0xff]
    %v4637 = vld [vmem:[#allocation10 + $0x358] sm:$0xff]
    %v4638 = vld [vmem:[#allocation10 + $0x360] sm:$0xff]
    %v4639 = vld [vmem:[#allocation10 + $0x368] sm:$0xff]
    %v4640 = vld [vmem:[#allocation10 + $0x370] sm:$0xff]
    %v4641 = vld [vmem:[#allocation10 + $0x378] sm:$0xff]
    %v4642 = vld [vmem:[#allocation10 + $0x380] sm:$0xff]
    %v4643 = vld [vmem:[#allocation10 + $0x388] sm:$0xff]
    %v4644 = vld [vmem:[#allocation10 + $0x390] sm:$0xff]
    %v4645 = vld [vmem:[#allocation10 + $0x398] sm:$0xff]
    %v4646 = vld [vmem:[#allocation10 + $0x3a0] sm:$0xff]
    %v4647 = vld [vmem:[#allocation10 + $0x3a8] sm:$0xff]
    %v4648 = vld [vmem:[#allocation10 + $0x3b0] sm:$0xff]
    %v4649 = vld [vmem:[#allocation10 + $0x3b8] sm:$0xff]
    %v4650 = vld [vmem:[#allocation10 + $0x3c0] sm:$0xff]
    %v4651 = vld [vmem:[#allocation10 + $0x3c8] sm:$0xff]
    %v4652 = vld [vmem:[#allocation10 + $0x3d0] sm:$0xff]
    %v4653 = vld [vmem:[#allocation10 + $0x3d8] sm:$0xff]
    %v4654 = vld [vmem:[#allocation10 + $0x3e0] sm:$0xff]
    %v4655 = vld [vmem:[#allocation10 + $0x3e8] sm:$0xff]
    %v4656 = vld [vmem:[#allocation10 + $0x3f0] sm:$0xff]
    %v4657 = vld [vmem:[#allocation10 + $0x3f8] sm:$0xff]
    %v4658 = vld [vmem:[#allocation11] sm:$0xf]
    %v4660 = vperm.slane %v4658, 0
    %v4661 = vperm.slane %v4658, 1
    %v4662 = vperm.slane %v4658, 2
    %v4663 = vperm.slane %v4658, 3
    %v4796 = vunpack.c.l.b16 %v4530
    %v4797 = vunpack.c.h.b16 %v4530
    %v4798 = vunpack.c.l.b16 %v4531
    %v4799 = vunpack.c.h.b16 %v4531
    %v4800 = vunpack.c.l.b16 %v4532
    %v4801 = vunpack.c.h.b16 %v4532
    %v4802 = vunpack.c.l.b16 %v4533
    %v4803 = vunpack.c.h.b16 %v4533
    %v4804 = vunpack.c.l.b16 %v4534
    %v4805 = vunpack.c.h.b16 %v4534
    %v4806 = vunpack.c.l.b16 %v4535
    %v4807 = vunpack.c.h.b16 %v4535
    %v4808 = vunpack.c.l.b16 %v4536
    %v4809 = vunpack.c.h.b16 %v4536
    %v4810 = vunpack.c.l.b16 %v4537
    %v4811 = vunpack.c.h.b16 %v4537
    %v4812 = vunpack.c.l.b16 %v4538
    %v4813 = vunpack.c.h.b16 %v4538
    %v4814 = vunpack.c.l.b16 %v4539
    %v4815 = vunpack.c.h.b16 %v4539
    %v4816 = vunpack.c.l.b16 %v4540
    %v4817 = vunpack.c.h.b16 %v4540
    %v4818 = vunpack.c.l.b16 %v4541
    %v4819 = vunpack.c.h.b16 %v4541
    %v4820 = vunpack.c.l.b16 %v4542
    %v4821 = vunpack.c.h.b16 %v4542
    %v4822 = vunpack.c.l.b16 %v4543
    %v4823 = vunpack.c.h.b16 %v4543
    %v4824 = vunpack.c.l.b16 %v4544
    %v4825 = vunpack.c.h.b16 %v4544
    %v4826 = vunpack.c.l.b16 %v4545
    %v4827 = vunpack.c.h.b16 %v4545
    %v4828 = vunpack.c.l.b16 %v4546
    %v4829 = vunpack.c.h.b16 %v4546
    %v4830 = vunpack.c.l.b16 %v4547
    %v4831 = vunpack.c.h.b16 %v4547
    %v4832 = vunpack.c.l.b16 %v4548
    %v4833 = vunpack.c.h.b16 %v4548
    %v4834 = vunpack.c.l.b16 %v4549
    %v4835 = vunpack.c.h.b16 %v4549
    %v4836 = vunpack.c.l.b16 %v4550
    %v4837 = vunpack.c.h.b16 %v4550
    %v4838 = vunpack.c.l.b16 %v4551
    %v4839 = vunpack.c.h.b16 %v4551
    %v4840 = vunpack.c.l.b16 %v4552
    %v4841 = vunpack.c.h.b16 %v4552
    %v4842 = vunpack.c.l.b16 %v4553
    %v4843 = vunpack.c.h.b16 %v4553
    %v4844 = vunpack.c.l.b16 %v4554
    %v4845 = vunpack.c.h.b16 %v4554
    %v4846 = vunpack.c.l.b16 %v4555
    %v4847 = vunpack.c.h.b16 %v4555
    %v4848 = vunpack.c.l.b16 %v4556
    %v4849 = vunpack.c.h.b16 %v4556
    %v4850 = vunpack.c.l.b16 %v4557
    %v4851 = vunpack.c.h.b16 %v4557
    %v4852 = vunpack.c.l.b16 %v4558
    %v4853 = vunpack.c.h.b16 %v4558
    %v4854 = vunpack.c.l.b16 %v4559
    %v4855 = vunpack.c.h.b16 %v4559
    %v4856 = vunpack.c.l.b16 %v4560
    %v4857 = vunpack.c.h.b16 %v4560
    %v4858 = vunpack.c.l.b16 %v4561
    %v4859 = vunpack.c.h.b16 %v4561
    %v4860 = vunpack.c.l.b16 %v4562
    %v4861 = vunpack.c.h.b16 %v4562
    %v4862 = vunpack.c.l.b16 %v4563
    %v4863 = vunpack.c.h.b16 %v4563
    %v4864 = vunpack.c.l.b16 %v4564
    %v4865 = vunpack.c.h.b16 %v4564
    %v4866 = vunpack.c.l.b16 %v4565
    %v4867 = vunpack.c.h.b16 %v4565
    %v4868 = vunpack.c.l.b16 %v4566
    %v4869 = vunpack.c.h.b16 %v4566
    %v4870 = vunpack.c.l.b16 %v4567
    %v4871 = vunpack.c.h.b16 %v4567
    %v4872 = vunpack.c.l.b16 %v4568
    %v4873 = vunpack.c.h.b16 %v4568
    %v4874 = vunpack.c.l.b16 %v4569
    %v4875 = vunpack.c.h.b16 %v4569
    %v4876 = vunpack.c.l.b16 %v4570
    %v4877 = vunpack.c.h.b16 %v4570
    %v4878 = vunpack.c.l.b16 %v4571
    %v4879 = vunpack.c.h.b16 %v4571
    %v4880 = vunpack.c.l.b16 %v4572
    %v4881 = vunpack.c.h.b16 %v4572
    %v4882 = vunpack.c.l.b16 %v4573
    %v4883 = vunpack.c.h.b16 %v4573
    %v4884 = vunpack.c.l.b16 %v4574
    %v4885 = vunpack.c.h.b16 %v4574
    %v4886 = vunpack.c.l.b16 %v4575
    %v4887 = vunpack.c.h.b16 %v4575
    %v4888 = vunpack.c.l.b16 %v4576
    %v4889 = vunpack.c.h.b16 %v4576
    %v4890 = vunpack.c.l.b16 %v4577
    %v4891 = vunpack.c.h.b16 %v4577
    %v4892 = vunpack.c.l.b16 %v4578
    %v4893 = vunpack.c.h.b16 %v4578
    %v4894 = vunpack.c.l.b16 %v4579
    %v4895 = vunpack.c.h.b16 %v4579
    %v4896 = vunpack.c.l.b16 %v4580
    %v4897 = vunpack.c.h.b16 %v4580
    %v4898 = vunpack.c.l.b16 %v4581
    %v4899 = vunpack.c.h.b16 %v4581
    %v4900 = vunpack.c.l.b16 %v4582
    %v4901 = vunpack.c.h.b16 %v4582
    %v4902 = vunpack.c.l.b16 %v4583
    %v4903 = vunpack.c.h.b16 %v4583
    %v4904 = vunpack.c.l.b16 %v4584
    %v4905 = vunpack.c.h.b16 %v4584
    %v4906 = vunpack.c.l.b16 %v4585
    %v4907 = vunpack.c.h.b16 %v4585
    %v4908 = vunpack.c.l.b16 %v4586
    %v4909 = vunpack.c.h.b16 %v4586
    %v4910 = vunpack.c.l.b16 %v4587
    %v4911 = vunpack.c.h.b16 %v4587
    %v4912 = vunpack.c.l.b16 %v4588
    %v4913 = vunpack.c.h.b16 %v4588
    %v4914 = vunpack.c.l.b16 %v4589
    %v4915 = vunpack.c.h.b16 %v4589
    %v4916 = vunpack.c.l.b16 %v4590
    %v4917 = vunpack.c.h.b16 %v4590
    %v4918 = vunpack.c.l.b16 %v4591
    %v4919 = vunpack.c.h.b16 %v4591
    %v4920 = vunpack.c.l.b16 %v4592
    %v4921 = vunpack.c.h.b16 %v4592
    %v4922 = vunpack.c.l.b16 %v4593
    %v4923 = vunpack.c.h.b16 %v4593
    %v4924 = vunpack.c.l.b16 %v4594
    %v4925 = vunpack.c.h.b16 %v4594
    %v4926 = vunpack.c.l.b16 %v4595
    %v4927 = vunpack.c.h.b16 %v4595
    %v4928 = vunpack.c.l.b16 %v4596
    %v4929 = vunpack.c.h.b16 %v4596
    %v4930 = vunpack.c.l.b16 %v4597
    %v4931 = vunpack.c.h.b16 %v4597
    %v4932 = vunpack.c.l.b16 %v4598
    %v4933 = vunpack.c.h.b16 %v4598
    %v4934 = vunpack.c.l.b16 %v4599
    %v4935 = vunpack.c.h.b16 %v4599
    %v4936 = vunpack.c.l.b16 %v4600
    %v4937 = vunpack.c.h.b16 %v4600
    %v4938 = vunpack.c.l.b16 %v4601
    %v4939 = vunpack.c.h.b16 %v4601
    %v4940 = vunpack.c.l.b16 %v4602
    %v4941 = vunpack.c.h.b16 %v4602
    %v4942 = vunpack.c.l.b16 %v4603
    %v4943 = vunpack.c.h.b16 %v4603
    %v4944 = vunpack.c.l.b16 %v4604
    %v4945 = vunpack.c.h.b16 %v4604
    %v4946 = vunpack.c.l.b16 %v4605
    %v4947 = vunpack.c.h.b16 %v4605
    %v4948 = vunpack.c.l.b16 %v4606
    %v4949 = vunpack.c.h.b16 %v4606
    %v4950 = vunpack.c.l.b16 %v4607
    %v4951 = vunpack.c.h.b16 %v4607
    %v4952 = vunpack.c.l.b16 %v4608
    %v4953 = vunpack.c.h.b16 %v4608
    %v4954 = vunpack.c.l.b16 %v4609
    %v4955 = vunpack.c.h.b16 %v4609
    %v4956 = vunpack.c.l.b16 %v4610
    %v4957 = vunpack.c.h.b16 %v4610
    %v4958 = vunpack.c.l.b16 %v4611
    %v4959 = vunpack.c.h.b16 %v4611
    %v4960 = vunpack.c.l.b16 %v4612
    %v4961 = vunpack.c.h.b16 %v4612
    %v4962 = vunpack.c.l.b16 %v4613
    %v4963 = vunpack.c.h.b16 %v4613
    %v4964 = vunpack.c.l.b16 %v4614
    %v4965 = vunpack.c.h.b16 %v4614
    %v4966 = vunpack.c.l.b16 %v4615
    %v4967 = vunpack.c.h.b16 %v4615
    %v4968 = vunpack.c.l.b16 %v4616
    %v4969 = vunpack.c.h.b16 %v4616
    %v4970 = vunpack.c.l.b16 %v4617
    %v4971 = vunpack.c.h.b16 %v4617
    %v4972 = vunpack.c.l.b16 %v4618
    %v4973 = vunpack.c.h.b16 %v4618
    %v4974 = vunpack.c.l.b16 %v4619
    %v4975 = vunpack.c.h.b16 %v4619
    %v4976 = vunpack.c.l.b16 %v4620
    %v4977 = vunpack.c.h.b16 %v4620
    %v4978 = vunpack.c.l.b16 %v4621
    %v4979 = vunpack.c.h.b16 %v4621
    %v4980 = vunpack.c.l.b16 %v4622
    %v4981 = vunpack.c.h.b16 %v4622
    %v4982 = vunpack.c.l.b16 %v4623
    %v4983 = vunpack.c.h.b16 %v4623
    %v4984 = vunpack.c.l.b16 %v4624
    %v4985 = vunpack.c.h.b16 %v4624
    %v4986 = vunpack.c.l.b16 %v4625
    %v4987 = vunpack.c.h.b16 %v4625
    %v4988 = vunpack.c.l.b16 %v4626
    %v4989 = vunpack.c.h.b16 %v4626
    %v4990 = vunpack.c.l.b16 %v4627
    %v4991 = vunpack.c.h.b16 %v4627
    %v4992 = vunpack.c.l.b16 %v4628
    %v4993 = vunpack.c.h.b16 %v4628
    %v4994 = vunpack.c.l.b16 %v4629
    %v4995 = vunpack.c.h.b16 %v4629
    %v4996 = vunpack.c.l.b16 %v4630
    %v4997 = vunpack.c.h.b16 %v4630
    %v4998 = vunpack.c.l.b16 %v4631
    %v4999 = vunpack.c.h.b16 %v4631
    %v5000 = vunpack.c.l.b16 %v4632
    %v5001 = vunpack.c.h.b16 %v4632
    %v5002 = vunpack.c.l.b16 %v4633
    %v5003 = vunpack.c.h.b16 %v4633
    %v5004 = vunpack.c.l.b16 %v4634
    %v5005 = vunpack.c.h.b16 %v4634
    %v5006 = vunpack.c.l.b16 %v4635
    %v5007 = vunpack.c.h.b16 %v4635
    %v5008 = vunpack.c.l.b16 %v4636
    %v5009 = vunpack.c.h.b16 %v4636
    %v5010 = vunpack.c.l.b16 %v4637
    %v5011 = vunpack.c.h.b16 %v4637
    %v5012 = vunpack.c.l.b16 %v4638
    %v5013 = vunpack.c.h.b16 %v4638
    %v5014 = vunpack.c.l.b16 %v4639
    %v5015 = vunpack.c.h.b16 %v4639
    %v5016 = vunpack.c.l.b16 %v4640
    %v5017 = vunpack.c.h.b16 %v4640
    %v5018 = vunpack.c.l.b16 %v4641
    %v5019 = vunpack.c.h.b16 %v4641
    %v5020 = vunpack.c.l.b16 %v4642
    %v5021 = vunpack.c.h.b16 %v4642
    %v5022 = vunpack.c.l.b16 %v4643
    %v5023 = vunpack.c.h.b16 %v4643
    %v5024 = vunpack.c.l.b16 %v4644
    %v5025 = vunpack.c.h.b16 %v4644
    %v5026 = vunpack.c.l.b16 %v4645
    %v5027 = vunpack.c.h.b16 %v4645
    %v5028 = vunpack.c.l.b16 %v4646
    %v5029 = vunpack.c.h.b16 %v4646
    %v5030 = vunpack.c.l.b16 %v4647
    %v5031 = vunpack.c.h.b16 %v4647
    %v5032 = vunpack.c.l.b16 %v4648
    %v5033 = vunpack.c.h.b16 %v4648
    %v5034 = vunpack.c.l.b16 %v4649
    %v5035 = vunpack.c.h.b16 %v4649
    %v5036 = vunpack.c.l.b16 %v4650
    %v5037 = vunpack.c.h.b16 %v4650
    %v5038 = vunpack.c.l.b16 %v4651
    %v5039 = vunpack.c.h.b16 %v4651
    %v5040 = vunpack.c.l.b16 %v4652
    %v5041 = vunpack.c.h.b16 %v4652
    %v5042 = vunpack.c.l.b16 %v4653
    %v5043 = vunpack.c.h.b16 %v4653
    %v5044 = vunpack.c.l.b16 %v4654
    %v5045 = vunpack.c.h.b16 %v4654
    %v5046 = vunpack.c.l.b16 %v4655
    %v5047 = vunpack.c.h.b16 %v4655
    %v5048 = vunpack.c.l.b16 %v4656
    %v5049 = vunpack.c.h.b16 %v4656
    %v5050 = vunpack.c.l.b16 %v4657
    %v5051 = vunpack.c.h.b16 %v4657
    %v5052 = vpack.c.b16 %v4800, %v4796
    %v5053 = vpack.c.b16 %v4801, %v4797
    %v5054 = vpack.c.b16 %v4802, %v4798
    %v5055 = vpack.c.b16 %v4803, %v4799
    %v5056 = vpack.c.b16 %v4808, %v4804
    %v5057 = vpack.c.b16 %v4809, %v4805
    %v5058 = vpack.c.b16 %v4810, %v4806
    %v5059 = vpack.c.b16 %v4811, %v4807
    %v5060 = vpack.c.b16 %v4816, %v4812
    %v5061 = vpack.c.b16 %v4817, %v4813
    %v5062 = vpack.c.b16 %v4818, %v4814
    %v5063 = vpack.c.b16 %v4819, %v4815
    %v5064 = vpack.c.b16 %v4824, %v4820
    %v5065 = vpack.c.b16 %v4825, %v4821
    %v5066 = vpack.c.b16 %v4826, %v4822
    %v5067 = vpack.c.b16 %v4827, %v4823
    %v5068 = vpack.c.b16 %v4832, %v4828
    %v5069 = vpack.c.b16 %v4833, %v4829
    %v5070 = vpack.c.b16 %v4834, %v4830
    %v5071 = vpack.c.b16 %v4835, %v4831
    %v5072 = vpack.c.b16 %v4840, %v4836
    %v5073 = vpack.c.b16 %v4841, %v4837
    %v5074 = vpack.c.b16 %v4842, %v4838
    %v5075 = vpack.c.b16 %v4843, %v4839
    %v5076 = vpack.c.b16 %v4848, %v4844
    %v5077 = vpack.c.b16 %v4849, %v4845
    %v5078 = vpack.c.b16 %v4850, %v4846
    %v5079 = vpack.c.b16 %v4851, %v4847
    %v5080 = vpack.c.b16 %v4856, %v4852
    %v5081 = vpack.c.b16 %v4857, %v4853
    %v5082 = vpack.c.b16 %v4858, %v4854
    %v5083 = vpack.c.b16 %v4859, %v4855
    %v5084 = vpack.c.b16 %v4864, %v4860
    %v5085 = vpack.c.b16 %v4865, %v4861
    %v5086 = vpack.c.b16 %v4866, %v4862
    %v5087 = vpack.c.b16 %v4867, %v4863
    %v5088 = vpack.c.b16 %v4872, %v4868
    %v5089 = vpack.c.b16 %v4873, %v4869
    %v5090 = vpack.c.b16 %v4874, %v4870
    %v5091 = vpack.c.b16 %v4875, %v4871
    %v5092 = vpack.c.b16 %v4880, %v4876
    %v5093 = vpack.c.b16 %v4881, %v4877
    %v5094 = vpack.c.b16 %v4882, %v4878
    %v5095 = vpack.c.b16 %v4883, %v4879
    %v5096 = vpack.c.b16 %v4888, %v4884
    %v5097 = vpack.c.b16 %v4889, %v4885
    %v5098 = vpack.c.b16 %v4890, %v4886
    %v5099 = vpack.c.b16 %v4891, %v4887
    %v5100 = vpack.c.b16 %v4896, %v4892
    %v5101 = vpack.c.b16 %v4897, %v4893
    %v5102 = vpack.c.b16 %v4898, %v4894
    %v5103 = vpack.c.b16 %v4899, %v4895
    %v5104 = vpack.c.b16 %v4904, %v4900
    %v5105 = vpack.c.b16 %v4905, %v4901
    %v5106 = vpack.c.b16 %v4906, %v4902
    %v5107 = vpack.c.b16 %v4907, %v4903
    %v5108 = vpack.c.b16 %v4912, %v4908
    %v5109 = vpack.c.b16 %v4913, %v4909
    %v5110 = vpack.c.b16 %v4914, %v4910
    %v5111 = vpack.c.b16 %v4915, %v4911
    %v5112 = vpack.c.b16 %v4920, %v4916
    %v5113 = vpack.c.b16 %v4921, %v4917
    %v5114 = vpack.c.b16 %v4922, %v4918
    %v5115 = vpack.c.b16 %v4923, %v4919
    %v5116 = vpack.c.b16 %v4928, %v4924
    %v5117 = vpack.c.b16 %v4929, %v4925
    %v5118 = vpack.c.b16 %v4930, %v4926
    %v5119 = vpack.c.b16 %v4931, %v4927
    %v5120 = vpack.c.b16 %v4936, %v4932
    %v5121 = vpack.c.b16 %v4937, %v4933
    %v5122 = vpack.c.b16 %v4938, %v4934
    %v5123 = vpack.c.b16 %v4939, %v4935
    %v5124 = vpack.c.b16 %v4944, %v4940
    %v5125 = vpack.c.b16 %v4945, %v4941
    %v5126 = vpack.c.b16 %v4946, %v4942
    %v5127 = vpack.c.b16 %v4947, %v4943
    %v5128 = vpack.c.b16 %v4952, %v4948
    %v5129 = vpack.c.b16 %v4953, %v4949
    %v5130 = vpack.c.b16 %v4954, %v4950
    %v5131 = vpack.c.b16 %v4955, %v4951
    %v5132 = vpack.c.b16 %v4960, %v4956
    %v5133 = vpack.c.b16 %v4961, %v4957
    %v5134 = vpack.c.b16 %v4962, %v4958
    %v5135 = vpack.c.b16 %v4963, %v4959
    %v5136 = vpack.c.b16 %v4968, %v4964
    %v5137 = vpack.c.b16 %v4969, %v4965
    %v5138 = vpack.c.b16 %v4970, %v4966
    %v5139 = vpack.c.b16 %v4971, %v4967
    %v5140 = vpack.c.b16 %v4976, %v4972
    %v5141 = vpack.c.b16 %v4977, %v4973
    %v5142 = vpack.c.b16 %v4978, %v4974
    %v5143 = vpack.c.b16 %v4979, %v4975
    %v5144 = vpack.c.b16 %v4984, %v4980
    %v5145 = vpack.c.b16 %v4985, %v4981
    %v5146 = vpack.c.b16 %v4986, %v4982
    %v5147 = vpack.c.b16 %v4987, %v4983
    %v5148 = vpack.c.b16 %v4992, %v4988
    %v5149 = vpack.c.b16 %v4993, %v4989
    %v5150 = vpack.c.b16 %v4994, %v4990
    %v5151 = vpack.c.b16 %v4995, %v4991
    %v5152 = vpack.c.b16 %v5000, %v4996
    %v5153 = vpack.c.b16 %v5001, %v4997
    %v5154 = vpack.c.b16 %v5002, %v4998
    %v5155 = vpack.c.b16 %v5003, %v4999
    %v5156 = vpack.c.b16 %v5008, %v5004
    %v5157 = vpack.c.b16 %v5009, %v5005
    %v5158 = vpack.c.b16 %v5010, %v5006
    %v5159 = vpack.c.b16 %v5011, %v5007
    %v5160 = vpack.c.b16 %v5016, %v5012
    %v5161 = vpack.c.b16 %v5017, %v5013
    %v5162 = vpack.c.b16 %v5018, %v5014
    %v5163 = vpack.c.b16 %v5019, %v5015
    %v5164 = vpack.c.b16 %v5024, %v5020
    %v5165 = vpack.c.b16 %v5025, %v5021
    %v5166 = vpack.c.b16 %v5026, %v5022
    %v5167 = vpack.c.b16 %v5027, %v5023
    %v5168 = vpack.c.b16 %v5032, %v5028
    %v5169 = vpack.c.b16 %v5033, %v5029
    %v5170 = vpack.c.b16 %v5034, %v5030
    %v5171 = vpack.c.b16 %v5035, %v5031
    %v5172 = vpack.c.b16 %v5040, %v5036
    %v5173 = vpack.c.b16 %v5041, %v5037
    %v5174 = vpack.c.b16 %v5042, %v5038
    %v5175 = vpack.c.b16 %v5043, %v5039
    %v5176 = vpack.c.b16 %v5048, %v5044
    %v5177 = vpack.c.b16 %v5049, %v5045
    %v5178 = vpack.c.b16 %v5050, %v5046
    %v5179 = vpack.c.b16 %v5051, %v5047
    %5308 = vmatpush.bf16.msra.mxu0 %v5080
    %5309 = vmatpush.bf16.msra.mxu0 %v5076
    %5310 = vmatpush.bf16.msra.mxu0 %v5072
    %5311 = vmatpush.bf16.msra.mxu0 %v5068
    %5312 = vmatpush.bf16.msra.mxu0 %v5064
    %5313 = vmatpush.bf16.msra.mxu0 %v5060
    %5314 = vmatpush.bf16.msra.mxu0 %v5056
    %5315 = vmatpush.bf16.msra.mxu0 %v5052
    %5316 = vmatmul.bf16.gmra.mxu0 %v4526
    %v5317 = vpop.f32.mrf.mxu0
    %v5318 = vadd.f32 %v4660, %v5317
    %v5319 = vpop.f32.mrf.mxu0
    %5320 = vdwg.mxu0
    %5321 = vmatpush.bf16.msra.mxu0 %v5112
    %5322 = vmatpush.bf16.msra.mxu0 %v5108
    %5323 = vmatpush.bf16.msra.mxu0 %v5104
    %5324 = vmatpush.bf16.msra.mxu0 %v5100
    %5325 = vmatpush.bf16.msra.mxu0 %v5096
    %5326 = vmatpush.bf16.msra.mxu0 %v5092
    %5327 = vmatpush.bf16.msra.mxu0 %v5088
    %5328 = vmatpush.bf16.msra.mxu0 %v5084
    %5329 = vmatmul.bf16.gmra.mxu0 %v4527
    %v5330 = vpop.f32.mrf.mxu0
    %v5331 = vadd.f32 %v5318, %v5330
    %v5332 = vpop.f32.mrf.mxu0
    %5333 = vdwg.mxu0
    %5334 = vmatpush.bf16.msra.mxu0 %v5144
    %5335 = vmatpush.bf16.msra.mxu0 %v5140
    %5336 = vmatpush.bf16.msra.mxu0 %v5136
    %5337 = vmatpush.bf16.msra.mxu0 %v5132
    %5338 = vmatpush.bf16.msra.mxu0 %v5128
    %5339 = vmatpush.bf16.msra.mxu0 %v5124
    %5340 = vmatpush.bf16.msra.mxu0 %v5120
    %5341 = vmatpush.bf16.msra.mxu0 %v5116
    %5342 = vmatmul.bf16.gmra.mxu0 %v4528
    %v5343 = vpop.f32.mrf.mxu0
    %v5344 = vadd.f32 %v5331, %v5343
    %v5345 = vpop.f32.mrf.mxu0
    %5346 = vdwg.mxu0
    %5347 = vmatpush.bf16.msra.mxu0 %v5176
    %5348 = vmatpush.bf16.msra.mxu0 %v5172
    %5349 = vmatpush.bf16.msra.mxu0 %v5168
    %5350 = vmatpush.bf16.msra.mxu0 %v5164
    %5351 = vmatpush.bf16.msra.mxu0 %v5160
    %5352 = vmatpush.bf16.msra.mxu0 %v5156
    %5353 = vmatpush.bf16.msra.mxu0 %v5152
    %5354 = vmatpush.bf16.msra.mxu0 %v5148
    %5355 = vmatmul.bf16.gmra.mxu0 %v4529
    %v5356 = vpop.f32.mrf.mxu0
    %v5357 = vadd.f32 %v5344, %v5356
    %v5358 = vpop.f32.mrf.mxu0
    %5359 = vdwg.mxu0
    %5360 = vmatpush.bf16.msra.mxu0 %v5081
    %5361 = vmatpush.bf16.msra.mxu0 %v5077
    %5362 = vmatpush.bf16.msra.mxu0 %v5073
    %5363 = vmatpush.bf16.msra.mxu0 %v5069
    %5364 = vmatpush.bf16.msra.mxu0 %v5065
    %5365 = vmatpush.bf16.msra.mxu0 %v5061
    %5366 = vmatpush.bf16.msra.mxu0 %v5057
    %5367 = vmatpush.bf16.msra.mxu0 %v5053
    %5368 = vmatmul.bf16.gmra.mxu0 %v4526
    %v5369 = vpop.f32.mrf.mxu0
    %v5370 = vadd.f32 %v4661, %v5369
    %v5371 = vpop.f32.mrf.mxu0
    %5372 = vdwg.mxu0
    %5373 = vmatpush.bf16.msra.mxu0 %v5113
    %5374 = vmatpush.bf16.msra.mxu0 %v5109
    %5375 = vmatpush.bf16.msra.mxu0 %v5105
    %5376 = vmatpush.bf16.msra.mxu0 %v5101
    %5377 = vmatpush.bf16.msra.mxu0 %v5097
    %5378 = vmatpush.bf16.msra.mxu0 %v5093
    %5379 = vmatpush.bf16.msra.mxu0 %v5089
    %5380 = vmatpush.bf16.msra.mxu0 %v5085
    %5381 = vmatmul.bf16.gmra.mxu0 %v4527
    %v5382 = vpop.f32.mrf.mxu0
    %v5383 = vadd.f32 %v5370, %v5382
    %v5384 = vpop.f32.mrf.mxu0
    %5385 = vdwg.mxu0
    %5386 = vmatpush.bf16.msra.mxu0 %v5145
    %5387 = vmatpush.bf16.msra.mxu0 %v5141
    %5388 = vmatpush.bf16.msra.mxu0 %v5137
    %5389 = vmatpush.bf16.msra.mxu0 %v5133
    %5390 = vmatpush.bf16.msra.mxu0 %v5129
    %5391 = vmatpush.bf16.msra.mxu0 %v5125
    %5392 = vmatpush.bf16.msra.mxu0 %v5121
    %5393 = vmatpush.bf16.msra.mxu0 %v5117
    %5394 = vmatmul.bf16.gmra.mxu0 %v4528
    %v5395 = vpop.f32.mrf.mxu0
    %v5396 = vadd.f32 %v5383, %v5395
    %v5397 = vpop.f32.mrf.mxu0
    %5398 = vdwg.mxu0
    %5399 = vmatpush.bf16.msra.mxu0 %v5177
    %5400 = vmatpush.bf16.msra.mxu0 %v5173
    %5401 = vmatpush.bf16.msra.mxu0 %v5169
    %5402 = vmatpush.bf16.msra.mxu0 %v5165
    %5403 = vmatpush.bf16.msra.mxu0 %v5161
    %5404 = vmatpush.bf16.msra.mxu0 %v5157
    %5405 = vmatpush.bf16.msra.mxu0 %v5153
    %5406 = vmatpush.bf16.msra.mxu0 %v5149
    %5407 = vmatmul.bf16.gmra.mxu0 %v4529
    %v5408 = vpop.f32.mrf.mxu0
    %v5409 = vadd.f32 %v5396, %v5408
    %v5410 = vpop.f32.mrf.mxu0
    %5411 = vdwg.mxu0
    %5412 = vmatpush.bf16.msra.mxu0 %v5082
    %5413 = vmatpush.bf16.msra.mxu0 %v5078
    %5414 = vmatpush.bf16.msra.mxu0 %v5074
    %5415 = vmatpush.bf16.msra.mxu0 %v5070
    %5416 = vmatpush.bf16.msra.mxu0 %v5066
    %5417 = vmatpush.bf16.msra.mxu0 %v5062
    %5418 = vmatpush.bf16.msra.mxu0 %v5058
    %5419 = vmatpush.bf16.msra.mxu0 %v5054
    %5420 = vmatmul.bf16.gmra.mxu0 %v4526
    %v5421 = vpop.f32.mrf.mxu0
    %v5422 = vadd.f32 %v4662, %v5421
    %v5423 = vpop.f32.mrf.mxu0
    %5424 = vdwg.mxu0
    %5425 = vmatpush.bf16.msra.mxu0 %v5114
    %5426 = vmatpush.bf16.msra.mxu0 %v5110
    %5427 = vmatpush.bf16.msra.mxu0 %v5106
    %5428 = vmatpush.bf16.msra.mxu0 %v5102
    %5429 = vmatpush.bf16.msra.mxu0 %v5098
    %5430 = vmatpush.bf16.msra.mxu0 %v5094
    %5431 = vmatpush.bf16.msra.mxu0 %v5090
    %5432 = vmatpush.bf16.msra.mxu0 %v5086
    %5433 = vmatmul.bf16.gmra.mxu0 %v4527
    %v5434 = vpop.f32.mrf.mxu0
    %v5435 = vadd.f32 %v5422, %v5434
    %v5436 = vpop.f32.mrf.mxu0
    %5437 = vdwg.mxu0
    %5438 = vmatpush.bf16.msra.mxu0 %v5146
    %5439 = vmatpush.bf16.msra.mxu0 %v5142
    %5440 = vmatpush.bf16.msra.mxu0 %v5138
    %5441 = vmatpush.bf16.msra.mxu0 %v5134
    %5442 = vmatpush.bf16.msra.mxu0 %v5130
    %5443 = vmatpush.bf16.msra.mxu0 %v5126
    %5444 = vmatpush.bf16.msra.mxu0 %v5122
    %5445 = vmatpush.bf16.msra.mxu0 %v5118
    %5446 = vmatmul.bf16.gmra.mxu0 %v4528
    %v5447 = vpop.f32.mrf.mxu0
    %v5448 = vadd.f32 %v5435, %v5447
    %v5449 = vpop.f32.mrf.mxu0
    %5450 = vdwg.mxu0
    %5451 = vmatpush.bf16.msra.mxu0 %v5178
    %5452 = vmatpush.bf16.msra.mxu0 %v5174
    %5453 = vmatpush.bf16.msra.mxu0 %v5170
    %5454 = vmatpush.bf16.msra.mxu0 %v5166
    %5455 = vmatpush.bf16.msra.mxu0 %v5162
    %5456 = vmatpush.bf16.msra.mxu0 %v5158
    %5457 = vmatpush.bf16.msra.mxu0 %v5154
    %5458 = vmatpush.bf16.msra.mxu0 %v5150
    %5459 = vmatmul.bf16.gmra.mxu0 %v4529
    %v5460 = vpop.f32.mrf.mxu0
    %v5461 = vadd.f32 %v5448, %v5460
    %v5462 = vpop.f32.mrf.mxu0
    %5463 = vdwg.mxu0
    %5464 = vmatpush.bf16.msra.mxu0 %v5083
    %5465 = vmatpush.bf16.msra.mxu0 %v5079
    %5466 = vmatpush.bf16.msra.mxu0 %v5075
    %5467 = vmatpush.bf16.msra.mxu0 %v5071
    %5468 = vmatpush.bf16.msra.mxu0 %v5067
    %5469 = vmatpush.bf16.msra.mxu0 %v5063
    %5470 = vmatpush.bf16.msra.mxu0 %v5059
    %5471 = vmatpush.bf16.msra.mxu0 %v5055
    %5472 = vmatmul.bf16.gmra.mxu0 %v4526
    %v5473 = vpop.f32.mrf.mxu0
    %v5474 = vadd.f32 %v4663, %v5473
    %v5475 = vpop.f32.mrf.mxu0
    %5476 = vdwg.mxu0
    %5477 = vmatpush.bf16.msra.mxu0 %v5115
    %5478 = vmatpush.bf16.msra.mxu0 %v5111
    %5479 = vmatpush.bf16.msra.mxu0 %v5107
    %5480 = vmatpush.bf16.msra.mxu0 %v5103
    %5481 = vmatpush.bf16.msra.mxu0 %v5099
    %5482 = vmatpush.bf16.msra.mxu0 %v5095
    %5483 = vmatpush.bf16.msra.mxu0 %v5091
    %5484 = vmatpush.bf16.msra.mxu0 %v5087
    %5485 = vmatmul.bf16.gmra.mxu0 %v4527
    %v5486 = vpop.f32.mrf.mxu0
    %v5487 = vadd.f32 %v5474, %v5486
    %v5488 = vpop.f32.mrf.mxu0
    %5489 = vdwg.mxu0
    %5490 = vmatpush.bf16.msra.mxu0 %v5147
    %5491 = vmatpush.bf16.msra.mxu0 %v5143
    %5492 = vmatpush.bf16.msra.mxu0 %v5139
    %5493 = vmatpush.bf16.msra.mxu0 %v5135
    %5494 = vmatpush.bf16.msra.mxu0 %v5131
    %5495 = vmatpush.bf16.msra.mxu0 %v5127
    %5496 = vmatpush.bf16.msra.mxu0 %v5123
    %5497 = vmatpush.bf16.msra.mxu0 %v5119
    %5498 = vmatmul.bf16.gmra.mxu0 %v4528
    %v5499 = vpop.f32.mrf.mxu0
    %v5500 = vadd.f32 %v5487, %v5499
    %v5501 = vpop.f32.mrf.mxu0
    %5502 = vdwg.mxu0
    %5503 = vmatpush.bf16.msra.mxu0 %v5179
    %5504 = vmatpush.bf16.msra.mxu0 %v5175
    %5505 = vmatpush.bf16.msra.mxu0 %v5171
    %5506 = vmatpush.bf16.msra.mxu0 %v5167
    %5507 = vmatpush.bf16.msra.mxu0 %v5163
    %5508 = vmatpush.bf16.msra.mxu0 %v5159
    %5509 = vmatpush.bf16.msra.mxu0 %v5155
    %5510 = vmatpush.bf16.msra.mxu0 %v5151
    %5511 = vmatmul.bf16.gmra.mxu0 %v4529
    %v5512 = vpop.f32.mrf.mxu0
    %v5513 = vadd.f32 %v5500, %v5512
    %v5514 = vpop.f32.mrf.mxu0
    %5515 = vdwg.mxu0
    %v5516 = vmax.f32 %v5357, 0.0
    %v5517 = vmax.f32 %v5409, 0.0
    %v5518 = vmax.f32 %v5461, 0.0
    %v5519 = vmax.f32 %v5513, 0.0
    %v5520 = vpack.c.bf16 %v5516, %v5516
    %v5521 = vpack.c.bf16 %v5517, %v5517
    %v5522 = vpack.c.bf16 %v5518, %v5518
    %v5523 = vpack.c.bf16 %v5519, %v5519
    %v5524 = vld [vmem:[%s7] sm:$0xf]
    %v5525 = vld [vmem:[%s7 + $0x4] sm:$0xf]
    %v5526 = vld [vmem:[%s7 + $0x8] sm:$0xf]
    %v5527 = vld [vmem:[%s7 + $0xc] sm:$0xf]
    %v5528 = vld [vmem:[%s7 + $0x10] sm:$0xf]
    %v5529 = vld [vmem:[%s7 + $0x14] sm:$0xf]
    %v5530 = vld [vmem:[%s7 + $0x18] sm:$0xf]
    %v5531 = vld [vmem:[%s7 + $0x1c] sm:$0xf]
    %v5532 = vld [vmem:[%s7 + $0x20] sm:$0xf]
    %v5533 = vld [vmem:[%s7 + $0x24] sm:$0xf]
    %v5534 = vld [vmem:[%s7 + $0x28] sm:$0xf]
    %v5535 = vld [vmem:[%s7 + $0x2c] sm:$0xf]
    %v5536 = vld [vmem:[%s7 + $0x30] sm:$0xf]
    %v5537 = vld [vmem:[%s7 + $0x34] sm:$0xf]
    %v5538 = vld [vmem:[%s7 + $0x38] sm:$0xf]
    %v5539 = vld [vmem:[%s7 + $0x3c] sm:$0xf]
    %v5540 = vld [vmem:[%s7 + $0x40] sm:$0xf]
    %v5541 = vld [vmem:[%s7 + $0x44] sm:$0xf]
    %v5542 = vld [vmem:[%s7 + $0x48] sm:$0xf]
    %v5543 = vld [vmem:[%s7 + $0x4c] sm:$0xf]
    %v5544 = vld [vmem:[%s7 + $0x50] sm:$0xf]
    %v5545 = vld [vmem:[%s7 + $0x54] sm:$0xf]
    %v5546 = vld [vmem:[%s7 + $0x58] sm:$0xf]
    %v5547 = vld [vmem:[%s7 + $0x5c] sm:$0xf]
    %v5548 = vld [vmem:[%s7 + $0x60] sm:$0xf]
    %v5549 = vld [vmem:[%s7 + $0x64] sm:$0xf]
    %v5550 = vld [vmem:[%s7 + $0x68] sm:$0xf]
    %v5551 = vld [vmem:[%s7 + $0x6c] sm:$0xf]
    %v5552 = vld [vmem:[%s7 + $0x70] sm:$0xf]
    %v5553 = vld [vmem:[%s7 + $0x74] sm:$0xf]
    %v5554 = vld [vmem:[%s7 + $0x78] sm:$0xf]
    %v5555 = vld [vmem:[%s7 + $0x7c] sm:$0xf]
    %v5556 = vld [vmem:[%s7 + $0x80] sm:$0xf]
    %v5557 = vld [vmem:[%s7 + $0x84] sm:$0xf]
    %v5558 = vld [vmem:[%s7 + $0x88] sm:$0xf]
    %v5559 = vld [vmem:[%s7 + $0x8c] sm:$0xf]
    %v5560 = vld [vmem:[%s7 + $0x90] sm:$0xf]
    %v5561 = vld [vmem:[%s7 + $0x94] sm:$0xf]
    %v5562 = vld [vmem:[%s7 + $0x98] sm:$0xf]
    %v5563 = vld [vmem:[%s7 + $0x9c] sm:$0xf]
    %v5564 = vld [vmem:[%s7 + $0xa0] sm:$0xf]
    %v5565 = vld [vmem:[%s7 + $0xa4] sm:$0xf]
    %v5566 = vld [vmem:[%s7 + $0xa8] sm:$0xf]
    %v5567 = vld [vmem:[%s7 + $0xac] sm:$0xf]
    %v5568 = vld [vmem:[%s7 + $0xb0] sm:$0xf]
    %v5569 = vld [vmem:[%s7 + $0xb4] sm:$0xf]
    %v5570 = vld [vmem:[%s7 + $0xb8] sm:$0xf]
    %v5571 = vld [vmem:[%s7 + $0xbc] sm:$0xf]
    %v5572 = vld [vmem:[%s7 + $0xc0] sm:$0xf]
    %v5573 = vld [vmem:[%s7 + $0xc4] sm:$0xf]
    %v5574 = vld [vmem:[%s7 + $0xc8] sm:$0xf]
    %v5575 = vld [vmem:[%s7 + $0xcc] sm:$0xf]
    %v5576 = vld [vmem:[%s7 + $0xd0] sm:$0xf]
    %v5577 = vld [vmem:[%s7 + $0xd4] sm:$0xf]
    %v5578 = vld [vmem:[%s7 + $0xd8] sm:$0xf]
    %v5579 = vld [vmem:[%s7 + $0xdc] sm:$0xf]
    %v5580 = vld [vmem:[%s7 + $0xe0] sm:$0xf]
    %v5581 = vld [vmem:[%s7 + $0xe4] sm:$0xf]
    %v5582 = vld [vmem:[%s7 + $0xe8] sm:$0xf]
    %v5583 = vld [vmem:[%s7 + $0xec] sm:$0xf]
    %v5584 = vld [vmem:[%s7 + $0xf0] sm:$0xf]
    %v5585 = vld [vmem:[%s7 + $0xf4] sm:$0xf]
    %v5586 = vld [vmem:[%s7 + $0xf8] sm:$0xf]
    %v5587 = vld [vmem:[%s7 + $0xfc] sm:$0xf]
    %v5588 = vld [vmem:[#allocation13] sm:$0x1]
    %v5590 = vperm.slane %v5588, 0
    %v5656 = vunpack.c.l.b16 %v5524
    %v5657 = vunpack.c.l.b16 %v5525
    %v5658 = vunpack.c.l.b16 %v5526
    %v5659 = vunpack.c.l.b16 %v5527
    %v5660 = vunpack.c.l.b16 %v5528
    %v5661 = vunpack.c.l.b16 %v5529
    %v5662 = vunpack.c.l.b16 %v5530
    %v5663 = vunpack.c.l.b16 %v5531
    %v5664 = vunpack.c.l.b16 %v5532
    %v5665 = vunpack.c.l.b16 %v5533
    %v5666 = vunpack.c.l.b16 %v5534
    %v5667 = vunpack.c.l.b16 %v5535
    %v5668 = vunpack.c.l.b16 %v5536
    %v5669 = vunpack.c.l.b16 %v5537
    %v5670 = vunpack.c.l.b16 %v5538
    %v5671 = vunpack.c.l.b16 %v5539
    %v5672 = vunpack.c.l.b16 %v5540
    %v5673 = vunpack.c.l.b16 %v5541
    %v5674 = vunpack.c.l.b16 %v5542
    %v5675 = vunpack.c.l.b16 %v5543
    %v5676 = vunpack.c.l.b16 %v5544
    %v5677 = vunpack.c.l.b16 %v5545
    %v5678 = vunpack.c.l.b16 %v5546
    %v5679 = vunpack.c.l.b16 %v5547
    %v5680 = vunpack.c.l.b16 %v5548
    %v5681 = vunpack.c.l.b16 %v5549
    %v5682 = vunpack.c.l.b16 %v5550
    %v5683 = vunpack.c.l.b16 %v5551
    %v5684 = vunpack.c.l.b16 %v5552
    %v5685 = vunpack.c.l.b16 %v5553
    %v5686 = vunpack.c.l.b16 %v5554
    %v5687 = vunpack.c.l.b16 %v5555
    %v5688 = vunpack.c.l.b16 %v5556
    %v5689 = vunpack.c.l.b16 %v5557
    %v5690 = vunpack.c.l.b16 %v5558
    %v5691 = vunpack.c.l.b16 %v5559
    %v5692 = vunpack.c.l.b16 %v5560
    %v5693 = vunpack.c.l.b16 %v5561
    %v5694 = vunpack.c.l.b16 %v5562
    %v5695 = vunpack.c.l.b16 %v5563
    %v5696 = vunpack.c.l.b16 %v5564
    %v5697 = vunpack.c.l.b16 %v5565
    %v5698 = vunpack.c.l.b16 %v5566
    %v5699 = vunpack.c.l.b16 %v5567
    %v5700 = vunpack.c.l.b16 %v5568
    %v5701 = vunpack.c.l.b16 %v5569
    %v5702 = vunpack.c.l.b16 %v5570
    %v5703 = vunpack.c.l.b16 %v5571
    %v5704 = vunpack.c.l.b16 %v5572
    %v5705 = vunpack.c.l.b16 %v5573
    %v5706 = vunpack.c.l.b16 %v5574
    %v5707 = vunpack.c.l.b16 %v5575
    %v5708 = vunpack.c.l.b16 %v5576
    %v5709 = vunpack.c.l.b16 %v5577
    %v5710 = vunpack.c.l.b16 %v5578
    %v5711 = vunpack.c.l.b16 %v5579
    %v5712 = vunpack.c.l.b16 %v5580
    %v5713 = vunpack.c.l.b16 %v5581
    %v5714 = vunpack.c.l.b16 %v5582
    %v5715 = vunpack.c.l.b16 %v5583
    %v5716 = vunpack.c.l.b16 %v5584
    %v5717 = vunpack.c.l.b16 %v5585
    %v5718 = vunpack.c.l.b16 %v5586
    %v5719 = vunpack.c.l.b16 %v5587
    %v5720 = vpack.c.b16 %v5657, %v5656
    %v5721 = vpack.c.b16 %v5659, %v5658
    %v5722 = vpack.c.b16 %v5661, %v5660
    %v5723 = vpack.c.b16 %v5663, %v5662
    %v5724 = vpack.c.b16 %v5665, %v5664
    %v5725 = vpack.c.b16 %v5667, %v5666
    %v5726 = vpack.c.b16 %v5669, %v5668
    %v5727 = vpack.c.b16 %v5671, %v5670
    %v5728 = vpack.c.b16 %v5673, %v5672
    %v5729 = vpack.c.b16 %v5675, %v5674
    %v5730 = vpack.c.b16 %v5677, %v5676
    %v5731 = vpack.c.b16 %v5679, %v5678
    %v5732 = vpack.c.b16 %v5681, %v5680
    %v5733 = vpack.c.b16 %v5683, %v5682
    %v5734 = vpack.c.b16 %v5685, %v5684
    %v5735 = vpack.c.b16 %v5687, %v5686
    %v5736 = vpack.c.b16 %v5689, %v5688
    %v5737 = vpack.c.b16 %v5691, %v5690
    %v5738 = vpack.c.b16 %v5693, %v5692
    %v5739 = vpack.c.b16 %v5695, %v5694
    %v5740 = vpack.c.b16 %v5697, %v5696
    %v5741 = vpack.c.b16 %v5699, %v5698
    %v5742 = vpack.c.b16 %v5701, %v5700
    %v5743 = vpack.c.b16 %v5703, %v5702
    %v5744 = vpack.c.b16 %v5705, %v5704
    %v5745 = vpack.c.b16 %v5707, %v5706
    %v5746 = vpack.c.b16 %v5709, %v5708
    %v5747 = vpack.c.b16 %v5711, %v5710
    %v5748 = vpack.c.b16 %v5713, %v5712
    %v5749 = vpack.c.b16 %v5715, %v5714
    %v5750 = vpack.c.b16 %v5717, %v5716
    %v5751 = vpack.c.b16 %v5719, %v5718
    %5784 = vmatpush.bf16.msra.mxu0 %v5727
    %5785 = vmatpush.bf16.msra.mxu0 %v5726
    %5786 = vmatpush.bf16.msra.mxu0 %v5725
    %5787 = vmatpush.bf16.msra.mxu0 %v5724
    %5788 = vmatpush.bf16.msra.mxu0 %v5723
    %5789 = vmatpush.bf16.msra.mxu0 %v5722
    %5790 = vmatpush.bf16.msra.mxu0 %v5721
    %5791 = vmatpush.bf16.msra.mxu0 %v5720
    %5792 = vmatmul.bf16.gmra.mxu0 %v5520
    %v5793 = vpop.f32.mrf.mxu0
    %v5794 = vadd.f32 %v5590, %v5793
    %v5795 = vpop.f32.mrf.mxu0
    %5796 = vdwg.mxu0
    %5797 = vmatpush.bf16.msra.mxu0 %v5735
    %5798 = vmatpush.bf16.msra.mxu0 %v5734
    %5799 = vmatpush.bf16.msra.mxu0 %v5733
    %5800 = vmatpush.bf16.msra.mxu0 %v5732
    %5801 = vmatpush.bf16.msra.mxu0 %v5731
    %5802 = vmatpush.bf16.msra.mxu0 %v5730
    %5803 = vmatpush.bf16.msra.mxu0 %v5729
    %5804 = vmatpush.bf16.msra.mxu0 %v5728
    %5805 = vmatmul.bf16.gmra.mxu0 %v5521
    %v5806 = vpop.f32.mrf.mxu0
    %v5807 = vadd.f32 %v5794, %v5806
    %v5808 = vpop.f32.mrf.mxu0
    %5809 = vdwg.mxu0
    %5810 = vmatpush.bf16.msra.mxu0 %v5743
    %5811 = vmatpush.bf16.msra.mxu0 %v5742
    %5812 = vmatpush.bf16.msra.mxu0 %v5741
    %5813 = vmatpush.bf16.msra.mxu0 %v5740
    %5814 = vmatpush.bf16.msra.mxu0 %v5739
    %5815 = vmatpush.bf16.msra.mxu0 %v5738
    %5816 = vmatpush.bf16.msra.mxu0 %v5737
    %5817 = vmatpush.bf16.msra.mxu0 %v5736
    %5818 = vmatmul.bf16.gmra.mxu0 %v5522
    %v5819 = vpop.f32.mrf.mxu0
    %v5820 = vadd.f32 %v5807, %v5819
    %v5821 = vpop.f32.mrf.mxu0
    %5822 = vdwg.mxu0
    %5823 = vmatpush.bf16.msra.mxu0 %v5751
    %5824 = vmatpush.bf16.msra.mxu0 %v5750
    %5825 = vmatpush.bf16.msra.mxu0 %v5749
    %5826 = vmatpush.bf16.msra.mxu0 %v5748
    %5827 = vmatpush.bf16.msra.mxu0 %v5747
    %5828 = vmatpush.bf16.msra.mxu0 %v5746
    %5829 = vmatpush.bf16.msra.mxu0 %v5745
    %5830 = vmatpush.bf16.msra.mxu0 %v5744
    %5831 = vmatmul.bf16.gmra.mxu0 %v5523
    %v5832 = vpop.f32.mrf.mxu0
    %v5833 = vadd.f32 %v5820, %v5832
    %v5834 = vpop.f32.mrf.mxu0
    %5835 = vdwg.mxu0
    %vm5836 = vcmask 130048
    %5837 = vst.msk [vmem:[#allocation14] sm:$0xff] %vm5836, %v5833
    // Predicated region
    $region66: #{decoder_forward.1} parent=1 // pred_check
      _
    $region67: #{decoder_forward.1} parent=1 // pred_check_branch
      %5839 = sbr.rel (0) target = $region69
    $region68: #{decoder_forward.1} parent=1 // pred_region
      %5841 = vsyncadd [#allocation4], 0
      %s5843 = sshll.u32 [#allocation14], 4
      %s5844 = int_to_ptr.vmem [resolvable:$true] %s5843
      %s5845 = sshll.u32 %s9, 4
      %s5846 = int_to_ptr.hbm [resolvable:$true] %s5845
      %5848 = dma.vmem_to_hbm [thread:$0]  %s5844, 128, %s5846, [#allocation4]
    $region69: #{decoder_forward.1} parent=1 // pred_fallthru
      _
    // Predicated region
    $region70: #{decoder_forward.1} parent=1 // pred_check
      _
    $region71: #{decoder_forward.1} parent=1 // pred_check_branch
      %5850 = sbr.rel (0) target = $region73
    $region72: #{decoder_forward.1} parent=1 // pred_region
      %5852 = dma.done [#allocation4], 128
    $region73: #{decoder_forward.1} parent=1 // pred_fallthru
      _
    %5853 = vsyncpa [#allocation3], 1
    %5854 = vsyncpa [#allocation6], 1
    %5855 = vsyncpa [#allocation9], 1
    %5856 = vsyncpa [#allocation12], 1
    %5857 = vsyncpa [#allocation4], 1

</llo_original>
